<compile_context>
chip_gen: v6e
topology: v6e:2x2x1
jax: 0.10.0
libtpu: 0.0.40
codegen_flags: <defaults>
</compile_context>

<pallas_src>
from functools import partial

import jax
import jax.numpy as jnp
from jax.experimental import pallas as pl
from jax.experimental.pallas import tpu as pltpu


def _reflect_pad_w(a, W):
    """Reflection-pad-1 along the W (second-minor) axis of an (R, W, C) value."""
    return jnp.concatenate([a[:, 1:2, :], a, a[:, W - 2:W - 1, :]], axis=1)


def _conv3x3(ap, w_ref, rows, W, Cp):
    """3x3 VALID conv of padded bf16 slab `ap` (rows+2, W+2, Cp) -> (rows, W, Cp) f32.

    Per dy row-tap, one (rows*W, 3*Cp) slab (dx-major, cin-minor) fused with a single
    K=3*Cp MXU matmul, f32 accumulation.  Only one slab is live at a time.
    """
    acc = None
    for dy in range(3):
        strip = ap[dy:dy + rows]                                      # (rows, W+2, Cp)
        slab = jnp.concatenate(
            [strip[:, dx:dx + W, :] for dx in range(3)], axis=-1      # (rows, W, 3*Cp)
        ).reshape(rows * W, 3 * Cp)
        part = jnp.dot(slab, w_ref[dy],                               # (3*Cp, Cp) tap
                       preferred_element_type=jnp.float32)
        acc = part if acc is None else acc + part
    return acc.reshape(rows, W, Cp)


def _cycle_resnet_kernel(x_ref, w1_ref, w2_ref, shift_ref, o_ref, h_scr,
                         *, H, W, C, Cp, TH):
    NH = TH + 2                               # conv1 rows computed per step (with halo)
    j = pl.program_id(1)
    r0 = pl.multiple_of(j * TH, TH)           # first output row of this block
    # conv1 output rows computed this step: [h_start, h_start + NH), always inside [0, H)
    h_start = jnp.clip(r0 - 1, 0, H - NH)

    def read_x(start, n):
        # cast to bf16 at read time -> all subsequent pads/slabs are bf16
        return x_ref[pl.ds(start, n)].astype(jnp.bfloat16)

    # ---- conv1 input: vertical reflection via row gather, then channel / W pads (bf16)
    top = jnp.where(h_start >= 1, h_start - 1, 1)                 # reflect(h_start - 1)
    bot = jnp.where(h_start + NH <= H - 1, h_start + NH, H - 2)   # reflect(h_start + NH)
    xv = jnp.concatenate(
        [read_x(top, 1), read_x(h_start, NH), read_x(bot, 1)], axis=0)   # (NH+2, W, C)
    if Cp != C:                                       # zero-extend lanes for the MXU
        xv = jnp.concatenate(
            [xv, jnp.zeros((NH + 2, W, Cp - C), jnp.bfloat16)], axis=-1)
    xp = _reflect_pad_w(xv, W)                        # (NH+2, W+2, Cp) bf16

    # ---- conv1 (BN scale folded into w1) -> + shift -> ReLU -> bf16 halo scratch
    h = _conv3x3(xp, w1_ref, NH, W, Cp)               # (NH, W, Cp) f32
    h_scr[...] = jnp.maximum(h + shift_ref[...], 0.0).astype(jnp.bfloat16)
    # TODO(synk): Dropout2d(0.5) is identity in eval mode; train-mode channel masking and
    # train-mode BatchNorm batch statistics are not reproduced here.

    # ---- conv2 input: h rows [r0-1, r0+TH] (global), reflection-mapped, local to h_scr
    t2 = jnp.where(r0 >= 1, r0 - 1, 1) - h_start
    b2 = jnp.where(r0 + TH <= H - 1, r0 + TH, H - 2) - h_start
    m2 = r0 - h_start
    hv = jnp.concatenate(
        [h_scr[pl.ds(t2, 1)], h_scr[pl.ds(m2, TH)], h_scr[pl.ds(b2, 1)]], axis=0)
    hp = _reflect_pad_w(hv, W)                        # (TH+2, W+2, Cp) bf16

    # ---- conv2 + residual (residual and output stay f32, true C channels only)
    y = _conv3x3(hp, w2_ref, TH, W, Cp)               # (TH, W, Cp) f32
    o_ref[...] = (x_ref[pl.ds(r0, TH)] + y[..., :C]).astype(o_ref.dtype)


def _pick_row_tile(H):
    # Prefer TH=8 (review-recommended 8-16): bounds temporaries while giving several
    # grid steps.  Fall back to any divisor of H satisfying H >= TH + 2.
    for th in (8, 16, 4, 2, 1):
        if H % th == 0 and H >= th + 2:
            return th
    raise ValueError(f"CycleResnetBlock Pallas kernel needs H >= 3 (got H={H})")


def _vmem_budget_bytes(H, W, C, Cp, TH):
    """Peak VMEM estimate per grid step, counting all live temporaries."""
    NH = TH + 2
    bf, f32 = 2, 4
    b = 0
    b += 2 * H * W * C * f32                                    # whole-image x, 2 bufs
    b += 2 * TH * W * C * f32                                   # output block, 2 bufs
    b += 2 * (2 * 3 * 3 * Cp * Cp * bf + Cp * f32)              # w1 + w2 + shift, 2 bufs
    b += NH * W * Cp * bf                                       # h scratch (bf16)
    # conv1 temporaries: xv, xp, per-dy slab, f32 acc, h value
    b += (NH + 2) * W * Cp * bf + (NH + 2) * (W + 2) * Cp * bf
    b += NH * W * 3 * Cp * bf + 2 * NH * W * Cp * f32
    # conv2 temporaries: hv, hp, per-dy slab, f32 acc, residual rows
    b += (TH + 2) * W * Cp * bf + (TH + 2) * (W + 2) * Cp * bf
    b += TH * W * 3 * Cp * bf + TH * W * Cp * f32 + TH * W * C * f32
    return b


def cycle_resnet_block(x_nchw, w1_oihw, w2_oihw, gamma, beta, run_mean, run_var,
                       eps=1e-5, row_tile=None):
    """Pallas implementation of CycleResnetBlock.forward (eval-mode)."""
    N, C, H, W = x_nchw.shape
    assert H >= 3 and W >= 2, "spatial dims too small for ReflectionPad2d(1) row tiling"
    TH = _pick_row_tile(H) if row_tile is None else row_tile
    assert H % TH == 0 and H >= TH + 2
    Cp = max(128, ((C + 127) // 128) * 128)          # lane-dense channels for the MXU
    pc = Cp - C

    # NHWC in HBM with the TRUE channel count (no wrapper-side channel padding; the
    # kernel zero-extends lanes on the fly -> no 16x HBM inflation for small C).
    x = jnp.transpose(x_nchw, (0, 2, 3, 1)).astype(jnp.float32)

    inv_std = (gamma / jnp.sqrt(run_var + eps)).astype(jnp.float32)
    shift = (beta - run_mean * inv_std).astype(jnp.float32)

    def prep_w(w_oihw, scale_out=None):
        w = jnp.transpose(w_oihw, (2, 3, 1, 0)).astype(jnp.float32)   # (kh, kw, cin, cout)
        if scale_out is not None:                                     # fold BN scale (f32)
            w = w * scale_out[None, None, None, :]
        w = jnp.pad(w, ((0, 0), (0, 0), (0, pc), (0, pc)))
        return w.reshape(3, 3 * Cp, Cp).astype(jnp.bfloat16)          # [dy, dx*Cp + cin, cout]

    w1 = prep_w(w1_oihw, inv_std)
    w2 = prep_w(w2_oihw)
    shift_p = jnp.pad(shift, (0, pc)).reshape(1, 1, Cp).astype(jnp.float32)

    # VMEM budget: full temporary accounting, capped per generation.
    working = _vmem_budget_bytes(H, W, C, Cp, TH)
    try:
        phys = int(pltpu.get_tpu_info().vmem_capacity_bytes)
    except Exception:
        phys = 64 * 2 ** 20                          # conservative (v7x-sized) fallback
    cap = min((phys * 3) // 4, 100 * 2 ** 20)        # v7x: ~48 MiB; v5e/v6e: ~96-100 MiB
    vmem_limit = int(min(max(int(working * 1.3), 32 * 2 ** 20), cap))

    out = pl.pallas_call(
        partial(_cycle_resnet_kernel, H=H, W=W, C=C, Cp=Cp, TH=TH),
        out_shape=jax.ShapeDtypeStruct((N, H, W, C), jnp.float32),
        grid_spec=pltpu.PrefetchScalarGridSpec(
            num_scalar_prefetch=0,
            grid=(N, H // TH),
            in_specs=[
                # whole image per batch element, invariant across the row axis
                pl.BlockSpec((None, H, W, C), lambda n, j: (n, 0, 0, 0)),
                pl.BlockSpec((3, 3 * Cp, Cp), lambda n, j: (0, 0, 0)),   # conv1 w (bf16)
                pl.BlockSpec((3, 3 * Cp, Cp), lambda n, j: (0, 0, 0)),   # conv2 w (bf16)
                pl.BlockSpec((1, 1, Cp), lambda n, j: (0, 0, 0)),        # BN shift (f32)
            ],
            out_specs=pl.BlockSpec((None, TH, W, C), lambda n, j: (n, j, 0, 0)),
            scratch_shapes=[pltpu.VMEM((TH + 2, W, Cp), jnp.bfloat16)],  # conv1 halo rows
        ),
        compiler_params=pltpu.CompilerParams(
            dimension_semantics=("parallel", "parallel"),   # batch + row blocks shardable
            vmem_limit_bytes=vmem_limit,
        ),
    )(x, w1, w2, shift_p)

    return jnp.transpose(out, (0, 3, 1, 2))          # back to NCHW


def _reference(x, w1, w2, gamma, beta, run_mean, run_var, eps=1e-5):
    """Pure-JAX f32 (NCHW) reference mirroring the PyTorch eval-mode forward."""
    inv_std = gamma / jnp.sqrt(run_var + eps)
    scale = inv_std[None, :, None, None]
    shift = (beta - run_mean * inv_std)[None, :, None, None]

    def conv(a, w):
        ap = jnp.pad(a, ((0, 0), (0, 0), (1, 1), (1, 1)), mode="reflect")
        return jax.lax.conv_general_dilated(
            ap, w, window_strides=(1, 1), padding="VALID",
            dimension_numbers=("NCHW", "OIHW", "NCHW"),
            precision=jax.lax.Precision.HIGHEST)

    h = conv(x, w1)
    h = h * scale + shift
    h = jnp.maximum(h, 0.0)
    return x + conv(h, w2)


def _make_case(key, N, C, H, W):
    ks = jax.random.split(key, 7)
    x = jax.random.normal(ks[0], (N, C, H, W), jnp.float32)
    # Conv2d(n_C, n_C, kernel_size=3, bias=False) -> weight shape (C, C, 3, 3)
    w1 = 0.2 * jax.random.normal(ks[1], (C, C, 3, 3), jnp.float32)
    w2 = 0.2 * jax.random.normal(ks[2], (C, C, 3, 3), jnp.float32)
    # BatchNorm2d(n_C) parameters / running stats (deterministic synthetic values)
    gamma = 1.0 + 0.1 * jax.random.normal(ks[3], (C,), jnp.float32)
    beta = 0.05 * jax.random.normal(ks[4], (C,), jnp.float32)
    run_mean = 0.1 * jax.random.normal(ks[5], (C,), jnp.float32)
    run_var = 0.5 + 0.5 * jnp.abs(jax.random.normal(ks[6], (C,), jnp.float32))
    return x, w1, w2, gamma, beta, run_mean, run_var


if __name__ == "__main__":
    key = jax.random.PRNGKey(0)
    k_a, k_b = jax.random.split(key)

    # Case A: boundary row-blocks only (2 blocks of TH=8).  Case B: also exercises the
    # interior row-block path (4 blocks) and a different (tiny) channel count.
    cases = [(k_a, (2, 8, 16, 16)), (k_b, (1, 4, 32, 32))]

    for kk, (N, C, H, W) in cases:
        args = _make_case(kk, N, C, H, W)
        out = jax.block_until_ready(cycle_resnet_block(*args))
        ref = _reference(*args)
        assert out.shape == args[0].shape and out.dtype == args[0].dtype
        # bf16 MXU operands (f32 accumulation) -> loosened tolerance vs f32 HIGHEST ref.
        max_err = float(jnp.max(jnp.abs(out - ref)))
        assert jnp.allclose(out, ref, rtol=5e-2, atol=5e-2), (
            f"max abs err = {max_err} for shape {(N, C, H, W)}")

    print("KERNEL_OK")
</pallas_src>

<mosaic_0001>
module attributes {stable_mosaic.version = 11 : i64} {
  func.func @_cycle_resnet_kernel(%arg0: i32, %arg1: i32, %arg2: memref<1x16x16x8xf32, #tpu.memory_space<vmem>>, %arg3: memref<3x384x128xbf16, #tpu.memory_space<vmem>>, %arg4: memref<3x384x128xbf16, #tpu.memory_space<vmem>>, %arg5: memref<1x1x128xf32, #tpu.memory_space<vmem>>, %arg6: memref<1x8x16x8xf32, #tpu.memory_space<vmem>>, %arg7: memref<10x16x128xbf16, #tpu.memory_space<vmem>>) attributes {dimension_semantics = [#tpu.dimension_semantics<parallel>, #tpu.dimension_semantics<parallel>], iteration_bounds = array<i64: 2, 2>, scalar_prefetch = 0 : i64, scratch_operands = 1 : i64, tpu.core_type = #tpu.core_type<tc>, window_params = [{transform_indices = @transform_0, window_bounds = array<i64: 1, 16, 16, 8>}, {pipeline_mode = #tpu.pipeline_mode<synchronous>, transform_indices = @transform_1, window_bounds = array<i64: 3, 384, 128>}, {pipeline_mode = #tpu.pipeline_mode<synchronous>, transform_indices = @transform_2, window_bounds = array<i64: 3, 384, 128>}, {pipeline_mode = #tpu.pipeline_mode<synchronous>, transform_indices = @transform_3, window_bounds = array<i64: 1, 1, 128>}, {transform_indices = @transform_4, window_bounds = array<i64: 1, 8, 16, 8>}]} {
    %c8_i32 = arith.constant 8 : i32
    %0 = arith.muli %arg1, %c8_i32 : i32
    %1 = tpu.assume_multiple %0, 8 : i32
    %c1_i32 = arith.constant 1 : i32
    %2 = arith.subi %1, %c1_i32 : i32
    %c0_i32 = arith.constant 0 : i32
    %c6_i32 = arith.constant 6 : i32
    %3 = arith.maxsi %c0_i32, %2 : i32
    %4 = arith.minsi %c6_i32, %3 : i32
    %c1_i32_0 = arith.constant 1 : i32
    %5 = arith.cmpi sge, %4, %c1_i32_0 : i32
    %c1_i32_1 = arith.constant 1 : i32
    %6 = arith.subi %4, %c1_i32_1 : i32
    %c1_i32_2 = arith.constant 1 : i32
    %7 = arith.select %5, %6, %c1_i32_2 : i32
    %c10_i32 = arith.constant 10 : i32
    %8 = arith.addi %4, %c10_i32 : i32
    %c15_i32 = arith.constant 15 : i32
    %9 = arith.cmpi sle, %8, %c15_i32 : i32
    %c10_i32_3 = arith.constant 10 : i32
    %10 = arith.addi %4, %c10_i32_3 : i32
    %c14_i32 = arith.constant 14 : i32
    %11 = arith.select %9, %10, %c14_i32 : i32
    %c0 = arith.constant 0 : index
    %12 = arith.index_cast %7 : i32 to index
    %c0_4 = arith.constant 0 : index
    %c0_5 = arith.constant 0 : index
    %13 = vector.load %arg2[%c0, %12, %c0_4, %c0_5] : memref<1x16x16x8xf32, #tpu.memory_space<vmem>>, vector<1x1x16x8xf32>
    %14 = vector.shape_cast %13 : vector<1x1x16x8xf32> to vector<1x16x8xf32>
    %15 = arith.truncf %14 : vector<1x16x8xf32> to vector<1x16x8xbf16>
    %c0_6 = arith.constant 0 : index
    %16 = arith.index_cast %4 : i32 to index
    %c0_7 = arith.constant 0 : index
    %c0_8 = arith.constant 0 : index
    %17 = vector.load %arg2[%c0_6, %16, %c0_7, %c0_8] : memref<1x16x16x8xf32, #tpu.memory_space<vmem>>, vector<1x10x16x8xf32>
    %18 = vector.shape_cast %17 : vector<1x10x16x8xf32> to vector<10x16x8xf32>
    %19 = arith.truncf %18 : vector<10x16x8xf32> to vector<10x16x8xbf16>
    %c0_9 = arith.constant 0 : index
    %20 = arith.index_cast %11 : i32 to index
    %c0_10 = arith.constant 0 : index
    %c0_11 = arith.constant 0 : index
    %21 = vector.load %arg2[%c0_9, %20, %c0_10, %c0_11] : memref<1x16x16x8xf32, #tpu.memory_space<vmem>>, vector<1x1x16x8xf32>
    %22 = vector.shape_cast %21 : vector<1x1x16x8xf32> to vector<1x16x8xf32>
    %23 = arith.truncf %22 : vector<1x16x8xf32> to vector<1x16x8xbf16>
    %24 = tpu.concatenate %15, %19, %23 in 0 : vector<1x16x8xbf16>, vector<10x16x8xbf16>, vector<1x16x8xbf16> -> vector<12x16x8xbf16>
    %cst = arith.constant 0.000000e+00 : bf16
    %25 = vector.broadcast %cst : bf16 to vector<12x16x120xbf16>
    %26 = tpu.concatenate %24, %25 in 2 : vector<12x16x8xbf16>, vector<12x16x120xbf16> -> vector<12x16x128xbf16>
    %27 = vector.extract_strided_slice %26 {offsets = [0, 1, 0], sizes = [12, 1, 128], strides = [1, 1, 1]} : vector<12x16x128xbf16> to vector<12x1x128xbf16>
    %28 = vector.extract_strided_slice %26 {offsets = [0, 14, 0], sizes = [12, 1, 128], strides = [1, 1, 1]} : vector<12x16x128xbf16> to vector<12x1x128xbf16>
    %29 = tpu.concatenate %27, %26, %28 in 1 : vector<12x1x128xbf16>, vector<12x16x128xbf16>, vector<12x1x128xbf16> -> vector<12x18x128xbf16>
    %30 = vector.extract_strided_slice %29 {offsets = [0, 0, 0], sizes = [10, 18, 128], strides = [1, 1, 1]} : vector<12x18x128xbf16> to vector<10x18x128xbf16>
    %31 = vector.extract_strided_slice %30 {offsets = [0, 0, 0], sizes = [10, 16, 128], strides = [1, 1, 1]} : vector<10x18x128xbf16> to vector<10x16x128xbf16>
    %32 = vector.extract_strided_slice %30 {offsets = [0, 1, 0], sizes = [10, 16, 128], strides = [1, 1, 1]} : vector<10x18x128xbf16> to vector<10x16x128xbf16>
    %33 = vector.extract_strided_slice %30 {offsets = [0, 2, 0], sizes = [10, 16, 128], strides = [1, 1, 1]} : vector<10x18x128xbf16> to vector<10x16x128xbf16>
    %34 = tpu.concatenate %31, %32, %33 in 2 : vector<10x16x128xbf16>, vector<10x16x128xbf16>, vector<10x16x128xbf16> -> vector<10x16x384xbf16>
    %35 = vector.shape_cast %34 : vector<10x16x384xbf16> to vector<160x384xbf16>
    %c0_12 = arith.constant 0 : index
    %c0_13 = arith.constant 0 : index
    %c0_14 = arith.constant 0 : index
    %36 = vector.load %arg3[%c0_12, %c0_13, %c0_14] : memref<3x384x128xbf16, #tpu.memory_space<vmem>>, vector<1x384x128xbf16>
    %37 = vector.shape_cast %36 : vector<1x384x128xbf16> to vector<384x128xbf16>
    %cst_15 = arith.constant dense<0.000000e+00> : vector<160x128xf32>
    %38 = tpu.matmul %35, %37, %cst_15 {dimension_numbers = #tpu.dot_dimension_numbers<[1], [0], [0], [1], [0, 0, 1, 1], [], []>} : vector<160x384xbf16>, vector<384x128xbf16>, vector<160x128xf32> -> vector<160x128xf32>
    %39 = vector.extract_strided_slice %29 {offsets = [1, 0, 0], sizes = [10, 18, 128], strides = [1, 1, 1]} : vector<12x18x128xbf16> to vector<10x18x128xbf16>
    %40 = vector.extract_strided_slice %39 {offsets = [0, 0, 0], sizes = [10, 16, 128], strides = [1, 1, 1]} : vector<10x18x128xbf16> to vector<10x16x128xbf16>
    %41 = vector.extract_strided_slice %39 {offsets = [0, 1, 0], sizes = [10, 16, 128], strides = [1, 1, 1]} : vector<10x18x128xbf16> to vector<10x16x128xbf16>
    %42 = vector.extract_strided_slice %39 {offsets = [0, 2, 0], sizes = [10, 16, 128], strides = [1, 1, 1]} : vector<10x18x128xbf16> to vector<10x16x128xbf16>
    %43 = tpu.concatenate %40, %41, %42 in 2 : vector<10x16x128xbf16>, vector<10x16x128xbf16>, vector<10x16x128xbf16> -> vector<10x16x384xbf16>
    %44 = vector.shape_cast %43 : vector<10x16x384xbf16> to vector<160x384xbf16>
    %c1 = arith.constant 1 : index
    %c0_16 = arith.constant 0 : index
    %c0_17 = arith.constant 0 : index
    %45 = vector.load %arg3[%c1, %c0_16, %c0_17] : memref<3x384x128xbf16, #tpu.memory_space<vmem>>, vector<1x384x128xbf16>
    %46 = vector.shape_cast %45 : vector<1x384x128xbf16> to vector<384x128xbf16>
    %cst_18 = arith.constant dense<0.000000e+00> : vector<160x128xf32>
    %47 = tpu.matmul %44, %46, %cst_18 {dimension_numbers = #tpu.dot_dimension_numbers<[1], [0], [0], [1], [0, 0, 1, 1], [], []>} : vector<160x384xbf16>, vector<384x128xbf16>, vector<160x128xf32> -> vector<160x128xf32>
    %48 = arith.addf %38, %47 : vector<160x128xf32>
    %49 = vector.extract_strided_slice %29 {offsets = [2, 0, 0], sizes = [10, 18, 128], strides = [1, 1, 1]} : vector<12x18x128xbf16> to vector<10x18x128xbf16>
    %50 = vector.extract_strided_slice %49 {offsets = [0, 0, 0], sizes = [10, 16, 128], strides = [1, 1, 1]} : vector<10x18x128xbf16> to vector<10x16x128xbf16>
    %51 = vector.extract_strided_slice %49 {offsets = [0, 1, 0], sizes = [10, 16, 128], strides = [1, 1, 1]} : vector<10x18x128xbf16> to vector<10x16x128xbf16>
    %52 = vector.extract_strided_slice %49 {offsets = [0, 2, 0], sizes = [10, 16, 128], strides = [1, 1, 1]} : vector<10x18x128xbf16> to vector<10x16x128xbf16>
    %53 = tpu.concatenate %50, %51, %52 in 2 : vector<10x16x128xbf16>, vector<10x16x128xbf16>, vector<10x16x128xbf16> -> vector<10x16x384xbf16>
    %54 = vector.shape_cast %53 : vector<10x16x384xbf16> to vector<160x384xbf16>
    %c2 = arith.constant 2 : index
    %c0_19 = arith.constant 0 : index
    %c0_20 = arith.constant 0 : index
    %55 = vector.load %arg3[%c2, %c0_19, %c0_20] : memref<3x384x128xbf16, #tpu.memory_space<vmem>>, vector<1x384x128xbf16>
    %56 = vector.shape_cast %55 : vector<1x384x128xbf16> to vector<384x128xbf16>
    %cst_21 = arith.constant dense<0.000000e+00> : vector<160x128xf32>
    %57 = tpu.matmul %54, %56, %cst_21 {dimension_numbers = #tpu.dot_dimension_numbers<[1], [0], [0], [1], [0, 0, 1, 1], [], []>} : vector<160x384xbf16>, vector<384x128xbf16>, vector<160x128xf32> -> vector<160x128xf32>
    %58 = arith.addf %48, %57 : vector<160x128xf32>
    %59 = vector.shape_cast %58 : vector<160x128xf32> to vector<10x16x128xf32>
    %c0_22 = arith.constant 0 : index
    %c0_23 = arith.constant 0 : index
    %c0_24 = arith.constant 0 : index
    %60 = vector.load %arg5[%c0_22, %c0_23, %c0_24] : memref<1x1x128xf32, #tpu.memory_space<vmem>>, vector<1x1x128xf32>
    %61 = vector.broadcast %60 : vector<1x1x128xf32> to vector<10x16x128xf32>
    %62 = arith.addf %59, %61 : vector<10x16x128xf32>
    %cst_25 = arith.constant 0.000000e+00 : f32
    %63 = vector.broadcast %cst_25 : f32 to vector<10x16x128xf32>
    %64 = arith.maximumf %62, %63 : vector<10x16x128xf32>
    %65 = arith.truncf %64 : vector<10x16x128xf32> to vector<10x16x128xbf16>
    %c0_26 = arith.constant 0 : index
    %c0_27 = arith.constant 0 : index
    %c0_28 = arith.constant 0 : index
    %66 = vector.load %arg7[%c0_26, %c0_27, %c0_28] : memref<10x16x128xbf16, #tpu.memory_space<vmem>>, vector<10x16x128xbf16>
    tpu.vector_store %arg7[%c0_26, %c0_27, %c0_28], %65 {strides = array<i32>} : memref<10x16x128xbf16, #tpu.memory_space<vmem>>, vector<10x16x128xbf16>,
    %c1_i32_29 = arith.constant 1 : i32
    %67 = arith.cmpi sge, %1, %c1_i32_29 : i32
    %c1_i32_30 = arith.constant 1 : i32
    %68 = arith.subi %1, %c1_i32_30 : i32
    %c1_i32_31 = arith.constant 1 : i32
    %69 = arith.select %67, %68, %c1_i32_31 : i32
    %70 = arith.subi %69, %4 : i32
    %c8_i32_32 = arith.constant 8 : i32
    %71 = arith.addi %1, %c8_i32_32 : i32
    %c15_i32_33 = arith.constant 15 : i32
    %72 = arith.cmpi sle, %71, %c15_i32_33 : i32
    %c8_i32_34 = arith.constant 8 : i32
    %73 = arith.addi %1, %c8_i32_34 : i32
    %c14_i32_35 = arith.constant 14 : i32
    %74 = arith.select %72, %73, %c14_i32_35 : i32
    %75 = arith.subi %74, %4 : i32
    %76 = arith.subi %1, %4 : i32
    %77 = arith.index_cast %70 : i32 to index
    %c0_36 = arith.constant 0 : index
    %c0_37 = arith.constant 0 : index
    %78 = vector.load %arg7[%77, %c0_36, %c0_37] : memref<10x16x128xbf16, #tpu.memory_space<vmem>>, vector<1x16x128xbf16>
    %79 = arith.index_cast %76 : i32 to index
    %c0_38 = arith.constant 0 : index
    %c0_39 = arith.constant 0 : index
    %80 = vector.load %arg7[%79, %c0_38, %c0_39] : memref<10x16x128xbf16, #tpu.memory_space<vmem>>, vector<8x16x128xbf16>
    %81 = arith.index_cast %75 : i32 to index
    %c0_40 = arith.constant 0 : index
    %c0_41 = arith.constant 0 : index
    %82 = vector.load %arg7[%81, %c0_40, %c0_41] : memref<10x16x128xbf16, #tpu.memory_space<vmem>>, vector<1x16x128xbf16>
    %83 = tpu.concatenate %78, %80, %82 in 0 : vector<1x16x128xbf16>, vector<8x16x128xbf16>, vector<1x16x128xbf16> -> vector<10x16x128xbf16>
    %84 = vector.extract_strided_slice %83 {offsets = [0, 1, 0], sizes = [10, 1, 128], strides = [1, 1, 1]} : vector<10x16x128xbf16> to vector<10x1x128xbf16>
    %85 = vector.extract_strided_slice %83 {offsets = [0, 14, 0], sizes = [10, 1, 128], strides = [1, 1, 1]} : vector<10x16x128xbf16> to vector<10x1x128xbf16>
    %86 = tpu.concatenate %84, %83, %85 in 1 : vector<10x1x128xbf16>, vector<10x16x128xbf16>, vector<10x1x128xbf16> -> vector<10x18x128xbf16>
    %87 = vector.extract_strided_slice %86 {offsets = [0, 0, 0], sizes = [8, 18, 128], strides = [1, 1, 1]} : vector<10x18x128xbf16> to vector<8x18x128xbf16>
    %88 = vector.extract_strided_slice %87 {offsets = [0, 0, 0], sizes = [8, 16, 128], strides = [1, 1, 1]} : vector<8x18x128xbf16> to vector<8x16x128xbf16>
    %89 = vector.extract_strided_slice %87 {offsets = [0, 1, 0], sizes = [8, 16, 128], strides = [1, 1, 1]} : vector<8x18x128xbf16> to vector<8x16x128xbf16>
    %90 = vector.extract_strided_slice %87 {offsets = [0, 2, 0], sizes = [8, 16, 128], strides = [1, 1, 1]} : vector<8x18x128xbf16> to vector<8x16x128xbf16>
    %91 = tpu.concatenate %88, %89, %90 in 2 : vector<8x16x128xbf16>, vector<8x16x128xbf16>, vector<8x16x128xbf16> -> vector<8x16x384xbf16>
    %92 = vector.shape_cast %91 : vector<8x16x384xbf16> to vector<128x384xbf16>
    %c0_42 = arith.constant 0 : index
    %c0_43 = arith.constant 0 : index
    %c0_44 = arith.constant 0 : index
    %93 = vector.load %arg4[%c0_42, %c0_43, %c0_44] : memref<3x384x128xbf16, #tpu.memory_space<vmem>>, vector<1x384x128xbf16>
    %94 = vector.shape_cast %93 : vector<1x384x128xbf16> to vector<384x128xbf16>
    %cst_45 = arith.constant dense<0.000000e+00> : vector<128x128xf32>
    %95 = tpu.matmul %92, %94, %cst_45 {dimension_numbers = #tpu.dot_dimension_numbers<[1], [0], [0], [1], [0, 0, 1, 1], [], []>} : vector<128x384xbf16>, vector<384x128xbf16>, vector<128x128xf32> -> vector<128x128xf32>
    %96 = vector.extract_strided_slice %86 {offsets = [1, 0, 0], sizes = [8, 18, 128], strides = [1, 1, 1]} : vector<10x18x128xbf16> to vector<8x18x128xbf16>
    %97 = vector.extract_strided_slice %96 {offsets = [0, 0, 0], sizes = [8, 16, 128], strides = [1, 1, 1]} : vector<8x18x128xbf16> to vector<8x16x128xbf16>
    %98 = vector.extract_strided_slice %96 {offsets = [0, 1, 0], sizes = [8, 16, 128], strides = [1, 1, 1]} : vector<8x18x128xbf16> to vector<8x16x128xbf16>
    %99 = vector.extract_strided_slice %96 {offsets = [0, 2, 0], sizes = [8, 16, 128], strides = [1, 1, 1]} : vector<8x18x128xbf16> to vector<8x16x128xbf16>
    %100 = tpu.concatenate %97, %98, %99 in 2 : vector<8x16x128xbf16>, vector<8x16x128xbf16>, vector<8x16x128xbf16> -> vector<8x16x384xbf16>
    %101 = vector.shape_cast %100 : vector<8x16x384xbf16> to vector<128x384xbf16>
    %c1_46 = arith.constant 1 : index
    %c0_47 = arith.constant 0 : index
    %c0_48 = arith.constant 0 : index
    %102 = vector.load %arg4[%c1_46, %c0_47, %c0_48] : memref<3x384x128xbf16, #tpu.memory_space<vmem>>, vector<1x384x128xbf16>
    %103 = vector.shape_cast %102 : vector<1x384x128xbf16> to vector<384x128xbf16>
    %cst_49 = arith.constant dense<0.000000e+00> : vector<128x128xf32>
    %104 = tpu.matmul %101, %103, %cst_49 {dimension_numbers = #tpu.dot_dimension_numbers<[1], [0], [0], [1], [0, 0, 1, 1], [], []>} : vector<128x384xbf16>, vector<384x128xbf16>, vector<128x128xf32> -> vector<128x128xf32>
    %105 = arith.addf %95, %104 : vector<128x128xf32>
    %106 = vector.extract_strided_slice %86 {offsets = [2, 0, 0], sizes = [8, 18, 128], strides = [1, 1, 1]} : vector<10x18x128xbf16> to vector<8x18x128xbf16>
    %107 = vector.extract_strided_slice %106 {offsets = [0, 0, 0], sizes = [8, 16, 128], strides = [1, 1, 1]} : vector<8x18x128xbf16> to vector<8x16x128xbf16>
    %108 = vector.extract_strided_slice %106 {offsets = [0, 1, 0], sizes = [8, 16, 128], strides = [1, 1, 1]} : vector<8x18x128xbf16> to vector<8x16x128xbf16>
    %109 = vector.extract_strided_slice %106 {offsets = [0, 2, 0], sizes = [8, 16, 128], strides = [1, 1, 1]} : vector<8x18x128xbf16> to vector<8x16x128xbf16>
    %110 = tpu.concatenate %107, %108, %109 in 2 : vector<8x16x128xbf16>, vector<8x16x128xbf16>, vector<8x16x128xbf16> -> vector<8x16x384xbf16>
    %111 = vector.shape_cast %110 : vector<8x16x384xbf16> to vector<128x384xbf16>
    %c2_50 = arith.constant 2 : index
    %c0_51 = arith.constant 0 : index
    %c0_52 = arith.constant 0 : index
    %112 = vector.load %arg4[%c2_50, %c0_51, %c0_52] : memref<3x384x128xbf16, #tpu.memory_space<vmem>>, vector<1x384x128xbf16>
    %113 = vector.shape_cast %112 : vector<1x384x128xbf16> to vector<384x128xbf16>
    %cst_53 = arith.constant dense<0.000000e+00> : vector<128x128xf32>
    %114 = tpu.matmul %111, %113, %cst_53 {dimension_numbers = #tpu.dot_dimension_numbers<[1], [0], [0], [1], [0, 0, 1, 1], [], []>} : vector<128x384xbf16>, vector<384x128xbf16>, vector<128x128xf32> -> vector<128x128xf32>
    %115 = arith.addf %105, %114 : vector<128x128xf32>
    %116 = vector.shape_cast %115 : vector<128x128xf32> to vector<8x16x128xf32>
    %c0_54 = arith.constant 0 : index
    %117 = arith.index_cast %1 : i32 to index
    %c0_55 = arith.constant 0 : index
    %c0_56 = arith.constant 0 : index
    %118 = vector.load %arg2[%c0_54, %117, %c0_55, %c0_56] : memref<1x16x16x8xf32, #tpu.memory_space<vmem>>, vector<1x8x16x8xf32>
    %119 = vector.shape_cast %118 : vector<1x8x16x8xf32> to vector<8x16x8xf32>
    %120 = vector.extract_strided_slice %116 {offsets = [0, 0, 0], sizes = [8, 16, 8], strides = [1, 1, 1]} : vector<8x16x128xf32> to vector<8x16x8xf32>
    %121 = arith.addf %119, %120 : vector<8x16x8xf32>
    %c0_57 = arith.constant 0 : index
    %c0_58 = arith.constant 0 : index
    %c0_59 = arith.constant 0 : index
    %c0_60 = arith.constant 0 : index
    %122 = vector.load %arg6[%c0_57, %c0_58, %c0_59, %c0_60] : memref<1x8x16x8xf32, #tpu.memory_space<vmem>>, vector<1x8x16x8xf32>
    %123 = vector.shape_cast %122 : vector<1x8x16x8xf32> to vector<8x16x8xf32>
    %124 = vector.shape_cast %121 : vector<8x16x8xf32> to vector<1x8x16x8xf32>
    tpu.vector_store %arg6[%c0_57, %c0_58, %c0_59, %c0_60], %124 {strides = array<i32>} : memref<1x8x16x8xf32, #tpu.memory_space<vmem>>, vector<1x8x16x8xf32>,
    return
  }
  func.func @transform_0(%arg0: i32, %arg1: i32) -> (i32, i32, i32, i32) {
    %c0_i32 = arith.constant 0 : i32
    %c0_i32_0 = arith.constant 0 : i32
    %c0_i32_1 = arith.constant 0 : i32
    %c0_i32_2 = arith.constant 0 : i32
    return %arg0, %c0_i32, %c0_i32_0, %c0_i32_1 : i32, i32, i32, i32
  }
  func.func @transform_1(%arg0: i32, %arg1: i32) -> (i32, i32, i32) {
    %c0_i32 = arith.constant 0 : i32
    %c0_i32_0 = arith.constant 0 : i32
    %c0_i32_1 = arith.constant 0 : i32
    %c0_i32_2 = arith.constant 0 : i32
    return %c0_i32, %c0_i32_0, %c0_i32_1 : i32, i32, i32
  }
  func.func @transform_2(%arg0: i32, %arg1: i32) -> (i32, i32, i32) {
    %c0_i32 = arith.constant 0 : i32
    %c0_i32_0 = arith.constant 0 : i32
    %c0_i32_1 = arith.constant 0 : i32
    %c0_i32_2 = arith.constant 0 : i32
    return %c0_i32, %c0_i32_0, %c0_i32_1 : i32, i32, i32
  }
  func.func @transform_3(%arg0: i32, %arg1: i32) -> (i32, i32, i32) {
    %c0_i32 = arith.constant 0 : i32
    %c0_i32_0 = arith.constant 0 : i32
    %c0_i32_1 = arith.constant 0 : i32
    %c0_i32_2 = arith.constant 0 : i32
    return %c0_i32, %c0_i32_0, %c0_i32_1 : i32, i32, i32
  }
  func.func @transform_4(%arg0: i32, %arg1: i32) -> (i32, i32, i32, i32) {
    %c0_i32 = arith.constant 0 : i32
    %c0_i32_0 = arith.constant 0 : i32
    %c0_i32_1 = arith.constant 0 : i32
    return %arg0, %arg1, %c0_i32, %c0_i32_0 : i32, i32, i32, i32
  }
}

</mosaic_0001>

<llo_original>
// kernel: tpu_custom_call.1
$region0: #{tpu_custom_call.1}
  #allocation0 [shape = 'u32[]', space=smem, size = 0x4, offset = 0x4, fixed_abs, tag = 'smem constant byte address 0x4 - core index']
  #allocation1 [shape = 'u32[144,128]{1,0:T(1,128)}', space=vmem, size = 0x12000, scoped, tag = 'internal scratch']
  #allocation2 [shape = 'bf16[10,16,128]{2,1,0:T(8,128)(2,1)}', space=vmem, size = 0xa000, scoped, tag = 'scratch operand']
  %s0 = inlined_call_operand.vmem [shape: f32[2,16,16,8], index: 0, kind: input, shape index: {}]
  %s1 = inlined_call_operand.vmem [shape: bf16[3,384,128], index: 1, kind: input, shape index: {}]
  %s2 = inlined_call_operand.hbm [shape: bf16[3,384,128], index: 2, kind: input, shape index: {}]
  %s3 = inlined_call_operand.vmem [shape: f32[1,1,128], index: 3, kind: input, shape index: {}]
  %s4 = inlined_call_operand.vmem [shape: f32[2,16,16,8], index: 4, kind: output, shape index: {}]
  %s5 = sld [smem:[#allocation0]]
  $region53: #{tpu_custom_call.1} parent=0
    _
  %s7 = ssub.s32 1, %s5
  %s8 = scalar_select 0, %s7, %s5
  $region1: #{tpu_custom_call.1} parent=0
    #allocation3 [shape = 'u8[294912]{0}', space=vmem, size = 0x48000, scoped, tag = 'input window, operand 2, single buffered']
    #allocation4 [shape = 's32[2]{0}', space=sflag, size = 0x8, scoped, tag = 'scoped memory for tpu_custom_call.1']
    %9 = vsyncpa [#allocation4], 0
    loop: start=0, step=1, limit=6
    $region2: #{tpu_custom_call.1} parent=1 // loop_pre_header
      _
    $region3: #{tpu_custom_call.1} parent=1 // loop_header
      %s11 = sphi 0, %s15
      %p12 = scmp.ge.s32.totalorder %s11, 6
      %s18 = sphi 0, %s30
      %s19 = sphi 0, %s26
      %s20 = sphi 0, %s18
      %s21 = sphi 0, %s19
      %s22 = sphi 0, %s20
      %s23 = sphi 0, %s21
      %s33 = sphi 0, %s35
      %s36 = sphi 0, %s33
      %s37 = sphi 0, %s36
      %s53 = sphi 0, %s37
      %s57 = sphi 0, %s57
      %s59 = sphi 0, %s57
      %s60 = sphi 0, %s59
      %s74 = sphi 0, %s60
      %s78 = sphi 0, %s78
      %s80 = sphi 0, %s78
      %s81 = sphi 0, %s80
      %s95 = sphi 0, %s81
      %s99 = sphi 0, %s99
      %s101 = sphi 0, %s99
      %s102 = sphi 0, %s101
      %s116 = sphi 0, %s102
      %s124 = sphi 0, %s126
      %s127 = sphi 0, %s124
      %s128 = sphi 0, %s127
      %s144 = sphi 0, %s128
    $region4: #{tpu_custom_call.1} parent=1 // loop_header_branch
      %14 = sbr.rel (%p12) target = $region8
    $region5: #{tpu_custom_call.1} parent=1 // loop_body
      %s16 = ssub.s32 %s11, 1
      %s17 = ssub.s32 %s11, 2
      %s24 = sadd.s32 1, %s19
      %p25 = scmp.ge.s32.totalorder %s24, 2
      %s26 = scalar_select %p25, 0, %s24
      %s27 = sadd.s32 1, %s18
      %s28 = scalar_select %p25, %s27, %s18
      %p29 = scmp.ge.s32.totalorder %s28, 2
      %s30 = scalar_select %p29, 0, %s28
      %s31 = ssub.s32 %s18, %s30
      %p32 = scmp.eq.s32.totalorder %s31, 0
      %s34 = sadd.s32 %s33, 1
      %s35 = scalar_select %p32, %s33, %s34
      %p38 = pneg %p32
      %p39 = scmp.eq.s32.totalorder %s11, 3
      %p40 = por %p38, %p39
      %p41 = scmp.ne.s32.totalorder %s33, %s36
      %p42 = scmp.eq.s32.totalorder %s11, 0
      %p43 = por %p41, %p42
      %p44 = scmp.ne.s32.totalorder %s33, %s36
      %p45 = scmp.eq.s32.totalorder %s16, 3
      %p46 = por %p44, %p45
      %p47 = scmp.ne.s32.totalorder %s36, %s37
      %p48 = scmp.eq.s32.totalorder %s16, 0
      %p49 = por %p47, %p48
      %p50 = scmp.ne.s32.totalorder %s36, %s37
      %p51 = scmp.eq.s32.totalorder %s17, 3
      %p52 = por %p50, %p51
      %p54 = scmp.ne.s32.totalorder %s37, %s53
      %p55 = scmp.eq.s32.totalorder %s17, 0
      %p56 = por %p54, %p55
      %s58 = sadd.s32 %s57, 1
      %p61 = scmp.eq.s32.totalorder %s11, 3
      %p62 = scmp.ne.s32.totalorder %s57, %s59
      %p63 = scmp.eq.s32.totalorder %s11, 0
      %p64 = por %p62, %p63
      %p65 = scmp.ne.s32.totalorder %s57, %s59
      %p66 = scmp.eq.s32.totalorder %s16, 3
      %p67 = por %p65, %p66
      %p68 = scmp.ne.s32.totalorder %s59, %s60
      %p69 = scmp.eq.s32.totalorder %s16, 0
      %p70 = por %p68, %p69
      %p71 = scmp.ne.s32.totalorder %s59, %s60
      %p72 = scmp.eq.s32.totalorder %s17, 3
      %p73 = por %p71, %p72
      %p75 = scmp.ne.s32.totalorder %s60, %s74
      %p76 = scmp.eq.s32.totalorder %s17, 0
      %p77 = por %p75, %p76
      %s79 = sadd.s32 %s78, 1
      %p82 = scmp.eq.s32.totalorder %s11, 3
      %p83 = scmp.ne.s32.totalorder %s78, %s80
      %p84 = scmp.eq.s32.totalorder %s11, 0
      %p85 = por %p83, %p84
      %p86 = scmp.ne.s32.totalorder %s78, %s80
      %p87 = scmp.eq.s32.totalorder %s16, 3
      %p88 = por %p86, %p87
      %p89 = scmp.ne.s32.totalorder %s80, %s81
      %p90 = scmp.eq.s32.totalorder %s16, 0
      %p91 = por %p89, %p90
      %p92 = scmp.ne.s32.totalorder %s80, %s81
      %p93 = scmp.eq.s32.totalorder %s17, 3
      %p94 = por %p92, %p93
      %p96 = scmp.ne.s32.totalorder %s81, %s95
      %p97 = scmp.eq.s32.totalorder %s17, 0
      %p98 = por %p96, %p97
      %s100 = sadd.s32 %s99, 1
      %p103 = scmp.eq.s32.totalorder %s11, 3
      %p104 = scmp.ne.s32.totalorder %s99, %s101
      %p105 = scmp.eq.s32.totalorder %s11, 0
      %p106 = por %p104, %p105
      %p107 = scmp.ne.s32.totalorder %s99, %s101
      %p108 = scmp.eq.s32.totalorder %s16, 3
      %p109 = por %p107, %p108
      %p110 = scmp.ne.s32.totalorder %s101, %s102
      %p111 = scmp.eq.s32.totalorder %s16, 0
      %p112 = por %p110, %p111
      %p113 = scmp.ne.s32.totalorder %s101, %s102
      %p114 = scmp.eq.s32.totalorder %s17, 3
      %p115 = por %p113, %p114
      %p117 = scmp.ne.s32.totalorder %s102, %s116
      %p118 = scmp.eq.s32.totalorder %s17, 0
      %p119 = por %p117, %p118
      %s120 = ssub.s32 %s18, %s30
      %s121 = ssub.s32 %s19, %s26
      %s122 = sor.u32 %s120, %s121
      %p123 = scmp.eq.s32.totalorder %s122, 0
      %s125 = sadd.s32 %s124, 1
      %s126 = scalar_select %p123, %s124, %s125
      %p129 = pneg %p123
      %p130 = scmp.eq.s32.totalorder %s11, 3
      %p131 = por %p129, %p130
      %p132 = scmp.ne.s32.totalorder %s124, %s127
      %p133 = scmp.eq.s32.totalorder %s11, 0
      %p134 = por %p132, %p133
      %p135 = scmp.ne.s32.totalorder %s124, %s127
      %p136 = scmp.eq.s32.totalorder %s16, 3
      %p137 = por %p135, %p136
      %p138 = scmp.ne.s32.totalorder %s127, %s128
      %p139 = scmp.eq.s32.totalorder %s16, 0
      %p140 = por %p138, %p139
      %p141 = scmp.ne.s32.totalorder %s127, %s128
      %p142 = scmp.eq.s32.totalorder %s17, 3
      %p143 = por %p141, %p142
      %p145 = scmp.ne.s32.totalorder %s128, %s144
      %p146 = scmp.eq.s32.totalorder %s17, 0
      %p147 = por %p145, %p146
      %p148 = scmp.le.s32.totalorder 1, %s11
      %p149 = scmp.lt.s32.totalorder %s11, 5
      %p150 = pnand %p148, %p149
      %p151 = pneg %p150
      // Predicated region
      $region9: #{tpu_custom_call.1} parent=5 // pred_check
        _
      $region10: #{tpu_custom_call.1} parent=5 // pred_check_branch
        %153 = sbr.rel (%p150) target = $region12
      $region11: #{tpu_custom_call.1} parent=5 // pred_region
        %s154 = ssub.s32 %s11, 1
        // Predicated region
        $region13: #{tpu_custom_call.1} parent=11 // pred_check
          %p155 = pneg %p70
        $region14: #{tpu_custom_call.1} parent=11 // pred_check_branch
          %157 = sbr.rel (%p155) target = $region16
        $region15: #{tpu_custom_call.1} parent=11 // pred_region
          _
        $region16: #{tpu_custom_call.1} parent=11 // pred_fallthru
          _
        // Predicated region
        $region17: #{tpu_custom_call.1} parent=11 // pred_check
          %p158 = pneg %p91
        $region18: #{tpu_custom_call.1} parent=11 // pred_check_branch
          %160 = sbr.rel (%p158) target = $region20
        $region19: #{tpu_custom_call.1} parent=11 // pred_region
          %s162 = ssub.s32 9216, 9216
          %163 = vsyncadd [#allocation4], %s162
          %s164 = sshll.u32 [#allocation3], 4
          %s165 = int_to_ptr.vmem [resolvable:$true] %s164
          %170 = dma.hbm_to_vmem [thread:$0]  %s2, 9216, %s165, [#allocation4], 64, 64, 4
        $region20: #{tpu_custom_call.1} parent=11 // pred_fallthru
          _
        // Predicated region
        $region21: #{tpu_custom_call.1} parent=11 // pred_check
          %p171 = pneg %p112
        $region22: #{tpu_custom_call.1} parent=11 // pred_check_branch
          %173 = sbr.rel (%p171) target = $region24
        $region23: #{tpu_custom_call.1} parent=11 // pred_region
          _
        $region24: #{tpu_custom_call.1} parent=11 // pred_fallthru
          _
      $region12: #{tpu_custom_call.1} parent=5 // pred_fallthru
        _
      %p174 = scmp.lt.s32.totalorder %s11, 4
      // Predicated region
      $region25: #{tpu_custom_call.1} parent=5 // pred_check
        %p175 = pneg %p174
      $region26: #{tpu_custom_call.1} parent=5 // pred_check_branch
        %177 = sbr.rel (%p175) target = $region28
      $region27: #{tpu_custom_call.1} parent=5 // pred_region
        // Predicated region
        $region29: #{tpu_custom_call.1} parent=27 // pred_check
          %p178 = pneg %p43
        $region30: #{tpu_custom_call.1} parent=27 // pred_check_branch
          %180 = sbr.rel (%p178) target = $region32
        $region31: #{tpu_custom_call.1} parent=27 // pred_region
          %p181 = scmp.lt.s32.totalorder %s18, 1
          %s182 = scalar_select %p181, %s18, 1
          %s183 = smul.addr %s182, 32
          %s184 = smul.addr %s183, 8
          %s185 = scalar_lea.vmem %s0, %s184
        $region32: #{tpu_custom_call.1} parent=27 // pred_fallthru
          _
      $region28: #{tpu_custom_call.1} parent=5 // pred_fallthru
        _
      %p186 = scmp.le.s32.totalorder 1, %s11
      %p187 = scmp.lt.s32.totalorder %s11, 5
      %p188 = pnand %p186, %p187
      %p189 = pneg %p188
      // Predicated region
      $region33: #{tpu_custom_call.1} parent=5 // pred_check
        _
      $region34: #{tpu_custom_call.1} parent=5 // pred_check_branch
        %191 = sbr.rel (%p188) target = $region36
      $region35: #{tpu_custom_call.1} parent=5 // pred_region
        %s192 = ssub.s32 %s11, 1
        // Predicated region
        $region37: #{tpu_custom_call.1} parent=35 // pred_check
          %p193 = pneg %p91
        $region38: #{tpu_custom_call.1} parent=35 // pred_check_branch
          %195 = sbr.rel (%p193) target = $region40
        $region39: #{tpu_custom_call.1} parent=35 // pred_region
          %196 = dma.done [#allocation4], 9216
        $region40: #{tpu_custom_call.1} parent=35 // pred_fallthru
          _
        %p197 = scmp.lt.s32.totalorder %s20, 1
        %s198 = scalar_select %p197, %s20, 1
        %s199 = smul.addr %s198, 32
        %s200 = smul.addr %s199, 8
        %s201 = scalar_lea.vmem %s0, %s200
        %p202 = pneg %p49
        %p203 = pneg %p46
        %p204 = pneg %p70
        %p205 = pneg %p67
        %p206 = pneg %p91
        %p207 = pneg %p88
        %p208 = pneg %p112
        %p209 = pneg %p109
        %p210 = pneg %p140
        %p211 = pneg %p137
        %s212 = smul.u32 8, %s21
        %p213 = scmp.lt.s32.totalorder %s20, 1
        %s214 = scalar_select %p213, %s20, 1
        %p215 = scmp.lt.s32.totalorder %s212, 15
        %s216 = scalar_select %p215, %s212, 15
        %s217 = smul.addr %s216, 2
        %s218 = smul.addr %s214, 32
        %s219 = sadd.s32 %s217, %s218
        %s220 = smul.addr %s219, 8
        %s221 = scalar_lea.vmem %s4, %s220
        %p222 = scmp.lt.s32.totalorder %s20, 1
        %s223 = scalar_select %p222, %s20, 1
        %s224 = smul.addr %s223, 32
        %s225 = smul.addr %s224, 8
        %s226 = scalar_lea.vmem %s0, %s225
        %s227 = smul.u32 8, %s21
        %p228 = scmp.lt.s32.totalorder %s20, 1
        %s229 = scalar_select %p228, %s20, 1
        %p230 = scmp.lt.s32.totalorder %s227, 15
        %s231 = scalar_select %p230, %s227, 15
        %s232 = smul.addr %s231, 2
        %s233 = smul.addr %s229, 32
        %s234 = sadd.s32 %s232, %s233
        %s235 = smul.addr %s234, 8
        %s236 = scalar_lea.vmem %s4, %s235
        %s237 = smul.u32 8, %s21
        %s239 = smul.u32 %s21, 8
        %s240 = ssub.s32 %s239, 1
        %p241 = scmp.gt.s32.totalorder %s240, 0
        %s242 = scalar_select %p241, %s240, 0
        %p243 = scmp.lt.s32.totalorder %s242, 6
        %s244 = scalar_select %p243, %s242, 6
        %p245 = scmp.ge.s32.totalorder %s244, 1
        %s246 = ssub.s32 %s244, 1
        %s247 = scalar_select %p245, %s246, 1
        %s248 = sadd.s32 %s244, 10
        %p249 = scmp.le.s32.totalorder %s248, 15
        %s250 = scalar_select %p249, %s248, 14
        %s251 = smul.u32 %s247, 16
        %s252 = scalar_lea.vmem %s226, %s251
        %v253 = vld [vmem:[%s252] sm:$0xff]
        %v254 = vld [vmem:[%s252 + $0x8] sm:$0xff]
        %v255 = vpack.c.bf16 %v254, %v253
        %s256 = smul.u32 %s244, 16
        %s257 = scalar_lea.vmem %s226, %s256
        %v258 = vld [vmem:[%s257] sm:$0xff]
        %v259 = vld [vmem:[%s257 + $0x8] sm:$0xff]
        %v260 = vld [vmem:[%s257 + $0x10] sm:$0xff]
        %v261 = vld [vmem:[%s257 + $0x18] sm:$0xff]
        %v262 = vld [vmem:[%s257 + $0x20] sm:$0xff]
        %v263 = vld [vmem:[%s257 + $0x28] sm:$0xff]
        %v264 = vld [vmem:[%s257 + $0x30] sm:$0xff]
        %v265 = vld [vmem:[%s257 + $0x38] sm:$0xff]
        %v266 = vld [vmem:[%s257 + $0x40] sm:$0xff]
        %v267 = vld [vmem:[%s257 + $0x48] sm:$0xff]
        %v268 = vld [vmem:[%s257 + $0x50] sm:$0xff]
        %v269 = vld [vmem:[%s257 + $0x58] sm:$0xff]
        %v270 = vld [vmem:[%s257 + $0x60] sm:$0xff]
        %v271 = vld [vmem:[%s257 + $0x68] sm:$0xff]
        %v272 = vld [vmem:[%s257 + $0x70] sm:$0xff]
        %v273 = vld [vmem:[%s257 + $0x78] sm:$0xff]
        %v274 = vld [vmem:[%s257 + $0x80] sm:$0xff]
        %v275 = vld [vmem:[%s257 + $0x88] sm:$0xff]
        %v276 = vld [vmem:[%s257 + $0x90] sm:$0xff]
        %v277 = vld [vmem:[%s257 + $0x98] sm:$0xff]
        %v278 = vpack.c.bf16 %v259, %v258
        %v279 = vpack.c.bf16 %v261, %v260
        %v280 = vpack.c.bf16 %v263, %v262
        %v281 = vpack.c.bf16 %v265, %v264
        %v282 = vpack.c.bf16 %v267, %v266
        %v283 = vpack.c.bf16 %v269, %v268
        %v284 = vpack.c.bf16 %v271, %v270
        %v285 = vpack.c.bf16 %v273, %v272
        %v286 = vpack.c.bf16 %v275, %v274
        %v287 = vpack.c.bf16 %v277, %v276
        %s288 = smul.u32 %s250, 16
        %s289 = scalar_lea.vmem %s226, %s288
        %v290 = vld [vmem:[%s289] sm:$0xff]
        %v291 = vld [vmem:[%s289 + $0x8] sm:$0xff]
        %v292 = vpack.c.bf16 %v291, %v290
        %vm293 = vcmask 64512
        %v296 = vsel %vm293, %v255, 0
        %v298 = vsel %vm293, %v278, 0
        %v300 = vsel %vm293, %v279, 0
        %v302 = vsel %vm293, %v280, 0
        %v304 = vsel %vm293, %v281, 0
        %v306 = vsel %vm293, %v282, 0
        %v308 = vsel %vm293, %v283, 0
        %v310 = vsel %vm293, %v284, 0
        %v312 = vsel %vm293, %v285, 0
        %v314 = vsel %vm293, %v286, 0
        %v316 = vsel %vm293, %v287, 0
        %v318 = vsel %vm293, %v292, 0
        %v319 = vshrl.u32 %v296, 16
        %v321 = vshrl.u32 %v298, 16
        %v323 = vshrl.u32 %v300, 16
        %v325 = vshrl.u32 %v302, 16
        %v327 = vshrl.u32 %v304, 16
        %v329 = vshrl.u32 %v306, 16
        %v331 = vshrl.u32 %v308, 16
        %v333 = vshrl.u32 %v310, 16
        %v335 = vshrl.u32 %v312, 16
        %v337 = vshrl.u32 %v314, 16
        %v339 = vshrl.u32 %v316, 16
        %v341 = vshrl.u32 %v318, 16
        %v355 = vrot.slane %v319, 7
        %v356 = vshll.u32 %v296, 16
        %v358 = vor.u32 %v355, %v356
        %v359 = vrot.slane %v321, 7
        %v360 = vshll.u32 %v298, 16
        %v362 = vor.u32 %v359, %v360
        %v363 = vrot.slane %v323, 7
        %v364 = vshll.u32 %v300, 16
        %v366 = vor.u32 %v363, %v364
        %v367 = vrot.slane %v325, 7
        %v368 = vshll.u32 %v302, 16
        %v370 = vor.u32 %v367, %v368
        %v371 = vrot.slane %v327, 7
        %v372 = vshll.u32 %v304, 16
        %v374 = vor.u32 %v371, %v372
        %v375 = vrot.slane %v329, 7
        %v376 = vshll.u32 %v306, 16
        %v378 = vor.u32 %v375, %v376
        %v379 = vrot.slane %v331, 7
        %v380 = vshll.u32 %v308, 16
        %v382 = vor.u32 %v379, %v380
        %v383 = vrot.slane %v333, 7
        %v384 = vshll.u32 %v310, 16
        %v386 = vor.u32 %v383, %v384
        %v387 = vrot.slane %v335, 7
        %v388 = vshll.u32 %v312, 16
        %v390 = vor.u32 %v387, %v388
        %v391 = vrot.slane %v337, 7
        %v392 = vshll.u32 %v314, 16
        %v394 = vor.u32 %v391, %v392
        %v395 = vrot.slane %v339, 7
        %v396 = vshll.u32 %v316, 16
        %v398 = vor.u32 %v395, %v396
        %v399 = vrot.slane %v341, 7
        %v400 = vshll.u32 %v318, 16
        %v402 = vor.u32 %v399, %v400
        %v427 = vrot.slane %v356, 7
        %v428 = vrot.slane %v360, 7
        %v429 = vrot.slane %v364, 7
        %v430 = vrot.slane %v368, 7
        %v431 = vrot.slane %v372, 7
        %v432 = vrot.slane %v376, 7
        %v433 = vrot.slane %v380, 7
        %v434 = vrot.slane %v384, 7
        %v435 = vrot.slane %v388, 7
        %v436 = vrot.slane %v392, 7
        %v437 = vrot.slane %v396, 7
        %v438 = vrot.slane %v400, 7
        %vm451 = vcmask 1040384
        %vm452 = vsmask.f32 256
        %vm453 = vmand %vm451, %vm452
        %v454 = vsel %vm453, %v319, %v358
        %v455 = vsel %vm453, %v321, %v362
        %v456 = vsel %vm453, %v323, %v366
        %v457 = vsel %vm453, %v325, %v370
        %v458 = vsel %vm453, %v327, %v374
        %v459 = vsel %vm453, %v329, %v378
        %v460 = vsel %vm453, %v331, %v382
        %v461 = vsel %vm453, %v333, %v386
        %v462 = vsel %vm453, %v335, %v390
        %v463 = vsel %vm453, %v337, %v394
        %v464 = vsel %vm453, %v339, %v398
        %v465 = vsel %vm453, %v341, %v402
        %v466 = vsel %vm453, %v355, %v427
        %v467 = vsel %vm453, %v359, %v428
        %v468 = vsel %vm453, %v363, %v429
        %v469 = vsel %vm453, %v367, %v430
        %v470 = vsel %vm453, %v371, %v431
        %v471 = vsel %vm453, %v375, %v432
        %v472 = vsel %vm453, %v379, %v433
        %v473 = vsel %vm453, %v383, %v434
        %v474 = vsel %vm453, %v387, %v435
        %v475 = vsel %vm453, %v391, %v436
        %v476 = vsel %vm453, %v395, %v437
        %v477 = vsel %vm453, %v399, %v438
        %vm478 = vsmask.f32 7424
        %v480 = vshrl.u32 %v454, 16
        %v482 = vshll.u32 %v454, 16
        %v484 = vrot.slane %v482, 1
        %v485 = vor.u32 %v480, %v484
        %v487 = vshll.u32 %v466, 16
        %v489 = vrot.slane %v487, 1
        %v490 = vsel %vm478, %v485, %v489
        %v492 = vshrl.u32 %v455, 16
        %v494 = vshll.u32 %v455, 16
        %v496 = vrot.slane %v494, 1
        %v497 = vor.u32 %v492, %v496
        %v499 = vshll.u32 %v467, 16
        %v501 = vrot.slane %v499, 1
        %v502 = vsel %vm478, %v497, %v501
        %v504 = vshrl.u32 %v456, 16
        %v506 = vshll.u32 %v456, 16
        %v508 = vrot.slane %v506, 1
        %v509 = vor.u32 %v504, %v508
        %v511 = vshll.u32 %v468, 16
        %v513 = vrot.slane %v511, 1
        %v514 = vsel %vm478, %v509, %v513
        %v516 = vshrl.u32 %v457, 16
        %v518 = vshll.u32 %v457, 16
        %v520 = vrot.slane %v518, 1
        %v521 = vor.u32 %v516, %v520
        %v523 = vshll.u32 %v469, 16
        %v525 = vrot.slane %v523, 1
        %v526 = vsel %vm478, %v521, %v525
        %v528 = vshrl.u32 %v458, 16
        %v530 = vshll.u32 %v458, 16
        %v532 = vrot.slane %v530, 1
        %v533 = vor.u32 %v528, %v532
        %v535 = vshll.u32 %v470, 16
        %v537 = vrot.slane %v535, 1
        %v538 = vsel %vm478, %v533, %v537
        %v540 = vshrl.u32 %v459, 16
        %v542 = vshll.u32 %v459, 16
        %v544 = vrot.slane %v542, 1
        %v545 = vor.u32 %v540, %v544
        %v547 = vshll.u32 %v471, 16
        %v549 = vrot.slane %v547, 1
        %v550 = vsel %vm478, %v545, %v549
        %v552 = vshrl.u32 %v460, 16
        %v554 = vshll.u32 %v460, 16
        %v556 = vrot.slane %v554, 1
        %v557 = vor.u32 %v552, %v556
        %v559 = vshll.u32 %v472, 16
        %v561 = vrot.slane %v559, 1
        %v562 = vsel %vm478, %v557, %v561
        %v564 = vshrl.u32 %v461, 16
        %v566 = vshll.u32 %v461, 16
        %v568 = vrot.slane %v566, 1
        %v569 = vor.u32 %v564, %v568
        %v571 = vshll.u32 %v473, 16
        %v573 = vrot.slane %v571, 1
        %v574 = vsel %vm478, %v569, %v573
        %v576 = vshrl.u32 %v462, 16
        %v578 = vshll.u32 %v462, 16
        %v580 = vrot.slane %v578, 1
        %v581 = vor.u32 %v576, %v580
        %v583 = vshll.u32 %v474, 16
        %v585 = vrot.slane %v583, 1
        %v586 = vsel %vm478, %v581, %v585
        %v588 = vshrl.u32 %v463, 16
        %v590 = vshll.u32 %v463, 16
        %v592 = vrot.slane %v590, 1
        %v593 = vor.u32 %v588, %v592
        %v595 = vshll.u32 %v475, 16
        %v597 = vrot.slane %v595, 1
        %v598 = vsel %vm478, %v593, %v597
        %vm629 = vcmask 1046528
        %v630 = vrot.slane %v454, 1
        %v631 = vrot.slane %v466, 1
        %v632 = vsel %vm629, %v630, %v631
        %v633 = vrot.slane %v455, 1
        %v634 = vrot.slane %v467, 1
        %v635 = vsel %vm629, %v633, %v634
        %v636 = vrot.slane %v456, 1
        %v637 = vrot.slane %v468, 1
        %v638 = vsel %vm629, %v636, %v637
        %v639 = vrot.slane %v457, 1
        %v640 = vrot.slane %v469, 1
        %v641 = vsel %vm629, %v639, %v640
        %v642 = vrot.slane %v458, 1
        %v643 = vrot.slane %v470, 1
        %v644 = vsel %vm629, %v642, %v643
        %v645 = vrot.slane %v459, 1
        %v646 = vrot.slane %v471, 1
        %v647 = vsel %vm629, %v645, %v646
        %v648 = vrot.slane %v460, 1
        %v649 = vrot.slane %v472, 1
        %v650 = vsel %vm629, %v648, %v649
        %v651 = vrot.slane %v461, 1
        %v652 = vrot.slane %v473, 1
        %v653 = vsel %vm629, %v651, %v652
        %v654 = vrot.slane %v462, 1
        %v655 = vrot.slane %v474, 1
        %v656 = vsel %vm629, %v654, %v655
        %v657 = vrot.slane %v463, 1
        %v658 = vrot.slane %v475, 1
        %v659 = vsel %vm629, %v657, %v658
        %v670 = vld [vmem:[%s1] sm:$0xf]
        %v671 = vld [vmem:[%s1 + $0x4] sm:$0xf]
        %v672 = vld [vmem:[%s1 + $0x8] sm:$0xf]
        %v673 = vld [vmem:[%s1 + $0xc] sm:$0xf]
        %v674 = vld [vmem:[%s1 + $0x10] sm:$0xf]
        %v675 = vld [vmem:[%s1 + $0x14] sm:$0xf]
        %v676 = vld [vmem:[%s1 + $0x18] sm:$0xf]
        %v677 = vld [vmem:[%s1 + $0x1c] sm:$0xf]
        %v678 = vld [vmem:[%s1 + $0x20] sm:$0xf]
        %v679 = vld [vmem:[%s1 + $0x24] sm:$0xf]
        %v680 = vld [vmem:[%s1 + $0x28] sm:$0xf]
        %v681 = vld [vmem:[%s1 + $0x2c] sm:$0xf]
        %v682 = vld [vmem:[%s1 + $0x30] sm:$0xf]
        %v683 = vld [vmem:[%s1 + $0x34] sm:$0xf]
        %v684 = vld [vmem:[%s1 + $0x38] sm:$0xf]
        %v685 = vld [vmem:[%s1 + $0x3c] sm:$0xf]
        %v686 = vld [vmem:[%s1 + $0x40] sm:$0xf]
        %v687 = vld [vmem:[%s1 + $0x44] sm:$0xf]
        %v688 = vld [vmem:[%s1 + $0x48] sm:$0xf]
        %v689 = vld [vmem:[%s1 + $0x4c] sm:$0xf]
        %v690 = vld [vmem:[%s1 + $0x50] sm:$0xf]
        %v691 = vld [vmem:[%s1 + $0x54] sm:$0xf]
        %v692 = vld [vmem:[%s1 + $0x58] sm:$0xf]
        %v693 = vld [vmem:[%s1 + $0x5c] sm:$0xf]
        %v694 = vld [vmem:[%s1 + $0x60] sm:$0xf]
        %v695 = vld [vmem:[%s1 + $0x64] sm:$0xf]
        %v696 = vld [vmem:[%s1 + $0x68] sm:$0xf]
        %v697 = vld [vmem:[%s1 + $0x6c] sm:$0xf]
        %v698 = vld [vmem:[%s1 + $0x70] sm:$0xf]
        %v699 = vld [vmem:[%s1 + $0x74] sm:$0xf]
        %v700 = vld [vmem:[%s1 + $0x78] sm:$0xf]
        %v701 = vld [vmem:[%s1 + $0x7c] sm:$0xf]
        %v702 = vld [vmem:[%s1 + $0x80] sm:$0xf]
        %v703 = vld [vmem:[%s1 + $0x84] sm:$0xf]
        %v704 = vld [vmem:[%s1 + $0x88] sm:$0xf]
        %v705 = vld [vmem:[%s1 + $0x8c] sm:$0xf]
        %v706 = vld [vmem:[%s1 + $0x90] sm:$0xf]
        %v707 = vld [vmem:[%s1 + $0x94] sm:$0xf]
        %v708 = vld [vmem:[%s1 + $0x98] sm:$0xf]
        %v709 = vld [vmem:[%s1 + $0x9c] sm:$0xf]
        %v710 = vld [vmem:[%s1 + $0xa0] sm:$0xf]
        %v711 = vld [vmem:[%s1 + $0xa4] sm:$0xf]
        %v712 = vld [vmem:[%s1 + $0xa8] sm:$0xf]
        %v713 = vld [vmem:[%s1 + $0xac] sm:$0xf]
        %v714 = vld [vmem:[%s1 + $0xb0] sm:$0xf]
        %v715 = vld [vmem:[%s1 + $0xb4] sm:$0xf]
        %v716 = vld [vmem:[%s1 + $0xb8] sm:$0xf]
        %v717 = vld [vmem:[%s1 + $0xbc] sm:$0xf]
        %v719 = vshrl.u32 %v464, 16
        %v721 = vshll.u32 %v464, 16
        %v723 = vrot.slane %v721, 1
        %v724 = vor.u32 %v719, %v723
        %v726 = vshll.u32 %v476, 16
        %v728 = vrot.slane %v726, 1
        %v729 = vsel %vm478, %v724, %v728
        %v733 = vrot.slane %v464, 1
        %v734 = vrot.slane %v476, 1
        %v735 = vsel %vm629, %v733, %v734
        %s737 = scalar_lea.vmem %s1, 192
        %v738 = vld [vmem:[%s737] sm:$0xf]
        %v739 = vld [vmem:[%s737 + $0x4] sm:$0xf]
        %v740 = vld [vmem:[%s737 + $0x8] sm:$0xf]
        %v741 = vld [vmem:[%s737 + $0xc] sm:$0xf]
        %v742 = vld [vmem:[%s737 + $0x10] sm:$0xf]
        %v743 = vld [vmem:[%s737 + $0x14] sm:$0xf]
        %v744 = vld [vmem:[%s737 + $0x18] sm:$0xf]
        %v745 = vld [vmem:[%s737 + $0x1c] sm:$0xf]
        %v746 = vld [vmem:[%s737 + $0x20] sm:$0xf]
        %v747 = vld [vmem:[%s737 + $0x24] sm:$0xf]
        %v748 = vld [vmem:[%s737 + $0x28] sm:$0xf]
        %v749 = vld [vmem:[%s737 + $0x2c] sm:$0xf]
        %v750 = vld [vmem:[%s737 + $0x30] sm:$0xf]
        %v751 = vld [vmem:[%s737 + $0x34] sm:$0xf]
        %v752 = vld [vmem:[%s737 + $0x38] sm:$0xf]
        %v753 = vld [vmem:[%s737 + $0x3c] sm:$0xf]
        %v754 = vld [vmem:[%s737 + $0x40] sm:$0xf]
        %v755 = vld [vmem:[%s737 + $0x44] sm:$0xf]
        %v756 = vld [vmem:[%s737 + $0x48] sm:$0xf]
        %v757 = vld [vmem:[%s737 + $0x4c] sm:$0xf]
        %v758 = vld [vmem:[%s737 + $0x50] sm:$0xf]
        %v759 = vld [vmem:[%s737 + $0x54] sm:$0xf]
        %v760 = vld [vmem:[%s737 + $0x58] sm:$0xf]
        %v761 = vld [vmem:[%s737 + $0x5c] sm:$0xf]
        %v762 = vld [vmem:[%s737 + $0x60] sm:$0xf]
        %v763 = vld [vmem:[%s737 + $0x64] sm:$0xf]
        %v764 = vld [vmem:[%s737 + $0x68] sm:$0xf]
        %v765 = vld [vmem:[%s737 + $0x6c] sm:$0xf]
        %v766 = vld [vmem:[%s737 + $0x70] sm:$0xf]
        %v767 = vld [vmem:[%s737 + $0x74] sm:$0xf]
        %v768 = vld [vmem:[%s737 + $0x78] sm:$0xf]
        %v769 = vld [vmem:[%s737 + $0x7c] sm:$0xf]
        %v770 = vld [vmem:[%s737 + $0x80] sm:$0xf]
        %v771 = vld [vmem:[%s737 + $0x84] sm:$0xf]
        %v772 = vld [vmem:[%s737 + $0x88] sm:$0xf]
        %v773 = vld [vmem:[%s737 + $0x8c] sm:$0xf]
        %v774 = vld [vmem:[%s737 + $0x90] sm:$0xf]
        %v775 = vld [vmem:[%s737 + $0x94] sm:$0xf]
        %v776 = vld [vmem:[%s737 + $0x98] sm:$0xf]
        %v777 = vld [vmem:[%s737 + $0x9c] sm:$0xf]
        %v778 = vld [vmem:[%s737 + $0xa0] sm:$0xf]
        %v779 = vld [vmem:[%s737 + $0xa4] sm:$0xf]
        %v780 = vld [vmem:[%s737 + $0xa8] sm:$0xf]
        %v781 = vld [vmem:[%s737 + $0xac] sm:$0xf]
        %v782 = vld [vmem:[%s737 + $0xb0] sm:$0xf]
        %v783 = vld [vmem:[%s737 + $0xb4] sm:$0xf]
        %v784 = vld [vmem:[%s737 + $0xb8] sm:$0xf]
        %v785 = vld [vmem:[%s737 + $0xbc] sm:$0xf]
        %v834 = vunpack.c.l.b16 %v738
        %v835 = vunpack.c.l.b16 %v739
        %v836 = vunpack.c.l.b16 %v740
        %v837 = vunpack.c.l.b16 %v741
        %v838 = vunpack.c.l.b16 %v742
        %v839 = vunpack.c.l.b16 %v743
        %v840 = vunpack.c.l.b16 %v744
        %v841 = vunpack.c.l.b16 %v745
        %v842 = vunpack.c.l.b16 %v746
        %v843 = vunpack.c.l.b16 %v747
        %v844 = vunpack.c.l.b16 %v748
        %v845 = vunpack.c.l.b16 %v749
        %v846 = vunpack.c.l.b16 %v750
        %v847 = vunpack.c.l.b16 %v751
        %v848 = vunpack.c.l.b16 %v752
        %v849 = vunpack.c.l.b16 %v753
        %v850 = vunpack.c.l.b16 %v754
        %v851 = vunpack.c.l.b16 %v755
        %v852 = vunpack.c.l.b16 %v756
        %v853 = vunpack.c.l.b16 %v757
        %v854 = vunpack.c.l.b16 %v758
        %v855 = vunpack.c.l.b16 %v759
        %v856 = vunpack.c.l.b16 %v760
        %v857 = vunpack.c.l.b16 %v761
        %v858 = vunpack.c.l.b16 %v762
        %v859 = vunpack.c.l.b16 %v763
        %v860 = vunpack.c.l.b16 %v764
        %v861 = vunpack.c.l.b16 %v765
        %v862 = vunpack.c.l.b16 %v766
        %v863 = vunpack.c.l.b16 %v767
        %v864 = vunpack.c.l.b16 %v768
        %v865 = vunpack.c.l.b16 %v769
        %v866 = vunpack.c.l.b16 %v770
        %v867 = vunpack.c.l.b16 %v771
        %v868 = vunpack.c.l.b16 %v772
        %v869 = vunpack.c.l.b16 %v773
        %v870 = vunpack.c.l.b16 %v774
        %v871 = vunpack.c.l.b16 %v775
        %v872 = vunpack.c.l.b16 %v776
        %v873 = vunpack.c.l.b16 %v777
        %v874 = vunpack.c.l.b16 %v778
        %v875 = vunpack.c.l.b16 %v779
        %v876 = vunpack.c.l.b16 %v780
        %v877 = vunpack.c.l.b16 %v781
        %v878 = vunpack.c.l.b16 %v782
        %v879 = vunpack.c.l.b16 %v783
        %v880 = vunpack.c.l.b16 %v784
        %v881 = vunpack.c.l.b16 %v785
        %v882 = vpack.c.b16 %v835, %v834
        %v883 = vpack.c.b16 %v837, %v836
        %v884 = vpack.c.b16 %v839, %v838
        %v885 = vpack.c.b16 %v841, %v840
        %v886 = vpack.c.b16 %v843, %v842
        %v887 = vpack.c.b16 %v845, %v844
        %v888 = vpack.c.b16 %v847, %v846
        %v889 = vpack.c.b16 %v849, %v848
        %v890 = vpack.c.b16 %v851, %v850
        %v891 = vpack.c.b16 %v853, %v852
        %v892 = vpack.c.b16 %v855, %v854
        %v893 = vpack.c.b16 %v857, %v856
        %v894 = vpack.c.b16 %v859, %v858
        %v895 = vpack.c.b16 %v861, %v860
        %v896 = vpack.c.b16 %v863, %v862
        %v897 = vpack.c.b16 %v865, %v864
        %v898 = vpack.c.b16 %v867, %v866
        %v899 = vpack.c.b16 %v869, %v868
        %v900 = vpack.c.b16 %v871, %v870
        %v901 = vpack.c.b16 %v873, %v872
        %v902 = vpack.c.b16 %v875, %v874
        %v903 = vpack.c.b16 %v877, %v876
        %v904 = vpack.c.b16 %v879, %v878
        %v905 = vpack.c.b16 %v881, %v880
        %930 = vmatprep.subr.bf16.mxu0 0
        %931 = vmatpush1.bf16.msra.mxu0 %v889
        %932 = vmatprep.subr.bf16.mxu0 0
        %933 = vmatpush1.bf16.msra.mxu0 %v888
        %934 = vmatprep.subr.bf16.mxu0 0
        %935 = vmatpush1.bf16.msra.mxu0 %v887
        %936 = vmatprep.subr.bf16.mxu0 0
        %937 = vmatpush1.bf16.msra.mxu0 %v886
        %938 = vmatprep.subr.bf16.mxu0 0
        %939 = vmatpush1.bf16.msra.mxu0 %v885
        %940 = vmatprep.subr.bf16.mxu0 0
        %941 = vmatpush1.bf16.msra.mxu0 %v884
        %942 = vmatprep.subr.bf16.mxu0 0
        %943 = vmatpush1.bf16.msra.mxu0 %v883
        %944 = vmatprep.subr.bf16.mxu0 0
        %945 = vmatpush1.bf16.msra.mxu0 %v882
        %946 = vmatprep.subr.bf16.mxu0 0
        %947 = vmatpush2.bf16.msra.mxu0 %v897
        %948 = vmatprep.subr.bf16.mxu0 0
        %949 = vmatpush2.bf16.msra.mxu0 %v896
        %950 = vmatprep.subr.bf16.mxu0 0
        %951 = vmatpush2.bf16.msra.mxu0 %v895
        %952 = vmatprep.subr.bf16.mxu0 0
        %953 = vmatpush2.bf16.msra.mxu0 %v894
        %954 = vmatprep.subr.bf16.mxu0 0
        %955 = vmatpush2.bf16.msra.mxu0 %v893
        %956 = vmatprep.subr.bf16.mxu0 0
        %957 = vmatpush2.bf16.msra.mxu0 %v892
        %958 = vmatprep.subr.bf16.mxu0 0
        %959 = vmatpush2.bf16.msra.mxu0 %v891
        %960 = vmatprep.subr.bf16.mxu0 0
        %961 = vmatpush2.bf16.msra.mxu0 %v890
        %962 = vmatprep.mubr.bf16.mxu0 %v502
        %963 = vmatmul.mubr.bf16.gmra.mxu0 %v455
        %v964 = vpop.f32.mrf.mxu0
        %v965 = vadd.f32 0.0, %v964
        %v966 = vpop.f32.mrf.mxu0
        %v967 = vpop.f32.mrf.mxu0
        %v968 = vadd.f32 0.0, %v967
        %v969 = vpop.f32.mrf.mxu0
        %970 = vmatprep.mubr.bf16.mxu0 %v514
        %971 = vmatmul.mubr.bf16.gmra.mxu0 %v456
        %v972 = vpop.f32.mrf.mxu0
        %v973 = vadd.f32 0.0, %v972
        %v974 = vpop.f32.mrf.mxu0
        %v975 = vpop.f32.mrf.mxu0
        %v976 = vadd.f32 0.0, %v975
        %v977 = vpop.f32.mrf.mxu0
        %978 = vmatprep.mubr.bf16.mxu0 %v526
        %979 = vmatmul.mubr.bf16.gmra.mxu0 %v457
        %v980 = vpop.f32.mrf.mxu0
        %v981 = vadd.f32 0.0, %v980
        %v982 = vpop.f32.mrf.mxu0
        %v983 = vpop.f32.mrf.mxu0
        %v984 = vadd.f32 0.0, %v983
        %v985 = vpop.f32.mrf.mxu0
        %986 = vmatprep.mubr.bf16.mxu0 %v538
        %987 = vmatmul.mubr.bf16.gmra.mxu0 %v458
        %v988 = vpop.f32.mrf.mxu0
        %v989 = vadd.f32 0.0, %v988
        %v990 = vpop.f32.mrf.mxu0
        %v991 = vpop.f32.mrf.mxu0
        %v992 = vadd.f32 0.0, %v991
        %v993 = vpop.f32.mrf.mxu0
        %994 = vmatprep.mubr.bf16.mxu0 %v550
        %995 = vmatmul.mubr.bf16.gmra.mxu0 %v459
        %v996 = vpop.f32.mrf.mxu0
        %v997 = vadd.f32 0.0, %v996
        %v998 = vpop.f32.mrf.mxu0
        %v999 = vpop.f32.mrf.mxu0
        %v1000 = vadd.f32 0.0, %v999
        %v1001 = vpop.f32.mrf.mxu0
        %1002 = vmatprep.mubr.bf16.mxu0 %v562
        %1003 = vmatmul.mubr.bf16.gmra.mxu0 %v460
        %v1004 = vpop.f32.mrf.mxu0
        %v1005 = vadd.f32 0.0, %v1004
        %v1006 = vpop.f32.mrf.mxu0
        %v1007 = vpop.f32.mrf.mxu0
        %v1008 = vadd.f32 0.0, %v1007
        %v1009 = vpop.f32.mrf.mxu0
        %1010 = vmatprep.mubr.bf16.mxu0 %v574
        %1011 = vmatmul.mubr.bf16.gmra.mxu0 %v461
        %v1012 = vpop.f32.mrf.mxu0
        %v1013 = vadd.f32 0.0, %v1012
        %v1014 = vpop.f32.mrf.mxu0
        %v1015 = vpop.f32.mrf.mxu0
        %v1016 = vadd.f32 0.0, %v1015
        %v1017 = vpop.f32.mrf.mxu0
        %1018 = vmatprep.mubr.bf16.mxu0 %v586
        %1019 = vmatmul.mubr.bf16.gmra.mxu0 %v462
        %v1020 = vpop.f32.mrf.mxu0
        %v1021 = vadd.f32 0.0, %v1020
        %v1022 = vpop.f32.mrf.mxu0
        %v1023 = vpop.f32.mrf.mxu0
        %v1024 = vadd.f32 0.0, %v1023
        %v1025 = vpop.f32.mrf.mxu0
        %1026 = vmatprep.mubr.bf16.mxu0 %v598
        %1027 = vmatmul.mubr.bf16.gmra.mxu0 %v463
        %v1028 = vpop.f32.mrf.mxu0
        %v1029 = vadd.f32 0.0, %v1028
        %v1030 = vpop.f32.mrf.mxu0
        %v1031 = vpop.f32.mrf.mxu0
        %v1032 = vadd.f32 0.0, %v1031
        %v1033 = vpop.f32.mrf.mxu0
        %1034 = vmatprep.mubr.bf16.mxu0 %v729
        %1035 = vmatmul.mubr.bf16.gmra.mxu0 %v464
        %v1036 = vpop.f32.mrf.mxu0
        %v1037 = vadd.f32 0.0, %v1036
        %v1038 = vpop.f32.mrf.mxu0
        %v1039 = vpop.f32.mrf.mxu0
        %v1040 = vadd.f32 0.0, %v1039
        %v1041 = vpop.f32.mrf.mxu0
        %1042 = vdwg.mxu0
        %1043 = vmatprep.subr.bf16.mxu0 0
        %1044 = vmatpush1.bf16.msra.mxu0 %v905
        %1045 = vmatprep.subr.bf16.mxu0 0
        %1046 = vmatpush1.bf16.msra.mxu0 %v904
        %1047 = vmatprep.subr.bf16.mxu0 0
        %1048 = vmatpush1.bf16.msra.mxu0 %v903
        %1049 = vmatprep.subr.bf16.mxu0 0
        %1050 = vmatpush1.bf16.msra.mxu0 %v902
        %1051 = vmatprep.subr.bf16.mxu0 0
        %1052 = vmatpush1.bf16.msra.mxu0 %v901
        %1053 = vmatprep.subr.bf16.mxu0 0
        %1054 = vmatpush1.bf16.msra.mxu0 %v900
        %1055 = vmatprep.subr.bf16.mxu0 0
        %1056 = vmatpush1.bf16.msra.mxu0 %v899
        %1057 = vmatprep.subr.bf16.mxu0 0
        %1058 = vmatpush1.bf16.msra.mxu0 %v898
        %1059 = vmatprep.subr.bf16.mxu0 0
        %1060 = vmatpush2.bf16.msra.mxu0 0
        %1061 = vmatprep.subr.bf16.mxu0 0
        %1062 = vmatpush2.bf16.msra.mxu0 0
        %1063 = vmatprep.subr.bf16.mxu0 0
        %1064 = vmatpush2.bf16.msra.mxu0 0
        %1065 = vmatprep.subr.bf16.mxu0 0
        %1066 = vmatpush2.bf16.msra.mxu0 0
        %1067 = vmatprep.subr.bf16.mxu0 0
        %1068 = vmatpush2.bf16.msra.mxu0 0
        %1069 = vmatprep.subr.bf16.mxu0 0
        %1070 = vmatpush2.bf16.msra.mxu0 0
        %1071 = vmatprep.subr.bf16.mxu0 0
        %1072 = vmatpush2.bf16.msra.mxu0 0
        %1073 = vmatprep.subr.bf16.mxu0 0
        %1074 = vmatpush2.bf16.msra.mxu0 0
        %1075 = vmatprep.mubr.bf16.mxu0 0
        %1076 = vmatmul.mubr.bf16.gmra.mxu0 %v635
        %v1077 = vpop.f32.mrf.mxu0
        %v1078 = vadd.f32 %v965, %v1077
        %v1079 = vpop.f32.mrf.mxu0
        %v1080 = vpop.f32.mrf.mxu0
        %v1081 = vadd.f32 %v968, %v1080
        %v1082 = vpop.f32.mrf.mxu0
        %1083 = vmatprep.mubr.bf16.mxu0 0
        %1084 = vmatmul.mubr.bf16.gmra.mxu0 %v638
        %v1085 = vpop.f32.mrf.mxu0
        %v1086 = vadd.f32 %v973, %v1085
        %v1087 = vpop.f32.mrf.mxu0
        %v1088 = vpop.f32.mrf.mxu0
        %v1089 = vadd.f32 %v976, %v1088
        %v1090 = vpop.f32.mrf.mxu0
        %1091 = vmatprep.mubr.bf16.mxu0 0
        %1092 = vmatmul.mubr.bf16.gmra.mxu0 %v641
        %v1093 = vpop.f32.mrf.mxu0
        %v1094 = vadd.f32 %v981, %v1093
        %v1095 = vpop.f32.mrf.mxu0
        %v1096 = vpop.f32.mrf.mxu0
        %v1097 = vadd.f32 %v984, %v1096
        %v1098 = vpop.f32.mrf.mxu0
        %1099 = vmatprep.mubr.bf16.mxu0 0
        %1100 = vmatmul.mubr.bf16.gmra.mxu0 %v644
        %v1101 = vpop.f32.mrf.mxu0
        %v1102 = vadd.f32 %v989, %v1101
        %v1103 = vpop.f32.mrf.mxu0
        %v1104 = vpop.f32.mrf.mxu0
        %v1105 = vadd.f32 %v992, %v1104
        %v1106 = vpop.f32.mrf.mxu0
        %1107 = vmatprep.mubr.bf16.mxu0 0
        %1108 = vmatmul.mubr.bf16.gmra.mxu0 %v647
        %v1109 = vpop.f32.mrf.mxu0
        %v1110 = vadd.f32 %v997, %v1109
        %v1111 = vpop.f32.mrf.mxu0
        %v1112 = vpop.f32.mrf.mxu0
        %v1113 = vadd.f32 %v1000, %v1112
        %v1114 = vpop.f32.mrf.mxu0
        %1115 = vmatprep.mubr.bf16.mxu0 0
        %1116 = vmatmul.mubr.bf16.gmra.mxu0 %v650
        %v1117 = vpop.f32.mrf.mxu0
        %v1118 = vadd.f32 %v1005, %v1117
        %v1119 = vpop.f32.mrf.mxu0
        %v1120 = vpop.f32.mrf.mxu0
        %v1121 = vadd.f32 %v1008, %v1120
        %v1122 = vpop.f32.mrf.mxu0
        %1123 = vmatprep.mubr.bf16.mxu0 0
        %1124 = vmatmul.mubr.bf16.gmra.mxu0 %v653
        %v1125 = vpop.f32.mrf.mxu0
        %v1126 = vadd.f32 %v1013, %v1125
        %v1127 = vpop.f32.mrf.mxu0
        %v1128 = vpop.f32.mrf.mxu0
        %v1129 = vadd.f32 %v1016, %v1128
        %v1130 = vpop.f32.mrf.mxu0
        %1131 = vmatprep.mubr.bf16.mxu0 0
        %1132 = vmatmul.mubr.bf16.gmra.mxu0 %v656
        %v1133 = vpop.f32.mrf.mxu0
        %v1134 = vadd.f32 %v1021, %v1133
        %v1135 = vpop.f32.mrf.mxu0
        %v1136 = vpop.f32.mrf.mxu0
        %v1137 = vadd.f32 %v1024, %v1136
        %v1138 = vpop.f32.mrf.mxu0
        %1139 = vmatprep.mubr.bf16.mxu0 0
        %1140 = vmatmul.mubr.bf16.gmra.mxu0 %v659
        %v1141 = vpop.f32.mrf.mxu0
        %v1142 = vadd.f32 %v1029, %v1141
        %v1143 = vpop.f32.mrf.mxu0
        %v1144 = vpop.f32.mrf.mxu0
        %v1145 = vadd.f32 %v1032, %v1144
        %v1146 = vpop.f32.mrf.mxu0
        %1147 = vmatprep.mubr.bf16.mxu0 0
        %1148 = vmatmul.mubr.bf16.gmra.mxu0 %v735
        %v1149 = vpop.f32.mrf.mxu0
        %v1150 = vadd.f32 %v1037, %v1149
        %v1151 = vpop.f32.mrf.mxu0
        %v1152 = vpop.f32.mrf.mxu0
        %v1153 = vadd.f32 %v1040, %v1152
        %v1154 = vpop.f32.mrf.mxu0
        %1155 = vdwg.mxu0
        %v1204 = vunpack.c.l.b16 %v670
        %v1205 = vunpack.c.l.b16 %v671
        %v1206 = vunpack.c.l.b16 %v672
        %v1207 = vunpack.c.l.b16 %v673
        %v1208 = vunpack.c.l.b16 %v674
        %v1209 = vunpack.c.l.b16 %v675
        %v1210 = vunpack.c.l.b16 %v676
        %v1211 = vunpack.c.l.b16 %v677
        %v1212 = vunpack.c.l.b16 %v678
        %v1213 = vunpack.c.l.b16 %v679
        %v1214 = vunpack.c.l.b16 %v680
        %v1215 = vunpack.c.l.b16 %v681
        %v1216 = vunpack.c.l.b16 %v682
        %v1217 = vunpack.c.l.b16 %v683
        %v1218 = vunpack.c.l.b16 %v684
        %v1219 = vunpack.c.l.b16 %v685
        %v1220 = vunpack.c.l.b16 %v686
        %v1221 = vunpack.c.l.b16 %v687
        %v1222 = vunpack.c.l.b16 %v688
        %v1223 = vunpack.c.l.b16 %v689
        %v1224 = vunpack.c.l.b16 %v690
        %v1225 = vunpack.c.l.b16 %v691
        %v1226 = vunpack.c.l.b16 %v692
        %v1227 = vunpack.c.l.b16 %v693
        %v1228 = vunpack.c.l.b16 %v694
        %v1229 = vunpack.c.l.b16 %v695
        %v1230 = vunpack.c.l.b16 %v696
        %v1231 = vunpack.c.l.b16 %v697
        %v1232 = vunpack.c.l.b16 %v698
        %v1233 = vunpack.c.l.b16 %v699
        %v1234 = vunpack.c.l.b16 %v700
        %v1235 = vunpack.c.l.b16 %v701
        %v1236 = vunpack.c.l.b16 %v702
        %v1237 = vunpack.c.l.b16 %v703
        %v1238 = vunpack.c.l.b16 %v704
        %v1239 = vunpack.c.l.b16 %v705
        %v1240 = vunpack.c.l.b16 %v706
        %v1241 = vunpack.c.l.b16 %v707
        %v1242 = vunpack.c.l.b16 %v708
        %v1243 = vunpack.c.l.b16 %v709
        %v1244 = vunpack.c.l.b16 %v710
        %v1245 = vunpack.c.l.b16 %v711
        %v1246 = vunpack.c.l.b16 %v712
        %v1247 = vunpack.c.l.b16 %v713
        %v1248 = vunpack.c.l.b16 %v714
        %v1249 = vunpack.c.l.b16 %v715
        %v1250 = vunpack.c.l.b16 %v716
        %v1251 = vunpack.c.l.b16 %v717
        %v1252 = vpack.c.b16 %v1205, %v1204
        %v1253 = vpack.c.b16 %v1207, %v1206
        %v1254 = vpack.c.b16 %v1209, %v1208
        %v1255 = vpack.c.b16 %v1211, %v1210
        %v1256 = vpack.c.b16 %v1213, %v1212
        %v1257 = vpack.c.b16 %v1215, %v1214
        %v1258 = vpack.c.b16 %v1217, %v1216
        %v1259 = vpack.c.b16 %v1219, %v1218
        %v1260 = vpack.c.b16 %v1221, %v1220
        %v1261 = vpack.c.b16 %v1223, %v1222
        %v1262 = vpack.c.b16 %v1225, %v1224
        %v1263 = vpack.c.b16 %v1227, %v1226
        %v1264 = vpack.c.b16 %v1229, %v1228
        %v1265 = vpack.c.b16 %v1231, %v1230
        %v1266 = vpack.c.b16 %v1233, %v1232
        %v1267 = vpack.c.b16 %v1235, %v1234
        %v1268 = vpack.c.b16 %v1237, %v1236
        %v1269 = vpack.c.b16 %v1239, %v1238
        %v1270 = vpack.c.b16 %v1241, %v1240
        %v1271 = vpack.c.b16 %v1243, %v1242
        %v1272 = vpack.c.b16 %v1245, %v1244
        %v1273 = vpack.c.b16 %v1247, %v1246
        %v1274 = vpack.c.b16 %v1249, %v1248
        %v1275 = vpack.c.b16 %v1251, %v1250
        %1300 = vmatprep.subr.bf16.mxu0 0
        %1301 = vmatpush1.bf16.msra.mxu0 %v1259
        %1302 = vmatprep.subr.bf16.mxu0 0
        %1303 = vmatpush1.bf16.msra.mxu0 %v1258
        %1304 = vmatprep.subr.bf16.mxu0 0
        %1305 = vmatpush1.bf16.msra.mxu0 %v1257
        %1306 = vmatprep.subr.bf16.mxu0 0
        %1307 = vmatpush1.bf16.msra.mxu0 %v1256
        %1308 = vmatprep.subr.bf16.mxu0 0
        %1309 = vmatpush1.bf16.msra.mxu0 %v1255
        %1310 = vmatprep.subr.bf16.mxu0 0
        %1311 = vmatpush1.bf16.msra.mxu0 %v1254
        %1312 = vmatprep.subr.bf16.mxu0 0
        %1313 = vmatpush1.bf16.msra.mxu0 %v1253
        %1314 = vmatprep.subr.bf16.mxu0 0
        %1315 = vmatpush1.bf16.msra.mxu0 %v1252
        %1316 = vmatprep.subr.bf16.mxu0 0
        %1317 = vmatpush2.bf16.msra.mxu0 %v1267
        %1318 = vmatprep.subr.bf16.mxu0 0
        %1319 = vmatpush2.bf16.msra.mxu0 %v1266
        %1320 = vmatprep.subr.bf16.mxu0 0
        %1321 = vmatpush2.bf16.msra.mxu0 %v1265
        %1322 = vmatprep.subr.bf16.mxu0 0
        %1323 = vmatpush2.bf16.msra.mxu0 %v1264
        %1324 = vmatprep.subr.bf16.mxu0 0
        %1325 = vmatpush2.bf16.msra.mxu0 %v1263
        %1326 = vmatprep.subr.bf16.mxu0 0
        %1327 = vmatpush2.bf16.msra.mxu0 %v1262
        %1328 = vmatprep.subr.bf16.mxu0 0
        %1329 = vmatpush2.bf16.msra.mxu0 %v1261
        %1330 = vmatprep.subr.bf16.mxu0 0
        %1331 = vmatpush2.bf16.msra.mxu0 %v1260
        %1332 = vmatprep.mubr.bf16.mxu0 %v490
        %1333 = vmatmul.mubr.bf16.gmra.mxu0 %v454
        %v1334 = vpop.f32.mrf.mxu0
        %v1335 = vadd.f32 %v1078, %v1334
        %v1336 = vpop.f32.mrf.mxu0
        %v1337 = vpop.f32.mrf.mxu0
        %v1338 = vadd.f32 %v1081, %v1337
        %v1339 = vpop.f32.mrf.mxu0
        %1340 = vmatprep.mubr.bf16.mxu0 %v502
        %1341 = vmatmul.mubr.bf16.gmra.mxu0 %v455
        %v1342 = vpop.f32.mrf.mxu0
        %v1343 = vadd.f32 %v1086, %v1342
        %v1344 = vpop.f32.mrf.mxu0
        %v1345 = vpop.f32.mrf.mxu0
        %v1346 = vadd.f32 %v1089, %v1345
        %v1347 = vpop.f32.mrf.mxu0
        %1348 = vmatprep.mubr.bf16.mxu0 %v514
        %1349 = vmatmul.mubr.bf16.gmra.mxu0 %v456
        %v1350 = vpop.f32.mrf.mxu0
        %v1351 = vadd.f32 %v1094, %v1350
        %v1352 = vpop.f32.mrf.mxu0
        %v1353 = vpop.f32.mrf.mxu0
        %v1354 = vadd.f32 %v1097, %v1353
        %v1355 = vpop.f32.mrf.mxu0
        %1356 = vmatprep.mubr.bf16.mxu0 %v526
        %1357 = vmatmul.mubr.bf16.gmra.mxu0 %v457
        %v1358 = vpop.f32.mrf.mxu0
        %v1359 = vadd.f32 %v1102, %v1358
        %v1360 = vpop.f32.mrf.mxu0
        %v1361 = vpop.f32.mrf.mxu0
        %v1362 = vadd.f32 %v1105, %v1361
        %v1363 = vpop.f32.mrf.mxu0
        %1364 = vmatprep.mubr.bf16.mxu0 %v538
        %1365 = vmatmul.mubr.bf16.gmra.mxu0 %v458
        %v1366 = vpop.f32.mrf.mxu0
        %v1367 = vadd.f32 %v1110, %v1366
        %v1368 = vpop.f32.mrf.mxu0
        %v1369 = vpop.f32.mrf.mxu0
        %v1370 = vadd.f32 %v1113, %v1369
        %v1371 = vpop.f32.mrf.mxu0
        %1372 = vmatprep.mubr.bf16.mxu0 %v550
        %1373 = vmatmul.mubr.bf16.gmra.mxu0 %v459
        %v1374 = vpop.f32.mrf.mxu0
        %v1375 = vadd.f32 %v1118, %v1374
        %v1376 = vpop.f32.mrf.mxu0
        %v1377 = vpop.f32.mrf.mxu0
        %v1378 = vadd.f32 %v1121, %v1377
        %v1379 = vpop.f32.mrf.mxu0
        %1380 = vmatprep.mubr.bf16.mxu0 %v562
        %1381 = vmatmul.mubr.bf16.gmra.mxu0 %v460
        %v1382 = vpop.f32.mrf.mxu0
        %v1383 = vadd.f32 %v1126, %v1382
        %v1384 = vpop.f32.mrf.mxu0
        %v1385 = vpop.f32.mrf.mxu0
        %v1386 = vadd.f32 %v1129, %v1385
        %v1387 = vpop.f32.mrf.mxu0
        %1388 = vmatprep.mubr.bf16.mxu0 %v574
        %1389 = vmatmul.mubr.bf16.gmra.mxu0 %v461
        %v1390 = vpop.f32.mrf.mxu0
        %v1391 = vadd.f32 %v1134, %v1390
        %v1392 = vpop.f32.mrf.mxu0
        %v1393 = vpop.f32.mrf.mxu0
        %v1394 = vadd.f32 %v1137, %v1393
        %v1395 = vpop.f32.mrf.mxu0
        %1396 = vmatprep.mubr.bf16.mxu0 %v586
        %1397 = vmatmul.mubr.bf16.gmra.mxu0 %v462
        %v1398 = vpop.f32.mrf.mxu0
        %v1399 = vadd.f32 %v1142, %v1398
        %v1400 = vpop.f32.mrf.mxu0
        %v1401 = vpop.f32.mrf.mxu0
        %v1402 = vadd.f32 %v1145, %v1401
        %v1403 = vpop.f32.mrf.mxu0
        %1404 = vmatprep.mubr.bf16.mxu0 %v598
        %1405 = vmatmul.mubr.bf16.gmra.mxu0 %v463
        %v1406 = vpop.f32.mrf.mxu0
        %v1407 = vadd.f32 %v1150, %v1406
        %v1408 = vpop.f32.mrf.mxu0
        %v1409 = vpop.f32.mrf.mxu0
        %v1410 = vadd.f32 %v1153, %v1409
        %v1411 = vpop.f32.mrf.mxu0
        %1412 = vdwg.mxu0
        %1413 = vmatprep.subr.bf16.mxu0 0
        %1414 = vmatpush1.bf16.msra.mxu0 %v1275
        %1415 = vmatprep.subr.bf16.mxu0 0
        %1416 = vmatpush1.bf16.msra.mxu0 %v1274
        %1417 = vmatprep.subr.bf16.mxu0 0
        %1418 = vmatpush1.bf16.msra.mxu0 %v1273
        %1419 = vmatprep.subr.bf16.mxu0 0
        %1420 = vmatpush1.bf16.msra.mxu0 %v1272
        %1421 = vmatprep.subr.bf16.mxu0 0
        %1422 = vmatpush1.bf16.msra.mxu0 %v1271
        %1423 = vmatprep.subr.bf16.mxu0 0
        %1424 = vmatpush1.bf16.msra.mxu0 %v1270
        %1425 = vmatprep.subr.bf16.mxu0 0
        %1426 = vmatpush1.bf16.msra.mxu0 %v1269
        %1427 = vmatprep.subr.bf16.mxu0 0
        %1428 = vmatpush1.bf16.msra.mxu0 %v1268
        %1429 = vmatprep.subr.bf16.mxu0 0
        %1430 = vmatpush2.bf16.msra.mxu0 0
        %1431 = vmatprep.subr.bf16.mxu0 0
        %1432 = vmatpush2.bf16.msra.mxu0 0
        %1433 = vmatprep.subr.bf16.mxu0 0
        %1434 = vmatpush2.bf16.msra.mxu0 0
        %1435 = vmatprep.subr.bf16.mxu0 0
        %1436 = vmatpush2.bf16.msra.mxu0 0
        %1437 = vmatprep.subr.bf16.mxu0 0
        %1438 = vmatpush2.bf16.msra.mxu0 0
        %1439 = vmatprep.subr.bf16.mxu0 0
        %1440 = vmatpush2.bf16.msra.mxu0 0
        %1441 = vmatprep.subr.bf16.mxu0 0
        %1442 = vmatpush2.bf16.msra.mxu0 0
        %1443 = vmatprep.subr.bf16.mxu0 0
        %1444 = vmatpush2.bf16.msra.mxu0 0
        %1445 = vmatprep.mubr.bf16.mxu0 0
        %1446 = vmatmul.mubr.bf16.gmra.mxu0 %v632
        %v1447 = vpop.f32.mrf.mxu0
        %v1448 = vadd.f32 %v1335, %v1447
        %v1449 = vpop.f32.mrf.mxu0
        %v1450 = vpop.f32.mrf.mxu0
        %v1451 = vadd.f32 %v1338, %v1450
        %v1452 = vpop.f32.mrf.mxu0
        %1453 = vmatprep.mubr.bf16.mxu0 0
        %1454 = vmatmul.mubr.bf16.gmra.mxu0 %v635
        %v1455 = vpop.f32.mrf.mxu0
        %v1456 = vadd.f32 %v1343, %v1455
        %v1457 = vpop.f32.mrf.mxu0
        %v1458 = vpop.f32.mrf.mxu0
        %v1459 = vadd.f32 %v1346, %v1458
        %v1460 = vpop.f32.mrf.mxu0
        %1461 = vmatprep.mubr.bf16.mxu0 0
        %1462 = vmatmul.mubr.bf16.gmra.mxu0 %v638
        %v1463 = vpop.f32.mrf.mxu0
        %v1464 = vadd.f32 %v1351, %v1463
        %v1465 = vpop.f32.mrf.mxu0
        %v1466 = vpop.f32.mrf.mxu0
        %v1467 = vadd.f32 %v1354, %v1466
        %v1468 = vpop.f32.mrf.mxu0
        %1469 = vmatprep.mubr.bf16.mxu0 0
        %1470 = vmatmul.mubr.bf16.gmra.mxu0 %v641
        %v1471 = vpop.f32.mrf.mxu0
        %v1472 = vadd.f32 %v1359, %v1471
        %v1473 = vpop.f32.mrf.mxu0
        %v1474 = vpop.f32.mrf.mxu0
        %v1475 = vadd.f32 %v1362, %v1474
        %v1476 = vpop.f32.mrf.mxu0
        %1477 = vmatprep.mubr.bf16.mxu0 0
        %1478 = vmatmul.mubr.bf16.gmra.mxu0 %v644
        %v1479 = vpop.f32.mrf.mxu0
        %v1480 = vadd.f32 %v1367, %v1479
        %v1481 = vpop.f32.mrf.mxu0
        %v1482 = vpop.f32.mrf.mxu0
        %v1483 = vadd.f32 %v1370, %v1482
        %v1484 = vpop.f32.mrf.mxu0
        %1485 = vmatprep.mubr.bf16.mxu0 0
        %1486 = vmatmul.mubr.bf16.gmra.mxu0 %v647
        %v1487 = vpop.f32.mrf.mxu0
        %v1488 = vadd.f32 %v1375, %v1487
        %v1489 = vpop.f32.mrf.mxu0
        %v1490 = vpop.f32.mrf.mxu0
        %v1491 = vadd.f32 %v1378, %v1490
        %v1492 = vpop.f32.mrf.mxu0
        %1493 = vmatprep.mubr.bf16.mxu0 0
        %1494 = vmatmul.mubr.bf16.gmra.mxu0 %v650
        %v1495 = vpop.f32.mrf.mxu0
        %v1496 = vadd.f32 %v1383, %v1495
        %v1497 = vpop.f32.mrf.mxu0
        %v1498 = vpop.f32.mrf.mxu0
        %v1499 = vadd.f32 %v1386, %v1498
        %v1500 = vpop.f32.mrf.mxu0
        %1501 = vmatprep.mubr.bf16.mxu0 0
        %1502 = vmatmul.mubr.bf16.gmra.mxu0 %v653
        %v1503 = vpop.f32.mrf.mxu0
        %v1504 = vadd.f32 %v1391, %v1503
        %v1505 = vpop.f32.mrf.mxu0
        %v1506 = vpop.f32.mrf.mxu0
        %v1507 = vadd.f32 %v1394, %v1506
        %v1508 = vpop.f32.mrf.mxu0
        %1509 = vmatprep.mubr.bf16.mxu0 0
        %1510 = vmatmul.mubr.bf16.gmra.mxu0 %v656
        %v1511 = vpop.f32.mrf.mxu0
        %v1512 = vadd.f32 %v1399, %v1511
        %v1513 = vpop.f32.mrf.mxu0
        %v1514 = vpop.f32.mrf.mxu0
        %v1515 = vadd.f32 %v1402, %v1514
        %v1516 = vpop.f32.mrf.mxu0
        %1517 = vmatprep.mubr.bf16.mxu0 0
        %1518 = vmatmul.mubr.bf16.gmra.mxu0 %v659
        %v1519 = vpop.f32.mrf.mxu0
        %v1520 = vadd.f32 %v1407, %v1519
        %v1521 = vpop.f32.mrf.mxu0
        %v1522 = vpop.f32.mrf.mxu0
        %v1523 = vadd.f32 %v1410, %v1522
        %v1524 = vpop.f32.mrf.mxu0
        %1525 = vdwg.mxu0
        %v1527 = vshrl.u32 %v465, 16
        %v1529 = vshll.u32 %v465, 16
        %v1531 = vrot.slane %v1529, 1
        %v1532 = vor.u32 %v1527, %v1531
        %v1534 = vshll.u32 %v477, 16
        %v1536 = vrot.slane %v1534, 1
        %v1537 = vsel %vm478, %v1532, %v1536
        %v1541 = vrot.slane %v465, 1
        %v1542 = vrot.slane %v477, 1
        %v1543 = vsel %vm629, %v1541, %v1542
        %s1545 = scalar_lea.vmem %s1, 384
        %v1546 = vld [vmem:[%s1545] sm:$0xf]
        %v1547 = vld [vmem:[%s1545 + $0x4] sm:$0xf]
        %v1548 = vld [vmem:[%s1545 + $0x8] sm:$0xf]
        %v1549 = vld [vmem:[%s1545 + $0xc] sm:$0xf]
        %v1550 = vld [vmem:[%s1545 + $0x10] sm:$0xf]
        %v1551 = vld [vmem:[%s1545 + $0x14] sm:$0xf]
        %v1552 = vld [vmem:[%s1545 + $0x18] sm:$0xf]
        %v1553 = vld [vmem:[%s1545 + $0x1c] sm:$0xf]
        %v1554 = vld [vmem:[%s1545 + $0x20] sm:$0xf]
        %v1555 = vld [vmem:[%s1545 + $0x24] sm:$0xf]
        %v1556 = vld [vmem:[%s1545 + $0x28] sm:$0xf]
        %v1557 = vld [vmem:[%s1545 + $0x2c] sm:$0xf]
        %v1558 = vld [vmem:[%s1545 + $0x30] sm:$0xf]
        %v1559 = vld [vmem:[%s1545 + $0x34] sm:$0xf]
        %v1560 = vld [vmem:[%s1545 + $0x38] sm:$0xf]
        %v1561 = vld [vmem:[%s1545 + $0x3c] sm:$0xf]
        %v1562 = vld [vmem:[%s1545 + $0x40] sm:$0xf]
        %v1563 = vld [vmem:[%s1545 + $0x44] sm:$0xf]
        %v1564 = vld [vmem:[%s1545 + $0x48] sm:$0xf]
        %v1565 = vld [vmem:[%s1545 + $0x4c] sm:$0xf]
        %v1566 = vld [vmem:[%s1545 + $0x50] sm:$0xf]
        %v1567 = vld [vmem:[%s1545 + $0x54] sm:$0xf]
        %v1568 = vld [vmem:[%s1545 + $0x58] sm:$0xf]
        %v1569 = vld [vmem:[%s1545 + $0x5c] sm:$0xf]
        %v1570 = vld [vmem:[%s1545 + $0x60] sm:$0xf]
        %v1571 = vld [vmem:[%s1545 + $0x64] sm:$0xf]
        %v1572 = vld [vmem:[%s1545 + $0x68] sm:$0xf]
        %v1573 = vld [vmem:[%s1545 + $0x6c] sm:$0xf]
        %v1574 = vld [vmem:[%s1545 + $0x70] sm:$0xf]
        %v1575 = vld [vmem:[%s1545 + $0x74] sm:$0xf]
        %v1576 = vld [vmem:[%s1545 + $0x78] sm:$0xf]
        %v1577 = vld [vmem:[%s1545 + $0x7c] sm:$0xf]
        %v1578 = vld [vmem:[%s1545 + $0x80] sm:$0xf]
        %v1579 = vld [vmem:[%s1545 + $0x84] sm:$0xf]
        %v1580 = vld [vmem:[%s1545 + $0x88] sm:$0xf]
        %v1581 = vld [vmem:[%s1545 + $0x8c] sm:$0xf]
        %v1582 = vld [vmem:[%s1545 + $0x90] sm:$0xf]
        %v1583 = vld [vmem:[%s1545 + $0x94] sm:$0xf]
        %v1584 = vld [vmem:[%s1545 + $0x98] sm:$0xf]
        %v1585 = vld [vmem:[%s1545 + $0x9c] sm:$0xf]
        %v1586 = vld [vmem:[%s1545 + $0xa0] sm:$0xf]
        %v1587 = vld [vmem:[%s1545 + $0xa4] sm:$0xf]
        %v1588 = vld [vmem:[%s1545 + $0xa8] sm:$0xf]
        %v1589 = vld [vmem:[%s1545 + $0xac] sm:$0xf]
        %v1590 = vld [vmem:[%s1545 + $0xb0] sm:$0xf]
        %v1591 = vld [vmem:[%s1545 + $0xb4] sm:$0xf]
        %v1592 = vld [vmem:[%s1545 + $0xb8] sm:$0xf]
        %v1593 = vld [vmem:[%s1545 + $0xbc] sm:$0xf]
        %v1642 = vunpack.c.l.b16 %v1546
        %v1643 = vunpack.c.l.b16 %v1547
        %v1644 = vunpack.c.l.b16 %v1548
        %v1645 = vunpack.c.l.b16 %v1549
        %v1646 = vunpack.c.l.b16 %v1550
        %v1647 = vunpack.c.l.b16 %v1551
        %v1648 = vunpack.c.l.b16 %v1552
        %v1649 = vunpack.c.l.b16 %v1553
        %v1650 = vunpack.c.l.b16 %v1554
        %v1651 = vunpack.c.l.b16 %v1555
        %v1652 = vunpack.c.l.b16 %v1556
        %v1653 = vunpack.c.l.b16 %v1557
        %v1654 = vunpack.c.l.b16 %v1558
        %v1655 = vunpack.c.l.b16 %v1559
        %v1656 = vunpack.c.l.b16 %v1560
        %v1657 = vunpack.c.l.b16 %v1561
        %v1658 = vunpack.c.l.b16 %v1562
        %v1659 = vunpack.c.l.b16 %v1563
        %v1660 = vunpack.c.l.b16 %v1564
        %v1661 = vunpack.c.l.b16 %v1565
        %v1662 = vunpack.c.l.b16 %v1566
        %v1663 = vunpack.c.l.b16 %v1567
        %v1664 = vunpack.c.l.b16 %v1568
        %v1665 = vunpack.c.l.b16 %v1569
        %v1666 = vunpack.c.l.b16 %v1570
        %v1667 = vunpack.c.l.b16 %v1571
        %v1668 = vunpack.c.l.b16 %v1572
        %v1669 = vunpack.c.l.b16 %v1573
        %v1670 = vunpack.c.l.b16 %v1574
        %v1671 = vunpack.c.l.b16 %v1575
        %v1672 = vunpack.c.l.b16 %v1576
        %v1673 = vunpack.c.l.b16 %v1577
        %v1674 = vunpack.c.l.b16 %v1578
        %v1675 = vunpack.c.l.b16 %v1579
        %v1676 = vunpack.c.l.b16 %v1580
        %v1677 = vunpack.c.l.b16 %v1581
        %v1678 = vunpack.c.l.b16 %v1582
        %v1679 = vunpack.c.l.b16 %v1583
        %v1680 = vunpack.c.l.b16 %v1584
        %v1681 = vunpack.c.l.b16 %v1585
        %v1682 = vunpack.c.l.b16 %v1586
        %v1683 = vunpack.c.l.b16 %v1587
        %v1684 = vunpack.c.l.b16 %v1588
        %v1685 = vunpack.c.l.b16 %v1589
        %v1686 = vunpack.c.l.b16 %v1590
        %v1687 = vunpack.c.l.b16 %v1591
        %v1688 = vunpack.c.l.b16 %v1592
        %v1689 = vunpack.c.l.b16 %v1593
        %v1690 = vpack.c.b16 %v1643, %v1642
        %v1691 = vpack.c.b16 %v1645, %v1644
        %v1692 = vpack.c.b16 %v1647, %v1646
        %v1693 = vpack.c.b16 %v1649, %v1648
        %v1694 = vpack.c.b16 %v1651, %v1650
        %v1695 = vpack.c.b16 %v1653, %v1652
        %v1696 = vpack.c.b16 %v1655, %v1654
        %v1697 = vpack.c.b16 %v1657, %v1656
        %v1698 = vpack.c.b16 %v1659, %v1658
        %v1699 = vpack.c.b16 %v1661, %v1660
        %v1700 = vpack.c.b16 %v1663, %v1662
        %v1701 = vpack.c.b16 %v1665, %v1664
        %v1702 = vpack.c.b16 %v1667, %v1666
        %v1703 = vpack.c.b16 %v1669, %v1668
        %v1704 = vpack.c.b16 %v1671, %v1670
        %v1705 = vpack.c.b16 %v1673, %v1672
        %v1706 = vpack.c.b16 %v1675, %v1674
        %v1707 = vpack.c.b16 %v1677, %v1676
        %v1708 = vpack.c.b16 %v1679, %v1678
        %v1709 = vpack.c.b16 %v1681, %v1680
        %v1710 = vpack.c.b16 %v1683, %v1682
        %v1711 = vpack.c.b16 %v1685, %v1684
        %v1712 = vpack.c.b16 %v1687, %v1686
        %v1713 = vpack.c.b16 %v1689, %v1688
        %1738 = vmatprep.subr.bf16.mxu0 0
        %1739 = vmatpush1.bf16.msra.mxu0 %v1697
        %1740 = vmatprep.subr.bf16.mxu0 0
        %1741 = vmatpush1.bf16.msra.mxu0 %v1696
        %1742 = vmatprep.subr.bf16.mxu0 0
        %1743 = vmatpush1.bf16.msra.mxu0 %v1695
        %1744 = vmatprep.subr.bf16.mxu0 0
        %1745 = vmatpush1.bf16.msra.mxu0 %v1694
        %1746 = vmatprep.subr.bf16.mxu0 0
        %1747 = vmatpush1.bf16.msra.mxu0 %v1693
        %1748 = vmatprep.subr.bf16.mxu0 0
        %1749 = vmatpush1.bf16.msra.mxu0 %v1692
        %1750 = vmatprep.subr.bf16.mxu0 0
        %1751 = vmatpush1.bf16.msra.mxu0 %v1691
        %1752 = vmatprep.subr.bf16.mxu0 0
        %1753 = vmatpush1.bf16.msra.mxu0 %v1690
        %1754 = vmatprep.subr.bf16.mxu0 0
        %1755 = vmatpush2.bf16.msra.mxu0 %v1705
        %1756 = vmatprep.subr.bf16.mxu0 0
        %1757 = vmatpush2.bf16.msra.mxu0 %v1704
        %1758 = vmatprep.subr.bf16.mxu0 0
        %1759 = vmatpush2.bf16.msra.mxu0 %v1703
        %1760 = vmatprep.subr.bf16.mxu0 0
        %1761 = vmatpush2.bf16.msra.mxu0 %v1702
        %1762 = vmatprep.subr.bf16.mxu0 0
        %1763 = vmatpush2.bf16.msra.mxu0 %v1701
        %1764 = vmatprep.subr.bf16.mxu0 0
        %1765 = vmatpush2.bf16.msra.mxu0 %v1700
        %1766 = vmatprep.subr.bf16.mxu0 0
        %1767 = vmatpush2.bf16.msra.mxu0 %v1699
        %1768 = vmatprep.subr.bf16.mxu0 0
        %1769 = vmatpush2.bf16.msra.mxu0 %v1698
        %1770 = vmatprep.mubr.bf16.mxu0 %v514
        %1771 = vmatmul.mubr.bf16.gmra.mxu0 %v456
        %v1772 = vpop.f32.mrf.mxu0
        %v1773 = vadd.f32 0.0, %v1772
        %v1774 = vpop.f32.mrf.mxu0
        %v1775 = vpop.f32.mrf.mxu0
        %v1776 = vadd.f32 0.0, %v1775
        %v1777 = vpop.f32.mrf.mxu0
        %1778 = vmatprep.mubr.bf16.mxu0 %v526
        %1779 = vmatmul.mubr.bf16.gmra.mxu0 %v457
        %v1780 = vpop.f32.mrf.mxu0
        %v1781 = vadd.f32 0.0, %v1780
        %v1782 = vpop.f32.mrf.mxu0
        %v1783 = vpop.f32.mrf.mxu0
        %v1784 = vadd.f32 0.0, %v1783
        %v1785 = vpop.f32.mrf.mxu0
        %1786 = vmatprep.mubr.bf16.mxu0 %v538
        %1787 = vmatmul.mubr.bf16.gmra.mxu0 %v458
        %v1788 = vpop.f32.mrf.mxu0
        %v1789 = vadd.f32 0.0, %v1788
        %v1790 = vpop.f32.mrf.mxu0
        %v1791 = vpop.f32.mrf.mxu0
        %v1792 = vadd.f32 0.0, %v1791
        %v1793 = vpop.f32.mrf.mxu0
        %1794 = vmatprep.mubr.bf16.mxu0 %v550
        %1795 = vmatmul.mubr.bf16.gmra.mxu0 %v459
        %v1796 = vpop.f32.mrf.mxu0
        %v1797 = vadd.f32 0.0, %v1796
        %v1798 = vpop.f32.mrf.mxu0
        %v1799 = vpop.f32.mrf.mxu0
        %v1800 = vadd.f32 0.0, %v1799
        %v1801 = vpop.f32.mrf.mxu0
        %1802 = vmatprep.mubr.bf16.mxu0 %v562
        %1803 = vmatmul.mubr.bf16.gmra.mxu0 %v460
        %v1804 = vpop.f32.mrf.mxu0
        %v1805 = vadd.f32 0.0, %v1804
        %v1806 = vpop.f32.mrf.mxu0
        %v1807 = vpop.f32.mrf.mxu0
        %v1808 = vadd.f32 0.0, %v1807
        %v1809 = vpop.f32.mrf.mxu0
        %1810 = vmatprep.mubr.bf16.mxu0 %v574
        %1811 = vmatmul.mubr.bf16.gmra.mxu0 %v461
        %v1812 = vpop.f32.mrf.mxu0
        %v1813 = vadd.f32 0.0, %v1812
        %v1814 = vpop.f32.mrf.mxu0
        %v1815 = vpop.f32.mrf.mxu0
        %v1816 = vadd.f32 0.0, %v1815
        %v1817 = vpop.f32.mrf.mxu0
        %1818 = vmatprep.mubr.bf16.mxu0 %v586
        %1819 = vmatmul.mubr.bf16.gmra.mxu0 %v462
        %v1820 = vpop.f32.mrf.mxu0
        %v1821 = vadd.f32 0.0, %v1820
        %v1822 = vpop.f32.mrf.mxu0
        %v1823 = vpop.f32.mrf.mxu0
        %v1824 = vadd.f32 0.0, %v1823
        %v1825 = vpop.f32.mrf.mxu0
        %1826 = vmatprep.mubr.bf16.mxu0 %v598
        %1827 = vmatmul.mubr.bf16.gmra.mxu0 %v463
        %v1828 = vpop.f32.mrf.mxu0
        %v1829 = vadd.f32 0.0, %v1828
        %v1830 = vpop.f32.mrf.mxu0
        %v1831 = vpop.f32.mrf.mxu0
        %v1832 = vadd.f32 0.0, %v1831
        %v1833 = vpop.f32.mrf.mxu0
        %1834 = vmatprep.mubr.bf16.mxu0 %v729
        %1835 = vmatmul.mubr.bf16.gmra.mxu0 %v464
        %v1836 = vpop.f32.mrf.mxu0
        %v1837 = vadd.f32 0.0, %v1836
        %v1838 = vpop.f32.mrf.mxu0
        %v1839 = vpop.f32.mrf.mxu0
        %v1840 = vadd.f32 0.0, %v1839
        %v1841 = vpop.f32.mrf.mxu0
        %1842 = vmatprep.mubr.bf16.mxu0 %v1537
        %1843 = vmatmul.mubr.bf16.gmra.mxu0 %v465
        %v1844 = vpop.f32.mrf.mxu0
        %v1845 = vadd.f32 0.0, %v1844
        %v1846 = vpop.f32.mrf.mxu0
        %v1847 = vpop.f32.mrf.mxu0
        %v1848 = vadd.f32 0.0, %v1847
        %v1849 = vpop.f32.mrf.mxu0
        %1850 = vdwg.mxu0
        %1851 = vmatprep.subr.bf16.mxu0 0
        %1852 = vmatpush1.bf16.msra.mxu0 %v1713
        %1853 = vmatprep.subr.bf16.mxu0 0
        %1854 = vmatpush1.bf16.msra.mxu0 %v1712
        %1855 = vmatprep.subr.bf16.mxu0 0
        %1856 = vmatpush1.bf16.msra.mxu0 %v1711
        %1857 = vmatprep.subr.bf16.mxu0 0
        %1858 = vmatpush1.bf16.msra.mxu0 %v1710
        %1859 = vmatprep.subr.bf16.mxu0 0
        %1860 = vmatpush1.bf16.msra.mxu0 %v1709
        %1861 = vmatprep.subr.bf16.mxu0 0
        %1862 = vmatpush1.bf16.msra.mxu0 %v1708
        %1863 = vmatprep.subr.bf16.mxu0 0
        %1864 = vmatpush1.bf16.msra.mxu0 %v1707
        %1865 = vmatprep.subr.bf16.mxu0 0
        %1866 = vmatpush1.bf16.msra.mxu0 %v1706
        %1867 = vmatprep.subr.bf16.mxu0 0
        %1868 = vmatpush2.bf16.msra.mxu0 0
        %1869 = vmatprep.subr.bf16.mxu0 0
        %1870 = vmatpush2.bf16.msra.mxu0 0
        %1871 = vmatprep.subr.bf16.mxu0 0
        %1872 = vmatpush2.bf16.msra.mxu0 0
        %1873 = vmatprep.subr.bf16.mxu0 0
        %1874 = vmatpush2.bf16.msra.mxu0 0
        %1875 = vmatprep.subr.bf16.mxu0 0
        %1876 = vmatpush2.bf16.msra.mxu0 0
        %1877 = vmatprep.subr.bf16.mxu0 0
        %1878 = vmatpush2.bf16.msra.mxu0 0
        %1879 = vmatprep.subr.bf16.mxu0 0
        %1880 = vmatpush2.bf16.msra.mxu0 0
        %1881 = vmatprep.subr.bf16.mxu0 0
        %1882 = vmatpush2.bf16.msra.mxu0 0
        %1883 = vmatprep.mubr.bf16.mxu0 0
        %1884 = vmatmul.mubr.bf16.gmra.mxu0 %v638
        %v1885 = vpop.f32.mrf.mxu0
        %v1886 = vadd.f32 %v1773, %v1885
        %v1887 = vpop.f32.mrf.mxu0
        %v1888 = vpop.f32.mrf.mxu0
        %v1889 = vadd.f32 %v1776, %v1888
        %v1890 = vpop.f32.mrf.mxu0
        %1891 = vmatprep.mubr.bf16.mxu0 0
        %1892 = vmatmul.mubr.bf16.gmra.mxu0 %v641
        %v1893 = vpop.f32.mrf.mxu0
        %v1894 = vadd.f32 %v1781, %v1893
        %v1895 = vpop.f32.mrf.mxu0
        %v1896 = vpop.f32.mrf.mxu0
        %v1897 = vadd.f32 %v1784, %v1896
        %v1898 = vpop.f32.mrf.mxu0
        %1899 = vmatprep.mubr.bf16.mxu0 0
        %1900 = vmatmul.mubr.bf16.gmra.mxu0 %v644
        %v1901 = vpop.f32.mrf.mxu0
        %v1902 = vadd.f32 %v1789, %v1901
        %v1903 = vpop.f32.mrf.mxu0
        %v1904 = vpop.f32.mrf.mxu0
        %v1905 = vadd.f32 %v1792, %v1904
        %v1906 = vpop.f32.mrf.mxu0
        %1907 = vmatprep.mubr.bf16.mxu0 0
        %1908 = vmatmul.mubr.bf16.gmra.mxu0 %v647
        %v1909 = vpop.f32.mrf.mxu0
        %v1910 = vadd.f32 %v1797, %v1909
        %v1911 = vpop.f32.mrf.mxu0
        %v1912 = vpop.f32.mrf.mxu0
        %v1913 = vadd.f32 %v1800, %v1912
        %v1914 = vpop.f32.mrf.mxu0
        %1915 = vmatprep.mubr.bf16.mxu0 0
        %1916 = vmatmul.mubr.bf16.gmra.mxu0 %v650
        %v1917 = vpop.f32.mrf.mxu0
        %v1918 = vadd.f32 %v1805, %v1917
        %v1919 = vpop.f32.mrf.mxu0
        %v1920 = vpop.f32.mrf.mxu0
        %v1921 = vadd.f32 %v1808, %v1920
        %v1922 = vpop.f32.mrf.mxu0
        %1923 = vmatprep.mubr.bf16.mxu0 0
        %1924 = vmatmul.mubr.bf16.gmra.mxu0 %v653
        %v1925 = vpop.f32.mrf.mxu0
        %v1926 = vadd.f32 %v1813, %v1925
        %v1927 = vpop.f32.mrf.mxu0
        %v1928 = vpop.f32.mrf.mxu0
        %v1929 = vadd.f32 %v1816, %v1928
        %v1930 = vpop.f32.mrf.mxu0
        %1931 = vmatprep.mubr.bf16.mxu0 0
        %1932 = vmatmul.mubr.bf16.gmra.mxu0 %v656
        %v1933 = vpop.f32.mrf.mxu0
        %v1934 = vadd.f32 %v1821, %v1933
        %v1935 = vpop.f32.mrf.mxu0
        %v1936 = vpop.f32.mrf.mxu0
        %v1937 = vadd.f32 %v1824, %v1936
        %v1938 = vpop.f32.mrf.mxu0
        %1939 = vmatprep.mubr.bf16.mxu0 0
        %1940 = vmatmul.mubr.bf16.gmra.mxu0 %v659
        %v1941 = vpop.f32.mrf.mxu0
        %v1942 = vadd.f32 %v1829, %v1941
        %v1943 = vpop.f32.mrf.mxu0
        %v1944 = vpop.f32.mrf.mxu0
        %v1945 = vadd.f32 %v1832, %v1944
        %v1946 = vpop.f32.mrf.mxu0
        %1947 = vmatprep.mubr.bf16.mxu0 0
        %1948 = vmatmul.mubr.bf16.gmra.mxu0 %v735
        %v1949 = vpop.f32.mrf.mxu0
        %v1950 = vadd.f32 %v1837, %v1949
        %v1951 = vpop.f32.mrf.mxu0
        %v1952 = vpop.f32.mrf.mxu0
        %v1953 = vadd.f32 %v1840, %v1952
        %v1954 = vpop.f32.mrf.mxu0
        %1955 = vmatprep.mubr.bf16.mxu0 0
        %1956 = vmatmul.mubr.bf16.gmra.mxu0 %v1543
        %v1957 = vpop.f32.mrf.mxu0
        %v1958 = vadd.f32 %v1845, %v1957
        %v1959 = vpop.f32.mrf.mxu0
        %v1960 = vpop.f32.mrf.mxu0
        %v1961 = vadd.f32 %v1848, %v1960
        %v1962 = vpop.f32.mrf.mxu0
        %1963 = vdwg.mxu0
        %v1964 = vadd.f32 %v1448, %v1886
        %v1965 = vadd.f32 %v1451, %v1889
        %v1966 = vadd.f32 %v1456, %v1894
        %v1967 = vadd.f32 %v1459, %v1897
        %v1968 = vadd.f32 %v1464, %v1902
        %v1969 = vadd.f32 %v1467, %v1905
        %v1970 = vadd.f32 %v1472, %v1910
        %v1971 = vadd.f32 %v1475, %v1913
        %v1972 = vadd.f32 %v1480, %v1918
        %v1973 = vadd.f32 %v1483, %v1921
        %v1974 = vadd.f32 %v1488, %v1926
        %v1975 = vadd.f32 %v1491, %v1929
        %v1976 = vadd.f32 %v1496, %v1934
        %v1977 = vadd.f32 %v1499, %v1937
        %v1978 = vadd.f32 %v1504, %v1942
        %v1979 = vadd.f32 %v1507, %v1945
        %v1980 = vadd.f32 %v1512, %v1950
        %v1981 = vadd.f32 %v1515, %v1953
        %v1982 = vadd.f32 %v1520, %v1958
        %v1983 = vadd.f32 %v1523, %v1961
        %v1984 = vld [vmem:[%s3] sm:$0x1]
        %v1986 = vlaneseq
        %v1987 = vshrl.u32 %v1986, 7
        %v1988 = vsub.s32 0, %v1987
        %v1989 = vrot.slane %v1984, %v1988
        %v1991 = vadd.f32 %v1964, %v1989
        %v1992 = vadd.f32 %v1965, %v1989
        %v1993 = vadd.f32 %v1966, %v1989
        %v1994 = vadd.f32 %v1967, %v1989
        %v1995 = vadd.f32 %v1968, %v1989
        %v1996 = vadd.f32 %v1969, %v1989
        %v1997 = vadd.f32 %v1970, %v1989
        %v1998 = vadd.f32 %v1971, %v1989
        %v1999 = vadd.f32 %v1972, %v1989
        %v2000 = vadd.f32 %v1973, %v1989
        %v2001 = vadd.f32 %v1974, %v1989
        %v2002 = vadd.f32 %v1975, %v1989
        %v2003 = vadd.f32 %v1976, %v1989
        %v2004 = vadd.f32 %v1977, %v1989
        %v2005 = vadd.f32 %v1978, %v1989
        %v2006 = vadd.f32 %v1979, %v1989
        %v2007 = vadd.f32 %v1980, %v1989
        %v2008 = vadd.f32 %v1981, %v1989
        %v2009 = vadd.f32 %v1982, %v1989
        %v2010 = vadd.f32 %v1983, %v1989
        %v2011 = vmax.f32 %v1991, 0.0
        %v2012 = vmax.f32 %v1992, 0.0
        %v2013 = vmax.f32 %v1993, 0.0
        %v2014 = vmax.f32 %v1994, 0.0
        %v2015 = vmax.f32 %v1995, 0.0
        %v2016 = vmax.f32 %v1996, 0.0
        %v2017 = vmax.f32 %v1997, 0.0
        %v2018 = vmax.f32 %v1998, 0.0
        %v2019 = vmax.f32 %v1999, 0.0
        %v2020 = vmax.f32 %v2000, 0.0
        %v2021 = vmax.f32 %v2001, 0.0
        %v2022 = vmax.f32 %v2002, 0.0
        %v2023 = vmax.f32 %v2003, 0.0
        %v2024 = vmax.f32 %v2004, 0.0
        %v2025 = vmax.f32 %v2005, 0.0
        %v2026 = vmax.f32 %v2006, 0.0
        %v2027 = vmax.f32 %v2007, 0.0
        %v2028 = vmax.f32 %v2008, 0.0
        %v2029 = vmax.f32 %v2009, 0.0
        %v2030 = vmax.f32 %v2010, 0.0
        %v2031 = vpack.c.bf16 %v2012, %v2011
        %v2032 = vpack.c.bf16 %v2014, %v2013
        %v2033 = vpack.c.bf16 %v2016, %v2015
        %v2034 = vpack.c.bf16 %v2018, %v2017
        %v2035 = vpack.c.bf16 %v2020, %v2019
        %v2036 = vpack.c.bf16 %v2022, %v2021
        %v2037 = vpack.c.bf16 %v2024, %v2023
        %v2038 = vpack.c.bf16 %v2026, %v2025
        %v2039 = vpack.c.bf16 %v2028, %v2027
        %v2040 = vpack.c.bf16 %v2030, %v2029
        %v2051 = vunpack.c.l.b16 %v2031
        %v2052 = vunpack.c.h.b16 %v2031
        %v2053 = vunpack.c.l.b16 %v2032
        %v2054 = vunpack.c.h.b16 %v2032
        %v2055 = vunpack.c.l.b16 %v2033
        %v2056 = vunpack.c.h.b16 %v2033
        %v2057 = vunpack.c.l.b16 %v2034
        %v2058 = vunpack.c.h.b16 %v2034
        %v2059 = vunpack.c.l.b16 %v2035
        %v2060 = vunpack.c.h.b16 %v2035
        %v2061 = vunpack.c.l.b16 %v2036
        %v2062 = vunpack.c.h.b16 %v2036
        %v2063 = vunpack.c.l.b16 %v2037
        %v2064 = vunpack.c.h.b16 %v2037
        %v2065 = vunpack.c.l.b16 %v2038
        %v2066 = vunpack.c.h.b16 %v2038
        %v2067 = vunpack.c.l.b16 %v2039
        %v2068 = vunpack.c.h.b16 %v2039
        %v2069 = vunpack.c.l.b16 %v2040
        %v2070 = vunpack.c.h.b16 %v2040
        %v2071 = vpack.c.b16 %v2051, %v2051
        %v2072 = vpack.c.b16 %v2052, %v2052
        %v2073 = vpack.c.b16 %v2053, %v2053
        %v2074 = vpack.c.b16 %v2054, %v2054
        %v2075 = vpack.c.b16 %v2055, %v2055
        %v2076 = vpack.c.b16 %v2056, %v2056
        %v2077 = vpack.c.b16 %v2057, %v2057
        %v2078 = vpack.c.b16 %v2058, %v2058
        %v2079 = vpack.c.b16 %v2059, %v2059
        %v2080 = vpack.c.b16 %v2060, %v2060
        %v2081 = vpack.c.b16 %v2061, %v2061
        %v2082 = vpack.c.b16 %v2062, %v2062
        %v2083 = vpack.c.b16 %v2063, %v2063
        %v2084 = vpack.c.b16 %v2064, %v2064
        %v2085 = vpack.c.b16 %v2065, %v2065
        %v2086 = vpack.c.b16 %v2066, %v2066
        %v2087 = vpack.c.b16 %v2067, %v2067
        %v2088 = vpack.c.b16 %v2068, %v2068
        %v2089 = vpack.c.b16 %v2069, %v2069
        %v2090 = vpack.c.b16 %v2070, %v2070
        %2111 = vst [vmem:[#allocation2] sm:$0xf] %v2071
        %2112 = vst [vmem:[#allocation2 + $0x4] sm:$0xf] %v2072
        %2113 = vst [vmem:[#allocation2 + $0x8] sm:$0xf] %v2073
        %2114 = vst [vmem:[#allocation2 + $0xc] sm:$0xf] %v2074
        %2115 = vst [vmem:[#allocation2 + $0x10] sm:$0xf] %v2075
        %2116 = vst [vmem:[#allocation2 + $0x14] sm:$0xf] %v2076
        %2117 = vst [vmem:[#allocation2 + $0x18] sm:$0xf] %v2077
        %2118 = vst [vmem:[#allocation2 + $0x1c] sm:$0xf] %v2078
        %2119 = vst [vmem:[#allocation2 + $0x20] sm:$0xf] %v2079
        %2120 = vst [vmem:[#allocation2 + $0x24] sm:$0xf] %v2080
        %2121 = vst [vmem:[#allocation2 + $0x28] sm:$0xf] %v2081
        %2122 = vst [vmem:[#allocation2 + $0x2c] sm:$0xf] %v2082
        %2123 = vst [vmem:[#allocation2 + $0x30] sm:$0xf] %v2083
        %2124 = vst [vmem:[#allocation2 + $0x34] sm:$0xf] %v2084
        %2125 = vst [vmem:[#allocation2 + $0x38] sm:$0xf] %v2085
        %2126 = vst [vmem:[#allocation2 + $0x3c] sm:$0xf] %v2086
        %2127 = vst [vmem:[#allocation2 + $0x40] sm:$0xf] %v2087
        %2128 = vst [vmem:[#allocation2 + $0x44] sm:$0xf] %v2088
        %2129 = vst [vmem:[#allocation2 + $0x48] sm:$0xf] %v2089
        %2130 = vst [vmem:[#allocation2 + $0x4c] sm:$0xf] %v2090
        %p2131 = scmp.ge.s32.totalorder %s239, 1
        %s2132 = scalar_select %p2131, %s240, 1
        %s2133 = ssub.s32 %s2132, %s244
        %s2134 = sadd.s32 %s239, 8
        %p2135 = scmp.le.s32.totalorder %s2134, 15
        %s2136 = scalar_select %p2135, %s2134, 14
        %s2137 = ssub.s32 %s2136, %s244
        %s2138 = ssub.s32 %s239, %s244
        %s2139 = smul.u32 %s2133, 2
        %s2140 = smul.addr %s2139, 4
        %s2141 = scalar_lea.vmem [#allocation2], %s2140
        %v2142 = vld [vmem:[%s2141] sm:$0xf]
        %v2143 = vld [vmem:[%s2141 + $0x4] sm:$0xf]
        %s2144 = smul.u32 %s2138, 2
        %s2145 = smul.addr %s2144, 4
        %s2146 = scalar_lea.vmem [#allocation2], %s2145
        %v2147 = vld [vmem:[%s2146] sm:$0xf]
        %v2148 = vld [vmem:[%s2146 + $0x4] sm:$0xf]
        %v2149 = vld [vmem:[%s2146 + $0x8] sm:$0xf]
        %v2150 = vld [vmem:[%s2146 + $0xc] sm:$0xf]
        %v2151 = vld [vmem:[%s2146 + $0x10] sm:$0xf]
        %v2152 = vld [vmem:[%s2146 + $0x14] sm:$0xf]
        %v2153 = vld [vmem:[%s2146 + $0x18] sm:$0xf]
        %v2154 = vld [vmem:[%s2146 + $0x1c] sm:$0xf]
        %v2155 = vld [vmem:[%s2146 + $0x20] sm:$0xf]
        %v2156 = vld [vmem:[%s2146 + $0x24] sm:$0xf]
        %v2157 = vld [vmem:[%s2146 + $0x28] sm:$0xf]
        %v2158 = vld [vmem:[%s2146 + $0x2c] sm:$0xf]
        %v2159 = vld [vmem:[%s2146 + $0x30] sm:$0xf]
        %v2160 = vld [vmem:[%s2146 + $0x34] sm:$0xf]
        %v2161 = vld [vmem:[%s2146 + $0x38] sm:$0xf]
        %v2162 = vld [vmem:[%s2146 + $0x3c] sm:$0xf]
        %s2163 = smul.u32 %s2137, 2
        %s2164 = smul.addr %s2163, 4
        %s2165 = scalar_lea.vmem [#allocation2], %s2164
        %v2166 = vld [vmem:[%s2165] sm:$0xf]
        %v2167 = vld [vmem:[%s2165 + $0x4] sm:$0xf]
        %v2178 = vunpack.c.l.b16 %v2142
        %v2179 = vunpack.c.l.b16 %v2147
        %v2180 = vunpack.c.l.b16 %v2149
        %v2181 = vunpack.c.l.b16 %v2151
        %v2182 = vunpack.c.l.b16 %v2153
        %v2183 = vunpack.c.l.b16 %v2155
        %v2184 = vunpack.c.l.b16 %v2157
        %v2185 = vunpack.c.l.b16 %v2159
        %v2186 = vunpack.c.l.b16 %v2161
        %v2187 = vunpack.c.l.b16 %v2166
        %v2188 = vpack.c.b16 %v2178, %v2178
        %v2189 = vpack.c.b16 %v2179, %v2179
        %v2190 = vpack.c.b16 %v2180, %v2180
        %v2191 = vpack.c.b16 %v2181, %v2181
        %v2192 = vpack.c.b16 %v2182, %v2182
        %v2193 = vpack.c.b16 %v2183, %v2183
        %v2194 = vpack.c.b16 %v2184, %v2184
        %v2195 = vpack.c.b16 %v2185, %v2185
        %v2196 = vpack.c.b16 %v2186, %v2186
        %v2197 = vpack.c.b16 %v2187, %v2187
        %v2199 = vshrl.u32 %v2188, 16
        %v2202 = vshrl.u32 %v2189, 16
        %v2205 = vshrl.u32 %v2190, 16
        %v2208 = vshrl.u32 %v2191, 16
        %v2211 = vshrl.u32 %v2192, 16
        %v2214 = vshrl.u32 %v2193, 16
        %v2217 = vshrl.u32 %v2194, 16
        %v2220 = vshrl.u32 %v2195, 16
        %v2223 = vshrl.u32 %v2196, 16
        %v2226 = vshrl.u32 %v2197, 16
        %v2248 = vunpack.c.l.b16 %v2143
        %v2249 = vunpack.c.l.b16 %v2148
        %v2250 = vunpack.c.l.b16 %v2150
        %v2251 = vunpack.c.l.b16 %v2152
        %v2252 = vunpack.c.l.b16 %v2154
        %v2253 = vunpack.c.l.b16 %v2156
        %v2254 = vunpack.c.l.b16 %v2158
        %v2255 = vunpack.c.l.b16 %v2160
        %v2256 = vunpack.c.l.b16 %v2162
        %v2257 = vunpack.c.l.b16 %v2167
        %v2258 = vpack.c.b16 %v2248, %v2178
        %v2259 = vpack.c.b16 %v2249, %v2179
        %v2260 = vpack.c.b16 %v2250, %v2180
        %v2261 = vpack.c.b16 %v2251, %v2181
        %v2262 = vpack.c.b16 %v2252, %v2182
        %v2263 = vpack.c.b16 %v2253, %v2183
        %v2264 = vpack.c.b16 %v2254, %v2184
        %v2265 = vpack.c.b16 %v2255, %v2185
        %v2266 = vpack.c.b16 %v2256, %v2186
        %v2267 = vpack.c.b16 %v2257, %v2187
        %v2269 = vshrl.u32 %v2258, 16
        %v2271 = vrot.slane %v2269, 7
        %v2272 = vshll.u32 %v2258, 16
        %v2274 = vor.u32 %v2271, %v2272
        %v2276 = vshrl.u32 %v2259, 16
        %v2278 = vrot.slane %v2276, 7
        %v2279 = vshll.u32 %v2259, 16
        %v2281 = vor.u32 %v2278, %v2279
        %v2283 = vshrl.u32 %v2260, 16
        %v2285 = vrot.slane %v2283, 7
        %v2286 = vshll.u32 %v2260, 16
        %v2288 = vor.u32 %v2285, %v2286
        %v2290 = vshrl.u32 %v2261, 16
        %v2292 = vrot.slane %v2290, 7
        %v2293 = vshll.u32 %v2261, 16
        %v2295 = vor.u32 %v2292, %v2293
        %v2297 = vshrl.u32 %v2262, 16
        %v2299 = vrot.slane %v2297, 7
        %v2300 = vshll.u32 %v2262, 16
        %v2302 = vor.u32 %v2299, %v2300
        %v2304 = vshrl.u32 %v2263, 16
        %v2306 = vrot.slane %v2304, 7
        %v2307 = vshll.u32 %v2263, 16
        %v2309 = vor.u32 %v2306, %v2307
        %v2311 = vshrl.u32 %v2264, 16
        %v2313 = vrot.slane %v2311, 7
        %v2314 = vshll.u32 %v2264, 16
        %v2316 = vor.u32 %v2313, %v2314
        %v2318 = vshrl.u32 %v2265, 16
        %v2320 = vrot.slane %v2318, 7
        %v2321 = vshll.u32 %v2265, 16
        %v2323 = vor.u32 %v2320, %v2321
        %v2325 = vshrl.u32 %v2266, 16
        %v2327 = vrot.slane %v2325, 7
        %v2328 = vshll.u32 %v2266, 16
        %v2330 = vor.u32 %v2327, %v2328
        %v2332 = vshrl.u32 %v2267, 16
        %v2334 = vrot.slane %v2332, 7
        %v2335 = vshll.u32 %v2267, 16
        %v2337 = vor.u32 %v2334, %v2335
        %v2358 = vpack.c.b16 %v2248, %v2248
        %v2359 = vpack.c.b16 %v2249, %v2249
        %v2360 = vpack.c.b16 %v2250, %v2250
        %v2361 = vpack.c.b16 %v2251, %v2251
        %v2362 = vpack.c.b16 %v2252, %v2252
        %v2363 = vpack.c.b16 %v2253, %v2253
        %v2364 = vpack.c.b16 %v2254, %v2254
        %v2365 = vpack.c.b16 %v2255, %v2255
        %v2366 = vpack.c.b16 %v2256, %v2256
        %v2367 = vpack.c.b16 %v2257, %v2257
        %v2369 = vshll.u32 %v2358, 16
        %v2371 = vrot.slane %v2369, 3
        %v2373 = vshll.u32 %v2359, 16
        %v2375 = vrot.slane %v2373, 3
        %v2377 = vshll.u32 %v2360, 16
        %v2379 = vrot.slane %v2377, 3
        %v2381 = vshll.u32 %v2361, 16
        %v2383 = vrot.slane %v2381, 3
        %v2385 = vshll.u32 %v2362, 16
        %v2387 = vrot.slane %v2385, 3
        %v2389 = vshll.u32 %v2363, 16
        %v2391 = vrot.slane %v2389, 3
        %v2393 = vshll.u32 %v2364, 16
        %v2395 = vrot.slane %v2393, 3
        %v2397 = vshll.u32 %v2365, 16
        %v2399 = vrot.slane %v2397, 3
        %v2401 = vshll.u32 %v2366, 16
        %v2403 = vrot.slane %v2401, 3
        %v2405 = vshll.u32 %v2367, 16
        %v2407 = vrot.slane %v2405, 3
        %v2418 = vsel %vm453, %v2199, %v2274
        %v2419 = vsel %vm453, %v2202, %v2281
        %v2420 = vsel %vm453, %v2205, %v2288
        %v2421 = vsel %vm453, %v2208, %v2295
        %v2422 = vsel %vm453, %v2211, %v2302
        %v2423 = vsel %vm453, %v2214, %v2309
        %v2424 = vsel %vm453, %v2217, %v2316
        %v2425 = vsel %vm453, %v2220, %v2323
        %v2426 = vsel %vm453, %v2223, %v2330
        %v2427 = vsel %vm453, %v2226, %v2337
        %v2428 = vsel %vm453, %v2271, %v2371
        %v2429 = vsel %vm453, %v2278, %v2375
        %v2430 = vsel %vm453, %v2285, %v2379
        %v2431 = vsel %vm453, %v2292, %v2383
        %v2432 = vsel %vm453, %v2299, %v2387
        %v2433 = vsel %vm453, %v2306, %v2391
        %v2434 = vsel %vm453, %v2313, %v2395
        %v2435 = vsel %vm453, %v2320, %v2399
        %v2436 = vsel %vm453, %v2327, %v2403
        %v2437 = vsel %vm453, %v2334, %v2407
        %v2439 = vshrl.u32 %v2418, 16
        %v2441 = vshll.u32 %v2418, 16
        %v2443 = vrot.slane %v2441, 1
        %v2444 = vor.u32 %v2439, %v2443
        %v2446 = vshll.u32 %v2428, 16
        %v2448 = vrot.slane %v2446, 1
        %v2449 = vsel %vm478, %v2444, %v2448
        %v2451 = vshrl.u32 %v2419, 16
        %v2453 = vshll.u32 %v2419, 16
        %v2455 = vrot.slane %v2453, 1
        %v2456 = vor.u32 %v2451, %v2455
        %v2458 = vshll.u32 %v2429, 16
        %v2460 = vrot.slane %v2458, 1
        %v2461 = vsel %vm478, %v2456, %v2460
        %v2463 = vshrl.u32 %v2420, 16
        %v2465 = vshll.u32 %v2420, 16
        %v2467 = vrot.slane %v2465, 1
        %v2468 = vor.u32 %v2463, %v2467
        %v2470 = vshll.u32 %v2430, 16
        %v2472 = vrot.slane %v2470, 1
        %v2473 = vsel %vm478, %v2468, %v2472
        %v2475 = vshrl.u32 %v2421, 16
        %v2477 = vshll.u32 %v2421, 16
        %v2479 = vrot.slane %v2477, 1
        %v2480 = vor.u32 %v2475, %v2479
        %v2482 = vshll.u32 %v2431, 16
        %v2484 = vrot.slane %v2482, 1
        %v2485 = vsel %vm478, %v2480, %v2484
        %v2487 = vshrl.u32 %v2422, 16
        %v2489 = vshll.u32 %v2422, 16
        %v2491 = vrot.slane %v2489, 1
        %v2492 = vor.u32 %v2487, %v2491
        %v2494 = vshll.u32 %v2432, 16
        %v2496 = vrot.slane %v2494, 1
        %v2497 = vsel %vm478, %v2492, %v2496
        %v2499 = vshrl.u32 %v2423, 16
        %v2501 = vshll.u32 %v2423, 16
        %v2503 = vrot.slane %v2501, 1
        %v2504 = vor.u32 %v2499, %v2503
        %v2506 = vshll.u32 %v2433, 16
        %v2508 = vrot.slane %v2506, 1
        %v2509 = vsel %vm478, %v2504, %v2508
        %v2511 = vshrl.u32 %v2424, 16
        %v2513 = vshll.u32 %v2424, 16
        %v2515 = vrot.slane %v2513, 1
        %v2516 = vor.u32 %v2511, %v2515
        %v2518 = vshll.u32 %v2434, 16
        %v2520 = vrot.slane %v2518, 1
        %v2521 = vsel %vm478, %v2516, %v2520
        %v2523 = vshrl.u32 %v2425, 16
        %v2525 = vshll.u32 %v2425, 16
        %v2527 = vrot.slane %v2525, 1
        %v2528 = vor.u32 %v2523, %v2527
        %v2530 = vshll.u32 %v2435, 16
        %v2532 = vrot.slane %v2530, 1
        %v2533 = vsel %vm478, %v2528, %v2532
        %v2558 = vrot.slane %v2418, 1
        %v2559 = vrot.slane %v2428, 1
        %v2560 = vsel %vm629, %v2558, %v2559
        %v2561 = vrot.slane %v2419, 1
        %v2562 = vrot.slane %v2429, 1
        %v2563 = vsel %vm629, %v2561, %v2562
        %v2564 = vrot.slane %v2420, 1
        %v2565 = vrot.slane %v2430, 1
        %v2566 = vsel %vm629, %v2564, %v2565
        %v2567 = vrot.slane %v2421, 1
        %v2568 = vrot.slane %v2431, 1
        %v2569 = vsel %vm629, %v2567, %v2568
        %v2570 = vrot.slane %v2422, 1
        %v2571 = vrot.slane %v2432, 1
        %v2572 = vsel %vm629, %v2570, %v2571
        %v2573 = vrot.slane %v2423, 1
        %v2574 = vrot.slane %v2433, 1
        %v2575 = vsel %vm629, %v2573, %v2574
        %v2576 = vrot.slane %v2424, 1
        %v2577 = vrot.slane %v2434, 1
        %v2578 = vsel %vm629, %v2576, %v2577
        %v2579 = vrot.slane %v2425, 1
        %v2580 = vrot.slane %v2435, 1
        %v2581 = vsel %vm629, %v2579, %v2580
        %v2590 = vld [vmem:[#allocation3] sm:$0xf]
        %v2591 = vld [vmem:[#allocation3 + $0x4] sm:$0xf]
        %v2592 = vld [vmem:[#allocation3 + $0x8] sm:$0xf]
        %v2593 = vld [vmem:[#allocation3 + $0xc] sm:$0xf]
        %v2594 = vld [vmem:[#allocation3 + $0x10] sm:$0xf]
        %v2595 = vld [vmem:[#allocation3 + $0x14] sm:$0xf]
        %v2596 = vld [vmem:[#allocation3 + $0x18] sm:$0xf]
        %v2597 = vld [vmem:[#allocation3 + $0x1c] sm:$0xf]
        %v2598 = vld [vmem:[#allocation3 + $0x20] sm:$0xf]
        %v2599 = vld [vmem:[#allocation3 + $0x24] sm:$0xf]
        %v2600 = vld [vmem:[#allocation3 + $0x28] sm:$0xf]
        %v2601 = vld [vmem:[#allocation3 + $0x2c] sm:$0xf]
        %v2602 = vld [vmem:[#allocation3 + $0x30] sm:$0xf]
        %v2603 = vld [vmem:[#allocation3 + $0x34] sm:$0xf]
        %v2604 = vld [vmem:[#allocation3 + $0x38] sm:$0xf]
        %v2605 = vld [vmem:[#allocation3 + $0x3c] sm:$0xf]
        %v2606 = vld [vmem:[#allocation3 + $0x40] sm:$0xf]
        %v2607 = vld [vmem:[#allocation3 + $0x44] sm:$0xf]
        %v2608 = vld [vmem:[#allocation3 + $0x48] sm:$0xf]
        %v2609 = vld [vmem:[#allocation3 + $0x4c] sm:$0xf]
        %v2610 = vld [vmem:[#allocation3 + $0x50] sm:$0xf]
        %v2611 = vld [vmem:[#allocation3 + $0x54] sm:$0xf]
        %v2612 = vld [vmem:[#allocation3 + $0x58] sm:$0xf]
        %v2613 = vld [vmem:[#allocation3 + $0x5c] sm:$0xf]
        %v2614 = vld [vmem:[#allocation3 + $0x60] sm:$0xf]
        %v2615 = vld [vmem:[#allocation3 + $0x64] sm:$0xf]
        %v2616 = vld [vmem:[#allocation3 + $0x68] sm:$0xf]
        %v2617 = vld [vmem:[#allocation3 + $0x6c] sm:$0xf]
        %v2618 = vld [vmem:[#allocation3 + $0x70] sm:$0xf]
        %v2619 = vld [vmem:[#allocation3 + $0x74] sm:$0xf]
        %v2620 = vld [vmem:[#allocation3 + $0x78] sm:$0xf]
        %v2621 = vld [vmem:[#allocation3 + $0x7c] sm:$0xf]
        %v2622 = vld [vmem:[#allocation3 + $0x80] sm:$0xf]
        %v2623 = vld [vmem:[#allocation3 + $0x84] sm:$0xf]
        %v2624 = vld [vmem:[#allocation3 + $0x88] sm:$0xf]
        %v2625 = vld [vmem:[#allocation3 + $0x8c] sm:$0xf]
        %v2626 = vld [vmem:[#allocation3 + $0x90] sm:$0xf]
        %v2627 = vld [vmem:[#allocation3 + $0x94] sm:$0xf]
        %v2628 = vld [vmem:[#allocation3 + $0x98] sm:$0xf]
        %v2629 = vld [vmem:[#allocation3 + $0x9c] sm:$0xf]
        %v2630 = vld [vmem:[#allocation3 + $0xa0] sm:$0xf]
        %v2631 = vld [vmem:[#allocation3 + $0xa4] sm:$0xf]
        %v2632 = vld [vmem:[#allocation3 + $0xa8] sm:$0xf]
        %v2633 = vld [vmem:[#allocation3 + $0xac] sm:$0xf]
        %v2634 = vld [vmem:[#allocation3 + $0xb0] sm:$0xf]
        %v2635 = vld [vmem:[#allocation3 + $0xb4] sm:$0xf]
        %v2636 = vld [vmem:[#allocation3 + $0xb8] sm:$0xf]
        %v2637 = vld [vmem:[#allocation3 + $0xbc] sm:$0xf]
        %v2639 = vshrl.u32 %v2426, 16
        %v2641 = vshll.u32 %v2426, 16
        %v2643 = vrot.slane %v2641, 1
        %v2644 = vor.u32 %v2639, %v2643
        %v2646 = vshll.u32 %v2436, 16
        %v2648 = vrot.slane %v2646, 1
        %v2649 = vsel %vm478, %v2644, %v2648
        %v2653 = vrot.slane %v2426, 1
        %v2654 = vrot.slane %v2436, 1
        %v2655 = vsel %vm629, %v2653, %v2654
        %s2657 = scalar_lea.vmem [#allocation3], 192
        %v2658 = vld [vmem:[%s2657] sm:$0xf]
        %v2659 = vld [vmem:[%s2657 + $0x4] sm:$0xf]
        %v2660 = vld [vmem:[%s2657 + $0x8] sm:$0xf]
        %v2661 = vld [vmem:[%s2657 + $0xc] sm:$0xf]
        %v2662 = vld [vmem:[%s2657 + $0x10] sm:$0xf]
        %v2663 = vld [vmem:[%s2657 + $0x14] sm:$0xf]
        %v2664 = vld [vmem:[%s2657 + $0x18] sm:$0xf]
        %v2665 = vld [vmem:[%s2657 + $0x1c] sm:$0xf]
        %v2666 = vld [vmem:[%s2657 + $0x20] sm:$0xf]
        %v2667 = vld [vmem:[%s2657 + $0x24] sm:$0xf]
        %v2668 = vld [vmem:[%s2657 + $0x28] sm:$0xf]
        %v2669 = vld [vmem:[%s2657 + $0x2c] sm:$0xf]
        %v2670 = vld [vmem:[%s2657 + $0x30] sm:$0xf]
        %v2671 = vld [vmem:[%s2657 + $0x34] sm:$0xf]
        %v2672 = vld [vmem:[%s2657 + $0x38] sm:$0xf]
        %v2673 = vld [vmem:[%s2657 + $0x3c] sm:$0xf]
        %v2674 = vld [vmem:[%s2657 + $0x40] sm:$0xf]
        %v2675 = vld [vmem:[%s2657 + $0x44] sm:$0xf]
        %v2676 = vld [vmem:[%s2657 + $0x48] sm:$0xf]
        %v2677 = vld [vmem:[%s2657 + $0x4c] sm:$0xf]
        %v2678 = vld [vmem:[%s2657 + $0x50] sm:$0xf]
        %v2679 = vld [vmem:[%s2657 + $0x54] sm:$0xf]
        %v2680 = vld [vmem:[%s2657 + $0x58] sm:$0xf]
        %v2681 = vld [vmem:[%s2657 + $0x5c] sm:$0xf]
        %v2682 = vld [vmem:[%s2657 + $0x60] sm:$0xf]
        %v2683 = vld [vmem:[%s2657 + $0x64] sm:$0xf]
        %v2684 = vld [vmem:[%s2657 + $0x68] sm:$0xf]
        %v2685 = vld [vmem:[%s2657 + $0x6c] sm:$0xf]
        %v2686 = vld [vmem:[%s2657 + $0x70] sm:$0xf]
        %v2687 = vld [vmem:[%s2657 + $0x74] sm:$0xf]
        %v2688 = vld [vmem:[%s2657 + $0x78] sm:$0xf]
        %v2689 = vld [vmem:[%s2657 + $0x7c] sm:$0xf]
        %v2690 = vld [vmem:[%s2657 + $0x80] sm:$0xf]
        %v2691 = vld [vmem:[%s2657 + $0x84] sm:$0xf]
        %v2692 = vld [vmem:[%s2657 + $0x88] sm:$0xf]
        %v2693 = vld [vmem:[%s2657 + $0x8c] sm:$0xf]
        %v2694 = vld [vmem:[%s2657 + $0x90] sm:$0xf]
        %v2695 = vld [vmem:[%s2657 + $0x94] sm:$0xf]
        %v2696 = vld [vmem:[%s2657 + $0x98] sm:$0xf]
        %v2697 = vld [vmem:[%s2657 + $0x9c] sm:$0xf]
        %v2698 = vld [vmem:[%s2657 + $0xa0] sm:$0xf]
        %v2699 = vld [vmem:[%s2657 + $0xa4] sm:$0xf]
        %v2700 = vld [vmem:[%s2657 + $0xa8] sm:$0xf]
        %v2701 = vld [vmem:[%s2657 + $0xac] sm:$0xf]
        %v2702 = vld [vmem:[%s2657 + $0xb0] sm:$0xf]
        %v2703 = vld [vmem:[%s2657 + $0xb4] sm:$0xf]
        %v2704 = vld [vmem:[%s2657 + $0xb8] sm:$0xf]
        %v2705 = vld [vmem:[%s2657 + $0xbc] sm:$0xf]
        %v2754 = vunpack.c.l.b16 %v2658
        %v2755 = vunpack.c.l.b16 %v2659
        %v2756 = vunpack.c.l.b16 %v2660
        %v2757 = vunpack.c.l.b16 %v2661
        %v2758 = vunpack.c.l.b16 %v2662
        %v2759 = vunpack.c.l.b16 %v2663
        %v2760 = vunpack.c.l.b16 %v2664
        %v2761 = vunpack.c.l.b16 %v2665
        %v2762 = vunpack.c.l.b16 %v2666
        %v2763 = vunpack.c.l.b16 %v2667
        %v2764 = vunpack.c.l.b16 %v2668
        %v2765 = vunpack.c.l.b16 %v2669
        %v2766 = vunpack.c.l.b16 %v2670
        %v2767 = vunpack.c.l.b16 %v2671
        %v2768 = vunpack.c.l.b16 %v2672
        %v2769 = vunpack.c.l.b16 %v2673
        %v2770 = vunpack.c.l.b16 %v2674
        %v2771 = vunpack.c.l.b16 %v2675
        %v2772 = vunpack.c.l.b16 %v2676
        %v2773 = vunpack.c.l.b16 %v2677
        %v2774 = vunpack.c.l.b16 %v2678
        %v2775 = vunpack.c.l.b16 %v2679
        %v2776 = vunpack.c.l.b16 %v2680
        %v2777 = vunpack.c.l.b16 %v2681
        %v2778 = vunpack.c.l.b16 %v2682
        %v2779 = vunpack.c.l.b16 %v2683
        %v2780 = vunpack.c.l.b16 %v2684
        %v2781 = vunpack.c.l.b16 %v2685
        %v2782 = vunpack.c.l.b16 %v2686
        %v2783 = vunpack.c.l.b16 %v2687
        %v2784 = vunpack.c.l.b16 %v2688
        %v2785 = vunpack.c.l.b16 %v2689
        %v2786 = vunpack.c.l.b16 %v2690
        %v2787 = vunpack.c.l.b16 %v2691
        %v2788 = vunpack.c.l.b16 %v2692
        %v2789 = vunpack.c.l.b16 %v2693
        %v2790 = vunpack.c.l.b16 %v2694
        %v2791 = vunpack.c.l.b16 %v2695
        %v2792 = vunpack.c.l.b16 %v2696
        %v2793 = vunpack.c.l.b16 %v2697
        %v2794 = vunpack.c.l.b16 %v2698
        %v2795 = vunpack.c.l.b16 %v2699
        %v2796 = vunpack.c.l.b16 %v2700
        %v2797 = vunpack.c.l.b16 %v2701
        %v2798 = vunpack.c.l.b16 %v2702
        %v2799 = vunpack.c.l.b16 %v2703
        %v2800 = vunpack.c.l.b16 %v2704
        %v2801 = vunpack.c.l.b16 %v2705
        %v2802 = vpack.c.b16 %v2755, %v2754
        %v2803 = vpack.c.b16 %v2757, %v2756
        %v2804 = vpack.c.b16 %v2759, %v2758
        %v2805 = vpack.c.b16 %v2761, %v2760
        %v2806 = vpack.c.b16 %v2763, %v2762
        %v2807 = vpack.c.b16 %v2765, %v2764
        %v2808 = vpack.c.b16 %v2767, %v2766
        %v2809 = vpack.c.b16 %v2769, %v2768
        %v2810 = vpack.c.b16 %v2771, %v2770
        %v2811 = vpack.c.b16 %v2773, %v2772
        %v2812 = vpack.c.b16 %v2775, %v2774
        %v2813 = vpack.c.b16 %v2777, %v2776
        %v2814 = vpack.c.b16 %v2779, %v2778
        %v2815 = vpack.c.b16 %v2781, %v2780
        %v2816 = vpack.c.b16 %v2783, %v2782
        %v2817 = vpack.c.b16 %v2785, %v2784
        %v2818 = vpack.c.b16 %v2787, %v2786
        %v2819 = vpack.c.b16 %v2789, %v2788
        %v2820 = vpack.c.b16 %v2791, %v2790
        %v2821 = vpack.c.b16 %v2793, %v2792
        %v2822 = vpack.c.b16 %v2795, %v2794
        %v2823 = vpack.c.b16 %v2797, %v2796
        %v2824 = vpack.c.b16 %v2799, %v2798
        %v2825 = vpack.c.b16 %v2801, %v2800
        %2850 = vmatprep.subr.bf16.mxu0 0
        %2851 = vmatpush1.bf16.msra.mxu0 %v2809
        %2852 = vmatprep.subr.bf16.mxu0 0
        %2853 = vmatpush1.bf16.msra.mxu0 %v2808
        %2854 = vmatprep.subr.bf16.mxu0 0
        %2855 = vmatpush1.bf16.msra.mxu0 %v2807
        %2856 = vmatprep.subr.bf16.mxu0 0
        %2857 = vmatpush1.bf16.msra.mxu0 %v2806
        %2858 = vmatprep.subr.bf16.mxu0 0
        %2859 = vmatpush1.bf16.msra.mxu0 %v2805
        %2860 = vmatprep.subr.bf16.mxu0 0
        %2861 = vmatpush1.bf16.msra.mxu0 %v2804
        %2862 = vmatprep.subr.bf16.mxu0 0
        %2863 = vmatpush1.bf16.msra.mxu0 %v2803
        %2864 = vmatprep.subr.bf16.mxu0 0
        %2865 = vmatpush1.bf16.msra.mxu0 %v2802
        %2866 = vmatprep.subr.bf16.mxu0 0
        %2867 = vmatpush2.bf16.msra.mxu0 %v2817
        %2868 = vmatprep.subr.bf16.mxu0 0
        %2869 = vmatpush2.bf16.msra.mxu0 %v2816
        %2870 = vmatprep.subr.bf16.mxu0 0
        %2871 = vmatpush2.bf16.msra.mxu0 %v2815
        %2872 = vmatprep.subr.bf16.mxu0 0
        %2873 = vmatpush2.bf16.msra.mxu0 %v2814
        %2874 = vmatprep.subr.bf16.mxu0 0
        %2875 = vmatpush2.bf16.msra.mxu0 %v2813
        %2876 = vmatprep.subr.bf16.mxu0 0
        %2877 = vmatpush2.bf16.msra.mxu0 %v2812
        %2878 = vmatprep.subr.bf16.mxu0 0
        %2879 = vmatpush2.bf16.msra.mxu0 %v2811
        %2880 = vmatprep.subr.bf16.mxu0 0
        %2881 = vmatpush2.bf16.msra.mxu0 %v2810
        %2882 = vmatprep.mubr.bf16.mxu0 %v2461
        %2883 = vmatmul.mubr.bf16.gmra.mxu0 %v2419
        %v2884 = vpop.f32.mrf.mxu0
        %v2885 = vadd.f32 0.0, %v2884
        %v2886 = vpop.f32.mrf.mxu0
        %v2887 = vpop.f32.mrf.mxu0
        %v2888 = vadd.f32 0.0, %v2887
        %v2889 = vpop.f32.mrf.mxu0
        %2890 = vmatprep.mubr.bf16.mxu0 %v2473
        %2891 = vmatmul.mubr.bf16.gmra.mxu0 %v2420
        %v2892 = vpop.f32.mrf.mxu0
        %v2893 = vadd.f32 0.0, %v2892
        %v2894 = vpop.f32.mrf.mxu0
        %v2895 = vpop.f32.mrf.mxu0
        %v2896 = vadd.f32 0.0, %v2895
        %v2897 = vpop.f32.mrf.mxu0
        %2898 = vmatprep.mubr.bf16.mxu0 %v2485
        %2899 = vmatmul.mubr.bf16.gmra.mxu0 %v2421
        %v2900 = vpop.f32.mrf.mxu0
        %v2901 = vadd.f32 0.0, %v2900
        %v2902 = vpop.f32.mrf.mxu0
        %v2903 = vpop.f32.mrf.mxu0
        %v2904 = vadd.f32 0.0, %v2903
        %v2905 = vpop.f32.mrf.mxu0
        %2906 = vmatprep.mubr.bf16.mxu0 %v2497
        %2907 = vmatmul.mubr.bf16.gmra.mxu0 %v2422
        %v2908 = vpop.f32.mrf.mxu0
        %v2909 = vadd.f32 0.0, %v2908
        %v2910 = vpop.f32.mrf.mxu0
        %v2911 = vpop.f32.mrf.mxu0
        %v2912 = vadd.f32 0.0, %v2911
        %v2913 = vpop.f32.mrf.mxu0
        %2914 = vmatprep.mubr.bf16.mxu0 %v2509
        %2915 = vmatmul.mubr.bf16.gmra.mxu0 %v2423
        %v2916 = vpop.f32.mrf.mxu0
        %v2917 = vadd.f32 0.0, %v2916
        %v2918 = vpop.f32.mrf.mxu0
        %v2919 = vpop.f32.mrf.mxu0
        %v2920 = vadd.f32 0.0, %v2919
        %v2921 = vpop.f32.mrf.mxu0
        %2922 = vmatprep.mubr.bf16.mxu0 %v2521
        %2923 = vmatmul.mubr.bf16.gmra.mxu0 %v2424
        %v2924 = vpop.f32.mrf.mxu0
        %v2925 = vadd.f32 0.0, %v2924
        %v2926 = vpop.f32.mrf.mxu0
        %v2927 = vpop.f32.mrf.mxu0
        %v2928 = vadd.f32 0.0, %v2927
        %v2929 = vpop.f32.mrf.mxu0
        %2930 = vmatprep.mubr.bf16.mxu0 %v2533
        %2931 = vmatmul.mubr.bf16.gmra.mxu0 %v2425
        %v2932 = vpop.f32.mrf.mxu0
        %v2933 = vadd.f32 0.0, %v2932
        %v2934 = vpop.f32.mrf.mxu0
        %v2935 = vpop.f32.mrf.mxu0
        %v2936 = vadd.f32 0.0, %v2935
        %v2937 = vpop.f32.mrf.mxu0
        %2938 = vmatprep.mubr.bf16.mxu0 %v2649
        %2939 = vmatmul.mubr.bf16.gmra.mxu0 %v2426
        %v2940 = vpop.f32.mrf.mxu0
        %v2941 = vadd.f32 0.0, %v2940
        %v2942 = vpop.f32.mrf.mxu0
        %v2943 = vpop.f32.mrf.mxu0
        %v2944 = vadd.f32 0.0, %v2943
        %v2945 = vpop.f32.mrf.mxu0
        %2946 = vdwg.mxu0
        %2947 = vmatprep.subr.bf16.mxu0 0
        %2948 = vmatpush1.bf16.msra.mxu0 %v2825
        %2949 = vmatprep.subr.bf16.mxu0 0
        %2950 = vmatpush1.bf16.msra.mxu0 %v2824
        %2951 = vmatprep.subr.bf16.mxu0 0
        %2952 = vmatpush1.bf16.msra.mxu0 %v2823
        %2953 = vmatprep.subr.bf16.mxu0 0
        %2954 = vmatpush1.bf16.msra.mxu0 %v2822
        %2955 = vmatprep.subr.bf16.mxu0 0
        %2956 = vmatpush1.bf16.msra.mxu0 %v2821
        %2957 = vmatprep.subr.bf16.mxu0 0
        %2958 = vmatpush1.bf16.msra.mxu0 %v2820
        %2959 = vmatprep.subr.bf16.mxu0 0
        %2960 = vmatpush1.bf16.msra.mxu0 %v2819
        %2961 = vmatprep.subr.bf16.mxu0 0
        %2962 = vmatpush1.bf16.msra.mxu0 %v2818
        %2963 = vmatprep.subr.bf16.mxu0 0
        %2964 = vmatpush2.bf16.msra.mxu0 0
        %2965 = vmatprep.subr.bf16.mxu0 0
        %2966 = vmatpush2.bf16.msra.mxu0 0
        %2967 = vmatprep.subr.bf16.mxu0 0
        %2968 = vmatpush2.bf16.msra.mxu0 0
        %2969 = vmatprep.subr.bf16.mxu0 0
        %2970 = vmatpush2.bf16.msra.mxu0 0
        %2971 = vmatprep.subr.bf16.mxu0 0
        %2972 = vmatpush2.bf16.msra.mxu0 0
        %2973 = vmatprep.subr.bf16.mxu0 0
        %2974 = vmatpush2.bf16.msra.mxu0 0
        %2975 = vmatprep.subr.bf16.mxu0 0
        %2976 = vmatpush2.bf16.msra.mxu0 0
        %2977 = vmatprep.subr.bf16.mxu0 0
        %2978 = vmatpush2.bf16.msra.mxu0 0
        %2979 = vmatprep.mubr.bf16.mxu0 0
        %2980 = vmatmul.mubr.bf16.gmra.mxu0 %v2563
        %v2981 = vpop.f32.mrf.mxu0
        %v2982 = vadd.f32 %v2885, %v2981
        %v2983 = vpop.f32.mrf.mxu0
        %v2984 = vpop.f32.mrf.mxu0
        %v2985 = vadd.f32 %v2888, %v2984
        %v2986 = vpop.f32.mrf.mxu0
        %2987 = vmatprep.mubr.bf16.mxu0 0
        %2988 = vmatmul.mubr.bf16.gmra.mxu0 %v2566
        %v2989 = vpop.f32.mrf.mxu0
        %v2990 = vadd.f32 %v2893, %v2989
        %v2991 = vpop.f32.mrf.mxu0
        %v2992 = vpop.f32.mrf.mxu0
        %v2993 = vadd.f32 %v2896, %v2992
        %v2994 = vpop.f32.mrf.mxu0
        %2995 = vmatprep.mubr.bf16.mxu0 0
        %2996 = vmatmul.mubr.bf16.gmra.mxu0 %v2569
        %v2997 = vpop.f32.mrf.mxu0
        %v2998 = vadd.f32 %v2901, %v2997
        %v2999 = vpop.f32.mrf.mxu0
        %v3000 = vpop.f32.mrf.mxu0
        %v3001 = vadd.f32 %v2904, %v3000
        %v3002 = vpop.f32.mrf.mxu0
        %3003 = vmatprep.mubr.bf16.mxu0 0
        %3004 = vmatmul.mubr.bf16.gmra.mxu0 %v2572
        %v3005 = vpop.f32.mrf.mxu0
        %v3006 = vadd.f32 %v2909, %v3005
        %v3007 = vpop.f32.mrf.mxu0
        %v3008 = vpop.f32.mrf.mxu0
        %v3009 = vadd.f32 %v2912, %v3008
        %v3010 = vpop.f32.mrf.mxu0
        %3011 = vmatprep.mubr.bf16.mxu0 0
        %3012 = vmatmul.mubr.bf16.gmra.mxu0 %v2575
        %v3013 = vpop.f32.mrf.mxu0
        %v3014 = vadd.f32 %v2917, %v3013
        %v3015 = vpop.f32.mrf.mxu0
        %v3016 = vpop.f32.mrf.mxu0
        %v3017 = vadd.f32 %v2920, %v3016
        %v3018 = vpop.f32.mrf.mxu0
        %3019 = vmatprep.mubr.bf16.mxu0 0
        %3020 = vmatmul.mubr.bf16.gmra.mxu0 %v2578
        %v3021 = vpop.f32.mrf.mxu0
        %v3022 = vadd.f32 %v2925, %v3021
        %v3023 = vpop.f32.mrf.mxu0
        %v3024 = vpop.f32.mrf.mxu0
        %v3025 = vadd.f32 %v2928, %v3024
        %v3026 = vpop.f32.mrf.mxu0
        %3027 = vmatprep.mubr.bf16.mxu0 0
        %3028 = vmatmul.mubr.bf16.gmra.mxu0 %v2581
        %v3029 = vpop.f32.mrf.mxu0
        %v3030 = vadd.f32 %v2933, %v3029
        %v3031 = vpop.f32.mrf.mxu0
        %v3032 = vpop.f32.mrf.mxu0
        %v3033 = vadd.f32 %v2936, %v3032
        %v3034 = vpop.f32.mrf.mxu0
        %3035 = vmatprep.mubr.bf16.mxu0 0
        %3036 = vmatmul.mubr.bf16.gmra.mxu0 %v2655
        %v3037 = vpop.f32.mrf.mxu0
        %v3038 = vadd.f32 %v2941, %v3037
        %v3039 = vpop.f32.mrf.mxu0
        %v3040 = vpop.f32.mrf.mxu0
        %v3041 = vadd.f32 %v2944, %v3040
        %v3042 = vpop.f32.mrf.mxu0
        %3043 = vdwg.mxu0
        %v3092 = vunpack.c.l.b16 %v2590
        %v3093 = vunpack.c.l.b16 %v2591
        %v3094 = vunpack.c.l.b16 %v2592
        %v3095 = vunpack.c.l.b16 %v2593
        %v3096 = vunpack.c.l.b16 %v2594
        %v3097 = vunpack.c.l.b16 %v2595
        %v3098 = vunpack.c.l.b16 %v2596
        %v3099 = vunpack.c.l.b16 %v2597
        %v3100 = vunpack.c.l.b16 %v2598
        %v3101 = vunpack.c.l.b16 %v2599
        %v3102 = vunpack.c.l.b16 %v2600
        %v3103 = vunpack.c.l.b16 %v2601
        %v3104 = vunpack.c.l.b16 %v2602
        %v3105 = vunpack.c.l.b16 %v2603
        %v3106 = vunpack.c.l.b16 %v2604
        %v3107 = vunpack.c.l.b16 %v2605
        %v3108 = vunpack.c.l.b16 %v2606
        %v3109 = vunpack.c.l.b16 %v2607
        %v3110 = vunpack.c.l.b16 %v2608
        %v3111 = vunpack.c.l.b16 %v2609
        %v3112 = vunpack.c.l.b16 %v2610
        %v3113 = vunpack.c.l.b16 %v2611
        %v3114 = vunpack.c.l.b16 %v2612
        %v3115 = vunpack.c.l.b16 %v2613
        %v3116 = vunpack.c.l.b16 %v2614
        %v3117 = vunpack.c.l.b16 %v2615
        %v3118 = vunpack.c.l.b16 %v2616
        %v3119 = vunpack.c.l.b16 %v2617
        %v3120 = vunpack.c.l.b16 %v2618
        %v3121 = vunpack.c.l.b16 %v2619
        %v3122 = vunpack.c.l.b16 %v2620
        %v3123 = vunpack.c.l.b16 %v2621
        %v3124 = vunpack.c.l.b16 %v2622
        %v3125 = vunpack.c.l.b16 %v2623
        %v3126 = vunpack.c.l.b16 %v2624
        %v3127 = vunpack.c.l.b16 %v2625
        %v3128 = vunpack.c.l.b16 %v2626
        %v3129 = vunpack.c.l.b16 %v2627
        %v3130 = vunpack.c.l.b16 %v2628
        %v3131 = vunpack.c.l.b16 %v2629
        %v3132 = vunpack.c.l.b16 %v2630
        %v3133 = vunpack.c.l.b16 %v2631
        %v3134 = vunpack.c.l.b16 %v2632
        %v3135 = vunpack.c.l.b16 %v2633
        %v3136 = vunpack.c.l.b16 %v2634
        %v3137 = vunpack.c.l.b16 %v2635
        %v3138 = vunpack.c.l.b16 %v2636
        %v3139 = vunpack.c.l.b16 %v2637
        %v3140 = vpack.c.b16 %v3093, %v3092
        %v3141 = vpack.c.b16 %v3095, %v3094
        %v3142 = vpack.c.b16 %v3097, %v3096
        %v3143 = vpack.c.b16 %v3099, %v3098
        %v3144 = vpack.c.b16 %v3101, %v3100
        %v3145 = vpack.c.b16 %v3103, %v3102
        %v3146 = vpack.c.b16 %v3105, %v3104
        %v3147 = vpack.c.b16 %v3107, %v3106
        %v3148 = vpack.c.b16 %v3109, %v3108
        %v3149 = vpack.c.b16 %v3111, %v3110
        %v3150 = vpack.c.b16 %v3113, %v3112
        %v3151 = vpack.c.b16 %v3115, %v3114
        %v3152 = vpack.c.b16 %v3117, %v3116
        %v3153 = vpack.c.b16 %v3119, %v3118
        %v3154 = vpack.c.b16 %v3121, %v3120
        %v3155 = vpack.c.b16 %v3123, %v3122
        %v3156 = vpack.c.b16 %v3125, %v3124
        %v3157 = vpack.c.b16 %v3127, %v3126
        %v3158 = vpack.c.b16 %v3129, %v3128
        %v3159 = vpack.c.b16 %v3131, %v3130
        %v3160 = vpack.c.b16 %v3133, %v3132
        %v3161 = vpack.c.b16 %v3135, %v3134
        %v3162 = vpack.c.b16 %v3137, %v3136
        %v3163 = vpack.c.b16 %v3139, %v3138
        %3188 = vmatprep.subr.bf16.mxu0 0
        %3189 = vmatpush1.bf16.msra.mxu0 %v3147
        %3190 = vmatprep.subr.bf16.mxu0 0
        %3191 = vmatpush1.bf16.msra.mxu0 %v3146
        %3192 = vmatprep.subr.bf16.mxu0 0
        %3193 = vmatpush1.bf16.msra.mxu0 %v3145
        %3194 = vmatprep.subr.bf16.mxu0 0
        %3195 = vmatpush1.bf16.msra.mxu0 %v3144
        %3196 = vmatprep.subr.bf16.mxu0 0
        %3197 = vmatpush1.bf16.msra.mxu0 %v3143
        %3198 = vmatprep.subr.bf16.mxu0 0
        %3199 = vmatpush1.bf16.msra.mxu0 %v3142
        %3200 = vmatprep.subr.bf16.mxu0 0
        %3201 = vmatpush1.bf16.msra.mxu0 %v3141
        %3202 = vmatprep.subr.bf16.mxu0 0
        %3203 = vmatpush1.bf16.msra.mxu0 %v3140
        %3204 = vmatprep.subr.bf16.mxu0 0
        %3205 = vmatpush2.bf16.msra.mxu0 %v3155
        %3206 = vmatprep.subr.bf16.mxu0 0
        %3207 = vmatpush2.bf16.msra.mxu0 %v3154
        %3208 = vmatprep.subr.bf16.mxu0 0
        %3209 = vmatpush2.bf16.msra.mxu0 %v3153
        %3210 = vmatprep.subr.bf16.mxu0 0
        %3211 = vmatpush2.bf16.msra.mxu0 %v3152
        %3212 = vmatprep.subr.bf16.mxu0 0
        %3213 = vmatpush2.bf16.msra.mxu0 %v3151
        %3214 = vmatprep.subr.bf16.mxu0 0
        %3215 = vmatpush2.bf16.msra.mxu0 %v3150
        %3216 = vmatprep.subr.bf16.mxu0 0
        %3217 = vmatpush2.bf16.msra.mxu0 %v3149
        %3218 = vmatprep.subr.bf16.mxu0 0
        %3219 = vmatpush2.bf16.msra.mxu0 %v3148
        %3220 = vmatprep.mubr.bf16.mxu0 %v2449
        %3221 = vmatmul.mubr.bf16.gmra.mxu0 %v2418
        %v3222 = vpop.f32.mrf.mxu0
        %v3223 = vadd.f32 %v2982, %v3222
        %v3224 = vpop.f32.mrf.mxu0
        %v3225 = vpop.f32.mrf.mxu0
        %v3226 = vadd.f32 %v2985, %v3225
        %v3227 = vpop.f32.mrf.mxu0
        %3228 = vmatprep.mubr.bf16.mxu0 %v2461
        %3229 = vmatmul.mubr.bf16.gmra.mxu0 %v2419
        %v3230 = vpop.f32.mrf.mxu0
        %v3231 = vadd.f32 %v2990, %v3230
        %v3232 = vpop.f32.mrf.mxu0
        %v3233 = vpop.f32.mrf.mxu0
        %v3234 = vadd.f32 %v2993, %v3233
        %v3235 = vpop.f32.mrf.mxu0
        %3236 = vmatprep.mubr.bf16.mxu0 %v2473
        %3237 = vmatmul.mubr.bf16.gmra.mxu0 %v2420
        %v3238 = vpop.f32.mrf.mxu0
        %v3239 = vadd.f32 %v2998, %v3238
        %v3240 = vpop.f32.mrf.mxu0
        %v3241 = vpop.f32.mrf.mxu0
        %v3242 = vadd.f32 %v3001, %v3241
        %v3243 = vpop.f32.mrf.mxu0
        %3244 = vmatprep.mubr.bf16.mxu0 %v2485
        %3245 = vmatmul.mubr.bf16.gmra.mxu0 %v2421
        %v3246 = vpop.f32.mrf.mxu0
        %v3247 = vadd.f32 %v3006, %v3246
        %v3248 = vpop.f32.mrf.mxu0
        %v3249 = vpop.f32.mrf.mxu0
        %v3250 = vadd.f32 %v3009, %v3249
        %v3251 = vpop.f32.mrf.mxu0
        %3252 = vmatprep.mubr.bf16.mxu0 %v2497
        %3253 = vmatmul.mubr.bf16.gmra.mxu0 %v2422
        %v3254 = vpop.f32.mrf.mxu0
        %v3255 = vadd.f32 %v3014, %v3254
        %v3256 = vpop.f32.mrf.mxu0
        %v3257 = vpop.f32.mrf.mxu0
        %v3258 = vadd.f32 %v3017, %v3257
        %v3259 = vpop.f32.mrf.mxu0
        %3260 = vmatprep.mubr.bf16.mxu0 %v2509
        %3261 = vmatmul.mubr.bf16.gmra.mxu0 %v2423
        %v3262 = vpop.f32.mrf.mxu0
        %v3263 = vadd.f32 %v3022, %v3262
        %v3264 = vpop.f32.mrf.mxu0
        %v3265 = vpop.f32.mrf.mxu0
        %v3266 = vadd.f32 %v3025, %v3265
        %v3267 = vpop.f32.mrf.mxu0
        %3268 = vmatprep.mubr.bf16.mxu0 %v2521
        %3269 = vmatmul.mubr.bf16.gmra.mxu0 %v2424
        %v3270 = vpop.f32.mrf.mxu0
        %v3271 = vadd.f32 %v3030, %v3270
        %v3272 = vpop.f32.mrf.mxu0
        %v3273 = vpop.f32.mrf.mxu0
        %v3274 = vadd.f32 %v3033, %v3273
        %v3275 = vpop.f32.mrf.mxu0
        %3276 = vmatprep.mubr.bf16.mxu0 %v2533
        %3277 = vmatmul.mubr.bf16.gmra.mxu0 %v2425
        %v3278 = vpop.f32.mrf.mxu0
        %v3279 = vadd.f32 %v3038, %v3278
        %v3280 = vpop.f32.mrf.mxu0
        %v3281 = vpop.f32.mrf.mxu0
        %v3282 = vadd.f32 %v3041, %v3281
        %v3283 = vpop.f32.mrf.mxu0
        %3284 = vdwg.mxu0
        %3285 = vmatprep.subr.bf16.mxu0 0
        %3286 = vmatpush1.bf16.msra.mxu0 %v3163
        %3287 = vmatprep.subr.bf16.mxu0 0
        %3288 = vmatpush1.bf16.msra.mxu0 %v3162
        %3289 = vmatprep.subr.bf16.mxu0 0
        %3290 = vmatpush1.bf16.msra.mxu0 %v3161
        %3291 = vmatprep.subr.bf16.mxu0 0
        %3292 = vmatpush1.bf16.msra.mxu0 %v3160
        %3293 = vmatprep.subr.bf16.mxu0 0
        %3294 = vmatpush1.bf16.msra.mxu0 %v3159
        %3295 = vmatprep.subr.bf16.mxu0 0
        %3296 = vmatpush1.bf16.msra.mxu0 %v3158
        %3297 = vmatprep.subr.bf16.mxu0 0
        %3298 = vmatpush1.bf16.msra.mxu0 %v3157
        %3299 = vmatprep.subr.bf16.mxu0 0
        %3300 = vmatpush1.bf16.msra.mxu0 %v3156
        %3301 = vmatprep.subr.bf16.mxu0 0
        %3302 = vmatpush2.bf16.msra.mxu0 0
        %3303 = vmatprep.subr.bf16.mxu0 0
        %3304 = vmatpush2.bf16.msra.mxu0 0
        %3305 = vmatprep.subr.bf16.mxu0 0
        %3306 = vmatpush2.bf16.msra.mxu0 0
        %3307 = vmatprep.subr.bf16.mxu0 0
        %3308 = vmatpush2.bf16.msra.mxu0 0
        %3309 = vmatprep.subr.bf16.mxu0 0
        %3310 = vmatpush2.bf16.msra.mxu0 0
        %3311 = vmatprep.subr.bf16.mxu0 0
        %3312 = vmatpush2.bf16.msra.mxu0 0
        %3313 = vmatprep.subr.bf16.mxu0 0
        %3314 = vmatpush2.bf16.msra.mxu0 0
        %3315 = vmatprep.subr.bf16.mxu0 0
        %3316 = vmatpush2.bf16.msra.mxu0 0
        %3317 = vmatprep.mubr.bf16.mxu0 0
        %3318 = vmatmul.mubr.bf16.gmra.mxu0 %v2560
        %v3319 = vpop.f32.mrf.mxu0
        %v3320 = vadd.f32 %v3223, %v3319
        %v3321 = vpop.f32.mrf.mxu0
        %v3322 = vpop.f32.mrf.mxu0
        %v3323 = vadd.f32 %v3226, %v3322
        %v3324 = vpop.f32.mrf.mxu0
        %3325 = vmatprep.mubr.bf16.mxu0 0
        %3326 = vmatmul.mubr.bf16.gmra.mxu0 %v2563
        %v3327 = vpop.f32.mrf.mxu0
        %v3328 = vadd.f32 %v3231, %v3327
        %v3329 = vpop.f32.mrf.mxu0
        %v3330 = vpop.f32.mrf.mxu0
        %v3331 = vadd.f32 %v3234, %v3330
        %v3332 = vpop.f32.mrf.mxu0
        %3333 = vmatprep.mubr.bf16.mxu0 0
        %3334 = vmatmul.mubr.bf16.gmra.mxu0 %v2566
        %v3335 = vpop.f32.mrf.mxu0
        %v3336 = vadd.f32 %v3239, %v3335
        %v3337 = vpop.f32.mrf.mxu0
        %v3338 = vpop.f32.mrf.mxu0
        %v3339 = vadd.f32 %v3242, %v3338
        %v3340 = vpop.f32.mrf.mxu0
        %3341 = vmatprep.mubr.bf16.mxu0 0
        %3342 = vmatmul.mubr.bf16.gmra.mxu0 %v2569
        %v3343 = vpop.f32.mrf.mxu0
        %v3344 = vadd.f32 %v3247, %v3343
        %v3345 = vpop.f32.mrf.mxu0
        %v3346 = vpop.f32.mrf.mxu0
        %v3347 = vadd.f32 %v3250, %v3346
        %v3348 = vpop.f32.mrf.mxu0
        %3349 = vmatprep.mubr.bf16.mxu0 0
        %3350 = vmatmul.mubr.bf16.gmra.mxu0 %v2572
        %v3351 = vpop.f32.mrf.mxu0
        %v3352 = vadd.f32 %v3255, %v3351
        %v3353 = vpop.f32.mrf.mxu0
        %v3354 = vpop.f32.mrf.mxu0
        %v3355 = vadd.f32 %v3258, %v3354
        %v3356 = vpop.f32.mrf.mxu0
        %3357 = vmatprep.mubr.bf16.mxu0 0
        %3358 = vmatmul.mubr.bf16.gmra.mxu0 %v2575
        %v3359 = vpop.f32.mrf.mxu0
        %v3360 = vadd.f32 %v3263, %v3359
        %v3361 = vpop.f32.mrf.mxu0
        %v3362 = vpop.f32.mrf.mxu0
        %v3363 = vadd.f32 %v3266, %v3362
        %v3364 = vpop.f32.mrf.mxu0
        %3365 = vmatprep.mubr.bf16.mxu0 0
        %3366 = vmatmul.mubr.bf16.gmra.mxu0 %v2578
        %v3367 = vpop.f32.mrf.mxu0
        %v3368 = vadd.f32 %v3271, %v3367
        %v3369 = vpop.f32.mrf.mxu0
        %v3370 = vpop.f32.mrf.mxu0
        %v3371 = vadd.f32 %v3274, %v3370
        %v3372 = vpop.f32.mrf.mxu0
        %3373 = vmatprep.mubr.bf16.mxu0 0
        %3374 = vmatmul.mubr.bf16.gmra.mxu0 %v2581
        %v3375 = vpop.f32.mrf.mxu0
        %v3376 = vadd.f32 %v3279, %v3375
        %v3377 = vpop.f32.mrf.mxu0
        %v3378 = vpop.f32.mrf.mxu0
        %v3379 = vadd.f32 %v3282, %v3378
        %v3380 = vpop.f32.mrf.mxu0
        %3381 = vdwg.mxu0
        %v3383 = vshrl.u32 %v2427, 16
        %v3385 = vshll.u32 %v2427, 16
        %v3387 = vrot.slane %v3385, 1
        %v3388 = vor.u32 %v3383, %v3387
        %v3390 = vshll.u32 %v2437, 16
        %v3392 = vrot.slane %v3390, 1
        %v3393 = vsel %vm478, %v3388, %v3392
        %v3397 = vrot.slane %v2427, 1
        %v3398 = vrot.slane %v2437, 1
        %v3399 = vsel %vm629, %v3397, %v3398
        %s3401 = scalar_lea.vmem [#allocation3], 384
        %v3402 = vld [vmem:[%s3401] sm:$0xf]
        %v3403 = vld [vmem:[%s3401 + $0x4] sm:$0xf]
        %v3404 = vld [vmem:[%s3401 + $0x8] sm:$0xf]
        %v3405 = vld [vmem:[%s3401 + $0xc] sm:$0xf]
        %v3406 = vld [vmem:[%s3401 + $0x10] sm:$0xf]
        %v3407 = vld [vmem:[%s3401 + $0x14] sm:$0xf]
        %v3408 = vld [vmem:[%s3401 + $0x18] sm:$0xf]
        %v3409 = vld [vmem:[%s3401 + $0x1c] sm:$0xf]
        %v3410 = vld [vmem:[%s3401 + $0x20] sm:$0xf]
        %v3411 = vld [vmem:[%s3401 + $0x24] sm:$0xf]
        %v3412 = vld [vmem:[%s3401 + $0x28] sm:$0xf]
        %v3413 = vld [vmem:[%s3401 + $0x2c] sm:$0xf]
        %v3414 = vld [vmem:[%s3401 + $0x30] sm:$0xf]
        %v3415 = vld [vmem:[%s3401 + $0x34] sm:$0xf]
        %v3416 = vld [vmem:[%s3401 + $0x38] sm:$0xf]
        %v3417 = vld [vmem:[%s3401 + $0x3c] sm:$0xf]
        %v3418 = vld [vmem:[%s3401 + $0x40] sm:$0xf]
        %v3419 = vld [vmem:[%s3401 + $0x44] sm:$0xf]
        %v3420 = vld [vmem:[%s3401 + $0x48] sm:$0xf]
        %v3421 = vld [vmem:[%s3401 + $0x4c] sm:$0xf]
        %v3422 = vld [vmem:[%s3401 + $0x50] sm:$0xf]
        %v3423 = vld [vmem:[%s3401 + $0x54] sm:$0xf]
        %v3424 = vld [vmem:[%s3401 + $0x58] sm:$0xf]
        %v3425 = vld [vmem:[%s3401 + $0x5c] sm:$0xf]
        %v3426 = vld [vmem:[%s3401 + $0x60] sm:$0xf]
        %v3427 = vld [vmem:[%s3401 + $0x64] sm:$0xf]
        %v3428 = vld [vmem:[%s3401 + $0x68] sm:$0xf]
        %v3429 = vld [vmem:[%s3401 + $0x6c] sm:$0xf]
        %v3430 = vld [vmem:[%s3401 + $0x70] sm:$0xf]
        %v3431 = vld [vmem:[%s3401 + $0x74] sm:$0xf]
        %v3432 = vld [vmem:[%s3401 + $0x78] sm:$0xf]
        %v3433 = vld [vmem:[%s3401 + $0x7c] sm:$0xf]
        %v3434 = vld [vmem:[%s3401 + $0x80] sm:$0xf]
        %v3435 = vld [vmem:[%s3401 + $0x84] sm:$0xf]
        %v3436 = vld [vmem:[%s3401 + $0x88] sm:$0xf]
        %v3437 = vld [vmem:[%s3401 + $0x8c] sm:$0xf]
        %v3438 = vld [vmem:[%s3401 + $0x90] sm:$0xf]
        %v3439 = vld [vmem:[%s3401 + $0x94] sm:$0xf]
        %v3440 = vld [vmem:[%s3401 + $0x98] sm:$0xf]
        %v3441 = vld [vmem:[%s3401 + $0x9c] sm:$0xf]
        %v3442 = vld [vmem:[%s3401 + $0xa0] sm:$0xf]
        %v3443 = vld [vmem:[%s3401 + $0xa4] sm:$0xf]
        %v3444 = vld [vmem:[%s3401 + $0xa8] sm:$0xf]
        %v3445 = vld [vmem:[%s3401 + $0xac] sm:$0xf]
        %v3446 = vld [vmem:[%s3401 + $0xb0] sm:$0xf]
        %v3447 = vld [vmem:[%s3401 + $0xb4] sm:$0xf]
        %v3448 = vld [vmem:[%s3401 + $0xb8] sm:$0xf]
        %v3449 = vld [vmem:[%s3401 + $0xbc] sm:$0xf]
        %v3498 = vunpack.c.l.b16 %v3402
        %v3499 = vunpack.c.l.b16 %v3403
        %v3500 = vunpack.c.l.b16 %v3404
        %v3501 = vunpack.c.l.b16 %v3405
        %v3502 = vunpack.c.l.b16 %v3406
        %v3503 = vunpack.c.l.b16 %v3407
        %v3504 = vunpack.c.l.b16 %v3408
        %v3505 = vunpack.c.l.b16 %v3409
        %v3506 = vunpack.c.l.b16 %v3410
        %v3507 = vunpack.c.l.b16 %v3411
        %v3508 = vunpack.c.l.b16 %v3412
        %v3509 = vunpack.c.l.b16 %v3413
        %v3510 = vunpack.c.l.b16 %v3414
        %v3511 = vunpack.c.l.b16 %v3415
        %v3512 = vunpack.c.l.b16 %v3416
        %v3513 = vunpack.c.l.b16 %v3417
        %v3514 = vunpack.c.l.b16 %v3418
        %v3515 = vunpack.c.l.b16 %v3419
        %v3516 = vunpack.c.l.b16 %v3420
        %v3517 = vunpack.c.l.b16 %v3421
        %v3518 = vunpack.c.l.b16 %v3422
        %v3519 = vunpack.c.l.b16 %v3423
        %v3520 = vunpack.c.l.b16 %v3424
        %v3521 = vunpack.c.l.b16 %v3425
        %v3522 = vunpack.c.l.b16 %v3426
        %v3523 = vunpack.c.l.b16 %v3427
        %v3524 = vunpack.c.l.b16 %v3428
        %v3525 = vunpack.c.l.b16 %v3429
        %v3526 = vunpack.c.l.b16 %v3430
        %v3527 = vunpack.c.l.b16 %v3431
        %v3528 = vunpack.c.l.b16 %v3432
        %v3529 = vunpack.c.l.b16 %v3433
        %v3530 = vunpack.c.l.b16 %v3434
        %v3531 = vunpack.c.l.b16 %v3435
        %v3532 = vunpack.c.l.b16 %v3436
        %v3533 = vunpack.c.l.b16 %v3437
        %v3534 = vunpack.c.l.b16 %v3438
        %v3535 = vunpack.c.l.b16 %v3439
        %v3536 = vunpack.c.l.b16 %v3440
        %v3537 = vunpack.c.l.b16 %v3441
        %v3538 = vunpack.c.l.b16 %v3442
        %v3539 = vunpack.c.l.b16 %v3443
        %v3540 = vunpack.c.l.b16 %v3444
        %v3541 = vunpack.c.l.b16 %v3445
        %v3542 = vunpack.c.l.b16 %v3446
        %v3543 = vunpack.c.l.b16 %v3447
        %v3544 = vunpack.c.l.b16 %v3448
        %v3545 = vunpack.c.l.b16 %v3449
        %v3546 = vpack.c.b16 %v3499, %v3498
        %v3547 = vpack.c.b16 %v3501, %v3500
        %v3548 = vpack.c.b16 %v3503, %v3502
        %v3549 = vpack.c.b16 %v3505, %v3504
        %v3550 = vpack.c.b16 %v3507, %v3506
        %v3551 = vpack.c.b16 %v3509, %v3508
        %v3552 = vpack.c.b16 %v3511, %v3510
        %v3553 = vpack.c.b16 %v3513, %v3512
        %v3554 = vpack.c.b16 %v3515, %v3514
        %v3555 = vpack.c.b16 %v3517, %v3516
        %v3556 = vpack.c.b16 %v3519, %v3518
        %v3557 = vpack.c.b16 %v3521, %v3520
        %v3558 = vpack.c.b16 %v3523, %v3522
        %v3559 = vpack.c.b16 %v3525, %v3524
        %v3560 = vpack.c.b16 %v3527, %v3526
        %v3561 = vpack.c.b16 %v3529, %v3528
        %v3562 = vpack.c.b16 %v3531, %v3530
        %v3563 = vpack.c.b16 %v3533, %v3532
        %v3564 = vpack.c.b16 %v3535, %v3534
        %v3565 = vpack.c.b16 %v3537, %v3536
        %v3566 = vpack.c.b16 %v3539, %v3538
        %v3567 = vpack.c.b16 %v3541, %v3540
        %v3568 = vpack.c.b16 %v3543, %v3542
        %v3569 = vpack.c.b16 %v3545, %v3544
        %3594 = vmatprep.subr.bf16.mxu0 0
        %3595 = vmatpush1.bf16.msra.mxu0 %v3553
        %3596 = vmatprep.subr.bf16.mxu0 0
        %3597 = vmatpush1.bf16.msra.mxu0 %v3552
        %3598 = vmatprep.subr.bf16.mxu0 0
        %3599 = vmatpush1.bf16.msra.mxu0 %v3551
        %3600 = vmatprep.subr.bf16.mxu0 0
        %3601 = vmatpush1.bf16.msra.mxu0 %v3550
        %3602 = vmatprep.subr.bf16.mxu0 0
        %3603 = vmatpush1.bf16.msra.mxu0 %v3549
        %3604 = vmatprep.subr.bf16.mxu0 0
        %3605 = vmatpush1.bf16.msra.mxu0 %v3548
        %3606 = vmatprep.subr.bf16.mxu0 0
        %3607 = vmatpush1.bf16.msra.mxu0 %v3547
        %3608 = vmatprep.subr.bf16.mxu0 0
        %3609 = vmatpush1.bf16.msra.mxu0 %v3546
        %3610 = vmatprep.subr.bf16.mxu0 0
        %3611 = vmatpush2.bf16.msra.mxu0 %v3561
        %3612 = vmatprep.subr.bf16.mxu0 0
        %3613 = vmatpush2.bf16.msra.mxu0 %v3560
        %3614 = vmatprep.subr.bf16.mxu0 0
        %3615 = vmatpush2.bf16.msra.mxu0 %v3559
        %3616 = vmatprep.subr.bf16.mxu0 0
        %3617 = vmatpush2.bf16.msra.mxu0 %v3558
        %3618 = vmatprep.subr.bf16.mxu0 0
        %3619 = vmatpush2.bf16.msra.mxu0 %v3557
        %3620 = vmatprep.subr.bf16.mxu0 0
        %3621 = vmatpush2.bf16.msra.mxu0 %v3556
        %3622 = vmatprep.subr.bf16.mxu0 0
        %3623 = vmatpush2.bf16.msra.mxu0 %v3555
        %3624 = vmatprep.subr.bf16.mxu0 0
        %3625 = vmatpush2.bf16.msra.mxu0 %v3554
        %3626 = vmatprep.mubr.bf16.mxu0 %v2473
        %3627 = vmatmul.mubr.bf16.gmra.mxu0 %v2420
        %v3628 = vpop.f32.mrf.mxu0
        %v3629 = vadd.f32 0.0, %v3628
        %v3630 = vpop.f32.mrf.mxu0
        %v3631 = vpop.f32.mrf.mxu0
        %v3632 = vadd.f32 0.0, %v3631
        %v3633 = vpop.f32.mrf.mxu0
        %3634 = vmatprep.mubr.bf16.mxu0 %v2485
        %3635 = vmatmul.mubr.bf16.gmra.mxu0 %v2421
        %v3636 = vpop.f32.mrf.mxu0
        %v3637 = vadd.f32 0.0, %v3636
        %v3638 = vpop.f32.mrf.mxu0
        %v3639 = vpop.f32.mrf.mxu0
        %v3640 = vadd.f32 0.0, %v3639
        %v3641 = vpop.f32.mrf.mxu0
        %3642 = vmatprep.mubr.bf16.mxu0 %v2497
        %3643 = vmatmul.mubr.bf16.gmra.mxu0 %v2422
        %v3644 = vpop.f32.mrf.mxu0
        %v3645 = vadd.f32 0.0, %v3644
        %v3646 = vpop.f32.mrf.mxu0
        %v3647 = vpop.f32.mrf.mxu0
        %v3648 = vadd.f32 0.0, %v3647
        %v3649 = vpop.f32.mrf.mxu0
        %3650 = vmatprep.mubr.bf16.mxu0 %v2509
        %3651 = vmatmul.mubr.bf16.gmra.mxu0 %v2423
        %v3652 = vpop.f32.mrf.mxu0
        %v3653 = vadd.f32 0.0, %v3652
        %v3654 = vpop.f32.mrf.mxu0
        %v3655 = vpop.f32.mrf.mxu0
        %v3656 = vadd.f32 0.0, %v3655
        %v3657 = vpop.f32.mrf.mxu0
        %3658 = vmatprep.mubr.bf16.mxu0 %v2521
        %3659 = vmatmul.mubr.bf16.gmra.mxu0 %v2424
        %v3660 = vpop.f32.mrf.mxu0
        %v3661 = vadd.f32 0.0, %v3660
        %v3662 = vpop.f32.mrf.mxu0
        %v3663 = vpop.f32.mrf.mxu0
        %v3664 = vadd.f32 0.0, %v3663
        %v3665 = vpop.f32.mrf.mxu0
        %3666 = vmatprep.mubr.bf16.mxu0 %v2533
        %3667 = vmatmul.mubr.bf16.gmra.mxu0 %v2425
        %v3668 = vpop.f32.mrf.mxu0
        %v3669 = vadd.f32 0.0, %v3668
        %v3670 = vpop.f32.mrf.mxu0
        %v3671 = vpop.f32.mrf.mxu0
        %v3672 = vadd.f32 0.0, %v3671
        %v3673 = vpop.f32.mrf.mxu0
        %3674 = vmatprep.mubr.bf16.mxu0 %v2649
        %3675 = vmatmul.mubr.bf16.gmra.mxu0 %v2426
        %v3676 = vpop.f32.mrf.mxu0
        %v3677 = vadd.f32 0.0, %v3676
        %v3678 = vpop.f32.mrf.mxu0
        %v3679 = vpop.f32.mrf.mxu0
        %v3680 = vadd.f32 0.0, %v3679
        %v3681 = vpop.f32.mrf.mxu0
        %3682 = vmatprep.mubr.bf16.mxu0 %v3393
        %3683 = vmatmul.mubr.bf16.gmra.mxu0 %v2427
        %v3684 = vpop.f32.mrf.mxu0
        %v3685 = vadd.f32 0.0, %v3684
        %v3686 = vpop.f32.mrf.mxu0
        %v3687 = vpop.f32.mrf.mxu0
        %v3688 = vadd.f32 0.0, %v3687
        %v3689 = vpop.f32.mrf.mxu0
        %3690 = vdwg.mxu0
        %3691 = vmatprep.subr.bf16.mxu0 0
        %3692 = vmatpush1.bf16.msra.mxu0 %v3569
        %3693 = vmatprep.subr.bf16.mxu0 0
        %3694 = vmatpush1.bf16.msra.mxu0 %v3568
        %3695 = vmatprep.subr.bf16.mxu0 0
        %3696 = vmatpush1.bf16.msra.mxu0 %v3567
        %3697 = vmatprep.subr.bf16.mxu0 0
        %3698 = vmatpush1.bf16.msra.mxu0 %v3566
        %3699 = vmatprep.subr.bf16.mxu0 0
        %3700 = vmatpush1.bf16.msra.mxu0 %v3565
        %3701 = vmatprep.subr.bf16.mxu0 0
        %3702 = vmatpush1.bf16.msra.mxu0 %v3564
        %3703 = vmatprep.subr.bf16.mxu0 0
        %3704 = vmatpush1.bf16.msra.mxu0 %v3563
        %3705 = vmatprep.subr.bf16.mxu0 0
        %3706 = vmatpush1.bf16.msra.mxu0 %v3562
        %3707 = vmatprep.subr.bf16.mxu0 0
        %3708 = vmatpush2.bf16.msra.mxu0 0
        %3709 = vmatprep.subr.bf16.mxu0 0
        %3710 = vmatpush2.bf16.msra.mxu0 0
        %3711 = vmatprep.subr.bf16.mxu0 0
        %3712 = vmatpush2.bf16.msra.mxu0 0
        %3713 = vmatprep.subr.bf16.mxu0 0
        %3714 = vmatpush2.bf16.msra.mxu0 0
        %3715 = vmatprep.subr.bf16.mxu0 0
        %3716 = vmatpush2.bf16.msra.mxu0 0
        %3717 = vmatprep.subr.bf16.mxu0 0
        %3718 = vmatpush2.bf16.msra.mxu0 0
        %3719 = vmatprep.subr.bf16.mxu0 0
        %3720 = vmatpush2.bf16.msra.mxu0 0
        %3721 = vmatprep.subr.bf16.mxu0 0
        %3722 = vmatpush2.bf16.msra.mxu0 0
        %3723 = vmatprep.mubr.bf16.mxu0 0
        %3724 = vmatmul.mubr.bf16.gmra.mxu0 %v2566
        %v3725 = vpop.f32.mrf.mxu0
        %v3726 = vadd.f32 %v3629, %v3725
        %v3727 = vpop.f32.mrf.mxu0
        %v3728 = vpop.f32.mrf.mxu0
        %v3729 = vadd.f32 %v3632, %v3728
        %v3730 = vpop.f32.mrf.mxu0
        %3731 = vmatprep.mubr.bf16.mxu0 0
        %3732 = vmatmul.mubr.bf16.gmra.mxu0 %v2569
        %v3733 = vpop.f32.mrf.mxu0
        %v3734 = vadd.f32 %v3637, %v3733
        %v3735 = vpop.f32.mrf.mxu0
        %v3736 = vpop.f32.mrf.mxu0
        %v3737 = vadd.f32 %v3640, %v3736
        %v3738 = vpop.f32.mrf.mxu0
        %3739 = vmatprep.mubr.bf16.mxu0 0
        %3740 = vmatmul.mubr.bf16.gmra.mxu0 %v2572
        %v3741 = vpop.f32.mrf.mxu0
        %v3742 = vadd.f32 %v3645, %v3741
        %v3743 = vpop.f32.mrf.mxu0
        %v3744 = vpop.f32.mrf.mxu0
        %v3745 = vadd.f32 %v3648, %v3744
        %v3746 = vpop.f32.mrf.mxu0
        %3747 = vmatprep.mubr.bf16.mxu0 0
        %3748 = vmatmul.mubr.bf16.gmra.mxu0 %v2575
        %v3749 = vpop.f32.mrf.mxu0
        %v3750 = vadd.f32 %v3653, %v3749
        %v3751 = vpop.f32.mrf.mxu0
        %v3752 = vpop.f32.mrf.mxu0
        %v3753 = vadd.f32 %v3656, %v3752
        %v3754 = vpop.f32.mrf.mxu0
        %3755 = vmatprep.mubr.bf16.mxu0 0
        %3756 = vmatmul.mubr.bf16.gmra.mxu0 %v2578
        %v3757 = vpop.f32.mrf.mxu0
        %v3758 = vadd.f32 %v3661, %v3757
        %v3759 = vpop.f32.mrf.mxu0
        %v3760 = vpop.f32.mrf.mxu0
        %v3761 = vadd.f32 %v3664, %v3760
        %v3762 = vpop.f32.mrf.mxu0
        %3763 = vmatprep.mubr.bf16.mxu0 0
        %3764 = vmatmul.mubr.bf16.gmra.mxu0 %v2581
        %v3765 = vpop.f32.mrf.mxu0
        %v3766 = vadd.f32 %v3669, %v3765
        %v3767 = vpop.f32.mrf.mxu0
        %v3768 = vpop.f32.mrf.mxu0
        %v3769 = vadd.f32 %v3672, %v3768
        %v3770 = vpop.f32.mrf.mxu0
        %3771 = vmatprep.mubr.bf16.mxu0 0
        %3772 = vmatmul.mubr.bf16.gmra.mxu0 %v2655
        %v3773 = vpop.f32.mrf.mxu0
        %v3774 = vadd.f32 %v3677, %v3773
        %v3775 = vpop.f32.mrf.mxu0
        %v3776 = vpop.f32.mrf.mxu0
        %v3777 = vadd.f32 %v3680, %v3776
        %v3778 = vpop.f32.mrf.mxu0
        %3779 = vmatprep.mubr.bf16.mxu0 0
        %3780 = vmatmul.mubr.bf16.gmra.mxu0 %v3399
        %v3781 = vpop.f32.mrf.mxu0
        %v3782 = vadd.f32 %v3685, %v3781
        %v3783 = vpop.f32.mrf.mxu0
        %v3784 = vpop.f32.mrf.mxu0
        %v3785 = vadd.f32 %v3688, %v3784
        %v3786 = vpop.f32.mrf.mxu0
        %3787 = vdwg.mxu0
        %v3788 = vadd.f32 %v3320, %v3726
        %v3789 = vadd.f32 %v3323, %v3729
        %v3790 = vadd.f32 %v3328, %v3734
        %v3791 = vadd.f32 %v3331, %v3737
        %v3792 = vadd.f32 %v3336, %v3742
        %v3793 = vadd.f32 %v3339, %v3745
        %v3794 = vadd.f32 %v3344, %v3750
        %v3795 = vadd.f32 %v3347, %v3753
        %v3796 = vadd.f32 %v3352, %v3758
        %v3797 = vadd.f32 %v3355, %v3761
        %v3798 = vadd.f32 %v3360, %v3766
        %v3799 = vadd.f32 %v3363, %v3769
        %v3800 = vadd.f32 %v3368, %v3774
        %v3801 = vadd.f32 %v3371, %v3777
        %v3802 = vadd.f32 %v3376, %v3782
        %v3803 = vadd.f32 %v3379, %v3785
        %s3804 = smul.u32 %s239, 16
        %s3805 = scalar_lea.vmem %s226, %s3804
        %v3806 = vld [vmem:[%s3805] sm:$0xff]
        %v3807 = vld [vmem:[%s3805 + $0x8] sm:$0xff]
        %v3808 = vld [vmem:[%s3805 + $0x10] sm:$0xff]
        %v3809 = vld [vmem:[%s3805 + $0x18] sm:$0xff]
        %v3810 = vld [vmem:[%s3805 + $0x20] sm:$0xff]
        %v3811 = vld [vmem:[%s3805 + $0x28] sm:$0xff]
        %v3812 = vld [vmem:[%s3805 + $0x30] sm:$0xff]
        %v3813 = vld [vmem:[%s3805 + $0x38] sm:$0xff]
        %v3814 = vld [vmem:[%s3805 + $0x40] sm:$0xff]
        %v3815 = vld [vmem:[%s3805 + $0x48] sm:$0xff]
        %v3816 = vld [vmem:[%s3805 + $0x50] sm:$0xff]
        %v3817 = vld [vmem:[%s3805 + $0x58] sm:$0xff]
        %v3818 = vld [vmem:[%s3805 + $0x60] sm:$0xff]
        %v3819 = vld [vmem:[%s3805 + $0x68] sm:$0xff]
        %v3820 = vld [vmem:[%s3805 + $0x70] sm:$0xff]
        %v3821 = vld [vmem:[%s3805 + $0x78] sm:$0xff]
        %v3822 = vadd.f32 %v3806, %v3788
        %v3823 = vadd.f32 %v3807, %v3789
        %v3824 = vadd.f32 %v3808, %v3790
        %v3825 = vadd.f32 %v3809, %v3791
        %v3826 = vadd.f32 %v3810, %v3792
        %v3827 = vadd.f32 %v3811, %v3793
        %v3828 = vadd.f32 %v3812, %v3794
        %v3829 = vadd.f32 %v3813, %v3795
        %v3830 = vadd.f32 %v3814, %v3796
        %v3831 = vadd.f32 %v3815, %v3797
        %v3832 = vadd.f32 %v3816, %v3798
        %v3833 = vadd.f32 %v3817, %v3799
        %v3834 = vadd.f32 %v3818, %v3800
        %v3835 = vadd.f32 %v3819, %v3801
        %v3836 = vadd.f32 %v3820, %v3802
        %v3837 = vadd.f32 %v3821, %v3803
        %3838 = vst.msk [vmem:[%s236] sm:$0xff] %vm293, %v3822
        %3839 = vst.msk [vmem:[%s236 + $0x8] sm:$0xff] %vm293, %v3823
        %3840 = vst.msk [vmem:[%s236 + $0x10] sm:$0xff] %vm293, %v3824
        %3841 = vst.msk [vmem:[%s236 + $0x18] sm:$0xff] %vm293, %v3825
        %3842 = vst.msk [vmem:[%s236 + $0x20] sm:$0xff] %vm293, %v3826
        %3843 = vst.msk [vmem:[%s236 + $0x28] sm:$0xff] %vm293, %v3827
        %3844 = vst.msk [vmem:[%s236 + $0x30] sm:$0xff] %vm293, %v3828
        %3845 = vst.msk [vmem:[%s236 + $0x38] sm:$0xff] %vm293, %v3829
        %3846 = vst.msk [vmem:[%s236 + $0x40] sm:$0xff] %vm293, %v3830
        %3847 = vst.msk [vmem:[%s236 + $0x48] sm:$0xff] %vm293, %v3831
        %3848 = vst.msk [vmem:[%s236 + $0x50] sm:$0xff] %vm293, %v3832
        %3849 = vst.msk [vmem:[%s236 + $0x58] sm:$0xff] %vm293, %v3833
        %3850 = vst.msk [vmem:[%s236 + $0x60] sm:$0xff] %vm293, %v3834
        %3851 = vst.msk [vmem:[%s236 + $0x68] sm:$0xff] %vm293, %v3835
        %3852 = vst.msk [vmem:[%s236 + $0x70] sm:$0xff] %vm293, %v3836
        %3853 = vst.msk [vmem:[%s236 + $0x78] sm:$0xff] %vm293, %v3837
        %s3854 = smul.u32 8, %s21
        %p3855 = scmp.lt.s32.totalorder %s20, 1
        %s3856 = scalar_select %p3855, %s20, 1
        %p3857 = scmp.lt.s32.totalorder %s3854, 15
        %s3858 = scalar_select %p3857, %s3854, 15
        %s3859 = smul.addr %s3858, 2
        %s3860 = smul.addr %s3856, 32
        %s3861 = sadd.s32 %s3859, %s3860
        %s3862 = smul.addr %s3861, 8
        %s3863 = scalar_lea.vmem %s4, %s3862
        // Predicated region
        $region41: #{tpu_custom_call.1} parent=35 // pred_check
          %p3864 = pneg %p137
        $region42: #{tpu_custom_call.1} parent=35 // pred_check_branch
          %3866 = sbr.rel (%p3864) target = $region44
        $region43: #{tpu_custom_call.1} parent=35 // pred_region
          %s3867 = smul.u32 8, %s21
        $region44: #{tpu_custom_call.1} parent=35 // pred_fallthru
          _
      $region36: #{tpu_custom_call.1} parent=5 // pred_fallthru
        _
      %p3868 = scmp.le.s32.totalorder 2, %s11
      // Predicated region
      $region45: #{tpu_custom_call.1} parent=5 // pred_check
        %p3869 = pneg %p3868
      $region46: #{tpu_custom_call.1} parent=5 // pred_check_branch
        %3871 = sbr.rel (%p3869) target = $region48
      $region47: #{tpu_custom_call.1} parent=5 // pred_region
        %s3872 = ssub.s32 %s11, 2
        // Predicated region
        $region49: #{tpu_custom_call.1} parent=47 // pred_check
          %p3873 = pneg %p143
        $region50: #{tpu_custom_call.1} parent=47 // pred_check_branch
          %3875 = sbr.rel (%p3873) target = $region52
        $region51: #{tpu_custom_call.1} parent=47 // pred_region
          %s3876 = smul.u32 8, %s23
          %p3877 = scmp.lt.s32.totalorder %s22, 1
          %s3878 = scalar_select %p3877, %s22, 1
          %p3879 = scmp.lt.s32.totalorder %s3876, 15
          %s3880 = scalar_select %p3879, %s3876, 15
          %s3881 = smul.addr %s3880, 2
          %s3882 = smul.addr %s3878, 32
          %s3883 = sadd.s32 %s3881, %s3882
          %s3884 = smul.addr %s3883, 8
          %s3885 = scalar_lea.vmem %s4, %s3884
        $region52: #{tpu_custom_call.1} parent=47 // pred_fallthru
          _
      $region48: #{tpu_custom_call.1} parent=5 // pred_fallthru
        _
    $region6: #{tpu_custom_call.1} parent=1 // loop_footer
      %s15 = sadd.s32 1, %s11
    $region7: #{tpu_custom_call.1} parent=1 // loop_footer_branch
      %10 = sbr.rel target = $region3
    $region8: #{tpu_custom_call.1} parent=1 // loop_exit
      _
    %3886 = vsyncpa [#allocation4], 1
    %s3887 = scalar_lea.sflag [#allocation4], 1
    %3888 = vsyncpa %s3887, 1

</llo_original>
